<compile_context>
chip_gen: v7x
topology: tpu7x:2x2x1
jax: 0.10.0
libtpu: 0.0.40
codegen_flags: <defaults>
</compile_context>

<pallas_src>
import functools
import math

import jax
import jax.numpy as jnp
from jax.experimental import pallas as pl
from jax.experimental.pallas import tpu as pltpu
from jax.scipy.special import erf   # used only by the pure-JAX reference


def _gelu_exact_f32(x):
    """Exact (erf-based) GELU in f32; erf via A&S 7.1.26 (|err| <= 1.5e-7)."""
    a1, a2, a3, a4, a5 = (0.254829592, -0.284496736, 1.421413741,
                          -1.453152027, 1.061405429)
    p = 0.3275911
    u = x * (1.0 / math.sqrt(2.0))
    au = jnp.abs(u)
    t = 1.0 / (1.0 + p * au)
    poly = ((((a5 * t + a4) * t + a3) * t + a2) * t + a1) * t
    e = 1.0 - poly * jnp.exp(-(au * au))
    erf_u = jnp.where(u < 0.0, -e, e)
    return 0.5 * x * (1.0 + erf_u)


def _ffn_kernel(x_ref, halo_ref, w_in_ref, b_in_ref, w_dw_ref, b_dw_ref,
                w_out_ref, b_out_ref, o_ref, *, compute_dtype):
    # x_ref    : (TH, W, C)      one H-tile of one batch element (NHWC)
    # halo_ref : (2, 2, W, HF)   pre-projected halo rows [half, top/bot, W, HF]
    #                            (exact zeros where the halo row is outside the image)
    # w_in_ref : (2, C, HF)   b_in_ref : (2, 1, HF)
    # w_dw_ref : (2, 9, HF)   b_dw_ref : (2, 1, HF)   (row-major 3x3 taps)
    # w_out_ref: (HF, C)      b_out_ref: (1, C)
    th, W, C = x_ref.shape
    cdt = compute_dtype
    n_out = th * W
    n_ext = (th + 2) * W

    # Flatten the spatial rows onto the matmul M dim (layout-free when W % 8 == 0).
    x2d = x_ref[...].reshape(n_out, C).astype(jnp.bfloat16)

    # Horizontal-neighbour validity masks (shared by both halves), (n_ext, 1).
    pos = jax.lax.broadcasted_iota(jnp.int32, (n_ext, 1), 0)
    col = pos % W
    left_ok = col >= 1
    right_ok = col < (W - 1)

    def dwconv_half(h):
        # ---- project_in (1x1 conv): bf16 operands, f32 accumulation (MXU) ----
        t = jnp.dot(x2d, w_in_ref[h].astype(jnp.bfloat16),
                    preferred_element_type=jnp.float32)
        t = (t + b_in_ref[h]).astype(cdt)                         # (n_out, hf)

        # Prepend/append the pre-projected halo rows (already correct zero-pad).
        t_ext = jnp.concatenate(
            [halo_ref[h, 0].astype(cdt), t, halo_ref[h, 1].astype(cdt)],
            axis=0)                                               # (n_ext, hf)

        # ---- depthwise 3x3, stride 1, pad 1 ----
        # W taps: sublane rotations (non-negative shifts) + edge masks.
        t_l = jnp.where(left_ok, pltpu.roll(t_ext, 1, 0), 0.0)           # (h, w-1)
        t_r = jnp.where(right_ok, pltpu.roll(t_ext, n_ext - 1, 0), 0.0)  # (h, w+1)
        wdw = w_dw_ref[h].astype(cdt)                                    # (9, hf)

        # H taps: aligned row-block slices (offsets 0, W, 2W); single accumulator.
        acc = t_l[0:n_out] * wdw[0]
        acc = acc + t_ext[0:n_out] * wdw[1]
        acc = acc + t_r[0:n_out] * wdw[2]
        acc = acc + t_l[W:W + n_out] * wdw[3]
        acc = acc + t_ext[W:W + n_out] * wdw[4]
        acc = acc + t_r[W:W + n_out] * wdw[5]
        acc = acc + t_l[2 * W:2 * W + n_out] * wdw[6]
        acc = acc + t_ext[2 * W:2 * W + n_out] * wdw[7]
        acc = acc + t_r[2 * W:2 * W + n_out] * wdw[8]
        return acc + b_dw_ref[h].astype(cdt)                             # (n_out, hf)

    y1 = dwconv_half(0)          # gelu branch (x1)
    y2 = dwconv_half(1)          # gate branch (x2)

    # ---- gelu(x1) * x2 gate; exact erf evaluated in f32 ----
    g = _gelu_exact_f32(y1.astype(jnp.float32))
    z = (g.astype(cdt) * y2).astype(jnp.bfloat16)                        # (n_out, hf)

    # ---- project_out (1x1 conv): bf16 operands, f32 accumulation (MXU) ----
    out = jnp.dot(z, w_out_ref[...].astype(jnp.bfloat16),
                  preferred_element_type=jnp.float32)
    out = out + b_out_ref[...]
    o_ref[...] = out.reshape(th, W, C).astype(o_ref.dtype)


def _pick_block_h(B, H, W, C, hf, *, in_bytes, compute_bytes, vmem_budget_bytes):
    """Largest divisor of H whose estimated per-step VMEM footprint fits."""
    def footprint(th):
        rows, rows_ext = th * W, (th + 2) * W
        io = 2 * 2 * rows * C * in_bytes                 # double-buffered x / out blocks
        halo = 2 * 2 * 2 * W * hf * 4                    # double-buffered projected halos
        inter = 3 * rows_ext * hf * compute_bytes        # t_ext, t_l, t_r (one half live)
        inter += 2 * rows * hf * compute_bytes           # y1 + running accumulator
        inter += rows * hf * 4 + rows * C * 4            # f32 matmul outputs / gelu temp
        return io + halo + inter + (1 << 20)             # ~1 MiB weights / misc slack

    divs = [d for d in range(1, H + 1)
            if H % d == 0 and footprint(d) <= vmem_budget_bytes]
    if not divs:
        return 1
    # Prefer tiles that keep B * n_h even (both v7x TensorCores busy);
    # tie-break towards the largest tile (fewest halo rows, least step overhead).
    even = [d for d in divs if (B * (H // d)) % 2 == 0]
    return max(even) if even else max(divs)


def feed_forward(x, params, *, data_format="NCHW", compute_dtype=jnp.float32,
                 block_h=None, vmem_limit_bytes=48 * 1024 * 1024,
                 vmem_budget_bytes=24 * 1024 * 1024):
    """Pallas FeedForward: project_in 1x1 -> depthwise 3x3 -> GELU gate -> project_out 1x1.

    x: (B, C, H, W) for data_format="NCHW" (PyTorch) or (B, H, W, C) for "NHWC".
    compute_dtype: dwconv/gate intermediate dtype.  f32 is safe on every
      generation (use on v5e, which has no bf16 VALU); bf16 halves VPU work and
      VMEM on v6e/v7x.  Matmul operands are always bf16 with f32 accumulation.
    vmem_limit_bytes / vmem_budget_bytes: defaults are safe on v7x (64 MiB
      physical VMEM/core); raise to ~96 MiB on v5e/v6e for larger H-tiles.
    """
    w_in, b_in, w_dw, b_dw, w_out, b_out = params

    if data_format == "NCHW":
        x_nhwc = jnp.transpose(x, (0, 2, 3, 1))
    elif data_format == "NHWC":
        x_nhwc = x
    else:
        raise ValueError(f"unknown data_format {data_format!r}")

    B, H, W, C = x_nhwc.shape
    hf = w_out.shape[0]

    # Split per-channel params into their x1/x2 halves (stacked on a leading
    # axis of 2) so the kernel never slices the lane axis at column hf.
    w_in_s = jnp.stack([w_in[:, :hf], w_in[:, hf:]])     # (2, C, hf)
    b_in_s = jnp.stack([b_in[:, :hf], b_in[:, hf:]])     # (2, 1, hf)
    w_dw_s = jnp.stack([w_dw[:, :hf], w_dw[:, hf:]])     # (2, 9, hf)
    b_dw_s = jnp.stack([b_dw[:, :hf], b_dw[:, hf:]])     # (2, 1, hf)

    if block_h is None:
        th = _pick_block_h(
            B, H, W, C, hf,
            in_bytes=x_nhwc.dtype.itemsize,
            compute_bytes=jnp.dtype(compute_dtype).itemsize,
            vmem_budget_bytes=vmem_budget_bytes)
    else:
        th = block_h
    if H % th != 0:
        raise ValueError(f"block_h={th} must divide H={H}")
    n_h = H // th

    # Pre-project the 1-row conv halo above/below each H-tile here (2 rows per
    # tile, tiny).  Rows outside the image are exact zeros == the zero-padding
    # of the dwconv applied to the project_in output, so the kernel needs no
    # edge masking at all.
    top_rows = x_nhwc[:, th - 1::th][:, :n_h - 1]        # image rows i*th - 1   (i >= 1)
    bot_rows = x_nhwc[:, th::th][:, :n_h - 1]            # image rows (i+1)*th   (i < n_h-1)
    zrow = jnp.zeros((B, 1, W, hf), jnp.float32)

    def _project(rows, h):                                # (B, n_h-1, W, C) -> (..., hf)
        t = jnp.einsum('bnwc,cf->bnwf', rows.astype(jnp.float32), w_in_s[h])
        return t + b_in_s[h, 0]

    halves = []
    for h in range(2):
        top = jnp.concatenate([zrow, _project(top_rows, h)], axis=1)   # (B, n_h, W, hf)
        bot = jnp.concatenate([_project(bot_rows, h), zrow], axis=1)
        halves.append(jnp.stack([top, bot], axis=2))                   # (B, n_h, 2, W, hf)
    halo = jnp.stack(halves, axis=2)                      # (B, n_h, 2, 2, W, hf)

    kernel = functools.partial(_ffn_kernel, compute_dtype=compute_dtype)

    # NOTE: C / hf are left unpadded; for real Restormer dims (C=48) padding C
    # and hf to 128 in this wrapper (lane-dense store, fuller MXU K) is worth
    # benchmarking against the extra HBM traffic.
    out_nhwc = pl.pallas_call(
        kernel,
        out_shape=jax.ShapeDtypeStruct((B, H, W, C), x_nhwc.dtype),
        grid=(B, n_h),
        in_specs=[
            pl.BlockSpec((None, th, W, C), lambda b, i: (b, i, 0, 0)),               # x tile
            pl.BlockSpec((None, None, 2, 2, W, hf), lambda b, i: (b, i, 0, 0, 0, 0)),  # halos
            pl.BlockSpec(w_in_s.shape, lambda b, i: (0, 0, 0)),   # weights: VMEM-resident
            pl.BlockSpec(b_in_s.shape, lambda b, i: (0, 0, 0)),
            pl.BlockSpec(w_dw_s.shape, lambda b, i: (0, 0, 0)),
            pl.BlockSpec(b_dw_s.shape, lambda b, i: (0, 0, 0)),
            pl.BlockSpec(w_out.shape, lambda b, i: (0, 0)),
            pl.BlockSpec(b_out.shape, lambda b, i: (0, 0)),
        ],
        out_specs=pl.BlockSpec((None, th, W, C), lambda b, i: (b, i, 0, 0)),
        compiler_params=pltpu.CompilerParams(
            dimension_semantics=("parallel", "parallel"),
            vmem_limit_bytes=vmem_limit_bytes,
        ),
    )(x_nhwc, halo, w_in_s, b_in_s, w_dw_s, b_dw_s, w_out, b_out)

    if data_format == "NCHW":
        return jnp.transpose(out_nhwc, (0, 3, 1, 2))
    return out_nhwc


def feed_forward_ref(x_nchw, params):
    """Pure-JAX f32 reference (ground truth), same math as the PyTorch module."""
    w_in, b_in, w_dw, b_dw, w_out, b_out = params
    x = jnp.transpose(x_nchw, (0, 2, 3, 1))
    B, H, W, C = x.shape
    hf = w_out.shape[0]

    t = jnp.einsum('bhwc,cd->bhwd', x, w_in,
                   precision=jax.lax.Precision.HIGHEST) + b_in[0]
    tp = jnp.pad(t, ((0, 0), (1, 1), (1, 1), (0, 0)))
    y = jnp.broadcast_to(b_dw[0], t.shape)
    for dy in range(3):
        for dx in range(3):
            y = y + tp[:, dy:dy + H, dx:dx + W, :] * w_dw[3 * dy + dx]
    x1, x2 = y[..., :hf], y[..., hf:]
    g = 0.5 * x1 * (1.0 + erf(x1 / math.sqrt(2.0)))
    z = g * x2
    out = jnp.einsum('bhwf,fc->bhwc', z, w_out,
                     precision=jax.lax.Precision.HIGHEST) + b_out[0]
    return jnp.transpose(out, (0, 3, 1, 2))


def init_params(key, dim, ffn_expansion_factor):
    """Deterministic synthetic params (bias=True) in kernel-friendly layouts.

    PyTorch correspondence:
      w_in  = project_in.weight[:, :, 0, 0].T          (dim, 2*hidden)
      b_in  = project_in.bias[None]                    (1, 2*hidden)
      w_dw  = dwconv.weight[:, 0].reshape(C2, 9).T     (9, 2*hidden)  row-major taps
      b_dw  = dwconv.bias[None]                        (1, 2*hidden)
      w_out = project_out.weight[:, :, 0, 0].T         (hidden, dim)
      b_out = project_out.bias[None]                   (1, dim)
    """
    hidden = int(dim * ffn_expansion_factor)
    c2 = 2 * hidden
    ks = jax.random.split(key, 6)
    w_in = 0.1 * jax.random.normal(ks[0], (dim, c2), jnp.float32)
    b_in = 0.1 * jax.random.normal(ks[1], (1, c2), jnp.float32)
    w_dw = 0.1 * jax.random.normal(ks[2], (9, c2), jnp.float32)
    b_dw = 0.1 * jax.random.normal(ks[3], (1, c2), jnp.float32)
    w_out = 0.1 * jax.random.normal(ks[4], (hidden, dim), jnp.float32)
    b_out = 0.1 * jax.random.normal(ks[5], (1, dim), jnp.float32)
    return (w_in, b_in, w_dw, b_dw, w_out, b_out)


if __name__ == "__main__":
    key = jax.random.PRNGKey(0)
    kx, kp = jax.random.split(key)

    B, C, H, W = 2, 4, 16, 16
    ffn_expansion_factor = 2          # hidden_features = 8

    x = jax.random.normal(kx, (B, C, H, W), jnp.float32)
    params = init_params(kp, C, ffn_expansion_factor)
    ref = feed_forward_ref(x, params)

    # f32 intermediates, auto tile size (single H-tile at this small shape).
    # Tolerance covers bf16-operand MXU matmuls (f32 accumulation).
    out = jax.block_until_ready(feed_forward(x, params))
    assert out.shape == (B, C, H, W)
    err = float(jnp.max(jnp.abs(out - ref)))
    assert err < 1e-2, f"f32/auto-tile mismatch vs reference: {err}"

    # f32 intermediates, two H-tiles per image (exercises the projected-halo path).
    out = jax.block_until_ready(feed_forward(x, params, block_h=8))
    err = float(jnp.max(jnp.abs(out - ref)))
    assert err < 1e-2, f"f32/block_h=8 mismatch vs reference: {err}"

    # bf16 intermediates (v6e/v7x fast path), looser tolerance.
    out = jax.block_until_ready(
        feed_forward(x, params, block_h=8, compute_dtype=jnp.bfloat16))
    err = float(jnp.max(jnp.abs(out - ref)))
    assert err < 3e-2, f"bf16/block_h=8 mismatch vs reference: {err}"

    print("KERNEL_OK")
</pallas_src>

<mosaic_0001>
module attributes {stable_mosaic.version = 11 : i64} {
  func.func @_ffn_kernel(%arg0: i32, %arg1: i32, %arg2: memref<1x16x16x4xf32, #tpu.memory_space<vmem>>, %arg3: memref<1x1x2x2x16x8xf32, #tpu.memory_space<vmem>>, %arg4: memref<2x4x8xf32, #tpu.memory_space<vmem>>, %arg5: memref<2x1x8xf32, #tpu.memory_space<vmem>>, %arg6: memref<2x9x8xf32, #tpu.memory_space<vmem>>, %arg7: memref<2x1x8xf32, #tpu.memory_space<vmem>>, %arg8: memref<8x4xf32, #tpu.memory_space<vmem>>, %arg9: memref<1x4xf32, #tpu.memory_space<vmem>>, %arg10: memref<1x16x16x4xf32, #tpu.memory_space<vmem>>) attributes {dimension_semantics = [#tpu.dimension_semantics<parallel>, #tpu.dimension_semantics<parallel>], iteration_bounds = array<i64: 2, 1>, scalar_prefetch = 0 : i64, scratch_operands = 0 : i64, tpu.core_type = #tpu.core_type<tc>, window_params = [{transform_indices = @transform_0, window_bounds = array<i64: 1, 16, 16, 4>}, {transform_indices = @transform_1, window_bounds = array<i64: 1, 1, 2, 2, 16, 8>}, {pipeline_mode = #tpu.pipeline_mode<synchronous>, transform_indices = @transform_2, window_bounds = array<i64: 2, 4, 8>}, {pipeline_mode = #tpu.pipeline_mode<synchronous>, transform_indices = @transform_3, window_bounds = array<i64: 2, 1, 8>}, {pipeline_mode = #tpu.pipeline_mode<synchronous>, transform_indices = @transform_4, window_bounds = array<i64: 2, 9, 8>}, {pipeline_mode = #tpu.pipeline_mode<synchronous>, transform_indices = @transform_5, window_bounds = array<i64: 2, 1, 8>}, {pipeline_mode = #tpu.pipeline_mode<synchronous>, transform_indices = @transform_6, window_bounds = array<i64: 8, 4>}, {pipeline_mode = #tpu.pipeline_mode<synchronous>, transform_indices = @transform_7, window_bounds = array<i64: 1, 4>}, {transform_indices = @transform_8, window_bounds = array<i64: 1, 16, 16, 4>}]} {
    %c0 = arith.constant 0 : index
    %c0_0 = arith.constant 0 : index
    %c0_1 = arith.constant 0 : index
    %c0_2 = arith.constant 0 : index
    %0 = vector.load %arg2[%c0, %c0_0, %c0_1, %c0_2] : memref<1x16x16x4xf32, #tpu.memory_space<vmem>>, vector<1x16x16x4xf32>
    %1 = vector.shape_cast %0 : vector<1x16x16x4xf32> to vector<16x16x4xf32>
    %2 = vector.shape_cast %1 : vector<16x16x4xf32> to vector<256x4xf32>
    %3 = arith.truncf %2 : vector<256x4xf32> to vector<256x4xbf16>
    %4 = tpu.iota {dimensions = array<i32: 0>} : vector<288x1xi32>
    %c16_i32 = arith.constant 16 : i32
    %c0_i32 = arith.constant 0 : i32
    %5 = arith.cmpi eq, %c16_i32, %c0_i32 : i32
    %c1_i32 = arith.constant 1 : i32
    %6 = arith.select %5, %c1_i32, %c16_i32 : i32
    %7 = vector.broadcast %6 : i32 to vector<288x1xi32>
    %8 = arith.remsi %4, %7 : vector<288x1xi32>
    %c0_i32_3 = arith.constant 0 : i32
    %9 = vector.broadcast %c0_i32_3 : i32 to vector<288x1xi32>
    %10 = arith.cmpi ne, %8, %9 : vector<288x1xi32>
    %c0_i32_4 = arith.constant 0 : i32
    %11 = vector.broadcast %c0_i32_4 : i32 to vector<288x1xi32>
    %12 = arith.cmpi slt, %8, %11 : vector<288x1xi32>
    %c0_i32_5 = arith.constant 0 : i32
    %13 = arith.cmpi slt, %6, %c0_i32_5 : i32
    %14 = vector.broadcast %13 : i1 to vector<288x1xi1>
    %15 = vector.broadcast %14 : vector<288x1xi1> to vector<288x1xi1>
    %16 = arith.xori %12, %15 : vector<288x1xi1>
    %17 = arith.andi %16, %10 : vector<288x1xi1>
    %18 = vector.broadcast %6 : i32 to vector<288x1xi32>
    %19 = arith.addi %8, %18 : vector<288x1xi32>
    %20 = arith.select %17, %19, %8 : vector<288x1xi1>, vector<288x1xi32>
    %c1_i32_6 = arith.constant 1 : i32
    %21 = vector.broadcast %c1_i32_6 : i32 to vector<288x1xi32>
    %22 = arith.cmpi sge, %20, %21 : vector<288x1xi32>
    %c15_i32 = arith.constant 15 : i32
    %23 = vector.broadcast %c15_i32 : i32 to vector<288x1xi32>
    %24 = arith.cmpi slt, %20, %23 : vector<288x1xi32>
    %c0_7 = arith.constant 0 : index
    %c0_8 = arith.constant 0 : index
    %c0_9 = arith.constant 0 : index
    %25 = vector.load %arg4[%c0_7, %c0_8, %c0_9] : memref<2x4x8xf32, #tpu.memory_space<vmem>>, vector<1x4x8xf32>
    %26 = vector.shape_cast %25 : vector<1x4x8xf32> to vector<4x8xf32>
    %27 = arith.truncf %26 : vector<4x8xf32> to vector<4x8xbf16>
    %cst = arith.constant dense<0.000000e+00> : vector<256x8xf32>
    %28 = tpu.matmul %3, %27, %cst {dimension_numbers = #tpu.dot_dimension_numbers<[1], [0], [0], [1], [0, 0, 1, 1], [], []>} : vector<256x4xbf16>, vector<4x8xbf16>, vector<256x8xf32> -> vector<256x8xf32>
    %c0_10 = arith.constant 0 : index
    %c0_11 = arith.constant 0 : index
    %c0_12 = arith.constant 0 : index
    %29 = vector.load %arg5[%c0_10, %c0_11, %c0_12] : memref<2x1x8xf32, #tpu.memory_space<vmem>>, vector<1x1x8xf32>
    %30 = vector.shape_cast %29 : vector<1x1x8xf32> to vector<1x8xf32>
    %31 = vector.broadcast %30 : vector<1x8xf32> to vector<256x8xf32>
    %32 = arith.addf %28, %31 : vector<256x8xf32>
    %c0_13 = arith.constant 0 : index
    %c0_14 = arith.constant 0 : index
    %c0_15 = arith.constant 0 : index
    %c0_16 = arith.constant 0 : index
    %c0_17 = arith.constant 0 : index
    %c0_18 = arith.constant 0 : index
    %33 = vector.load %arg3[%c0_13, %c0_14, %c0_15, %c0_16, %c0_17, %c0_18] : memref<1x1x2x2x16x8xf32, #tpu.memory_space<vmem>>, vector<1x1x1x1x16x8xf32>
    %34 = vector.shape_cast %33 : vector<1x1x1x1x16x8xf32> to vector<16x8xf32>
    %c0_19 = arith.constant 0 : index
    %c0_20 = arith.constant 0 : index
    %c0_21 = arith.constant 0 : index
    %c1 = arith.constant 1 : index
    %c0_22 = arith.constant 0 : index
    %c0_23 = arith.constant 0 : index
    %35 = vector.load %arg3[%c0_19, %c0_20, %c0_21, %c1, %c0_22, %c0_23] : memref<1x1x2x2x16x8xf32, #tpu.memory_space<vmem>>, vector<1x1x1x1x16x8xf32>
    %36 = vector.shape_cast %35 : vector<1x1x1x1x16x8xf32> to vector<16x8xf32>
    %37 = tpu.concatenate %34, %32, %36 in 0 : vector<16x8xf32>, vector<256x8xf32>, vector<16x8xf32> -> vector<288x8xf32>
    %c1_i32_24 = arith.constant 1 : i32
    %38 = tpu.dynamic_rotate %37 by %c1_i32_24 dim 0 : vector<288x8xf32>, i32 -> vector<288x8xf32>
    %cst_25 = arith.constant 0.000000e+00 : f32
    %39 = vector.shape_cast %22 : vector<288x1xi1> to vector<288x1xi1>
    %40 = vector.broadcast %39 : vector<288x1xi1> to vector<288x8xi1>
    %41 = vector.broadcast %cst_25 : f32 to vector<288x8xf32>
    %42 = arith.select %40, %38, %41 : vector<288x8xi1>, vector<288x8xf32>
    %c287_i32 = arith.constant 287 : i32
    %43 = tpu.dynamic_rotate %37 by %c287_i32 dim 0 : vector<288x8xf32>, i32 -> vector<288x8xf32>
    %cst_26 = arith.constant 0.000000e+00 : f32
    %44 = vector.shape_cast %24 : vector<288x1xi1> to vector<288x1xi1>
    %45 = vector.broadcast %44 : vector<288x1xi1> to vector<288x8xi1>
    %46 = vector.broadcast %cst_26 : f32 to vector<288x8xf32>
    %47 = arith.select %45, %43, %46 : vector<288x8xi1>, vector<288x8xf32>
    %c0_27 = arith.constant 0 : index
    %c0_28 = arith.constant 0 : index
    %c0_29 = arith.constant 0 : index
    %48 = vector.load %arg6[%c0_27, %c0_28, %c0_29] : memref<2x9x8xf32, #tpu.memory_space<vmem>>, vector<1x9x8xf32>
    %49 = vector.shape_cast %48 : vector<1x9x8xf32> to vector<9x8xf32>
    %50 = vector.extract_strided_slice %42 {offsets = [0, 0], sizes = [256, 8], strides = [1, 1]} : vector<288x8xf32> to vector<256x8xf32>
    %51 = vector.extract_strided_slice %49 {offsets = [0, 0], sizes = [1, 8], strides = [1, 1]} : vector<9x8xf32> to vector<1x8xf32>
    %52 = vector.shape_cast %51 : vector<1x8xf32> to vector<8xf32>
    %53 = vector.shape_cast %52 : vector<8xf32> to vector<1x8xf32>
    %54 = vector.broadcast %53 : vector<1x8xf32> to vector<256x8xf32>
    %55 = arith.mulf %50, %54 : vector<256x8xf32>
    %56 = vector.extract_strided_slice %37 {offsets = [0, 0], sizes = [256, 8], strides = [1, 1]} : vector<288x8xf32> to vector<256x8xf32>
    %57 = vector.extract_strided_slice %49 {offsets = [1, 0], sizes = [1, 8], strides = [1, 1]} : vector<9x8xf32> to vector<1x8xf32>
    %58 = vector.shape_cast %57 : vector<1x8xf32> to vector<8xf32>
    %59 = vector.shape_cast %58 : vector<8xf32> to vector<1x8xf32>
    %60 = vector.broadcast %59 : vector<1x8xf32> to vector<256x8xf32>
    %61 = arith.mulf %56, %60 : vector<256x8xf32>
    %62 = arith.addf %55, %61 : vector<256x8xf32>
    %63 = vector.extract_strided_slice %47 {offsets = [0, 0], sizes = [256, 8], strides = [1, 1]} : vector<288x8xf32> to vector<256x8xf32>
    %64 = vector.extract_strided_slice %49 {offsets = [2, 0], sizes = [1, 8], strides = [1, 1]} : vector<9x8xf32> to vector<1x8xf32>
    %65 = vector.shape_cast %64 : vector<1x8xf32> to vector<8xf32>
    %66 = vector.shape_cast %65 : vector<8xf32> to vector<1x8xf32>
    %67 = vector.broadcast %66 : vector<1x8xf32> to vector<256x8xf32>
    %68 = arith.mulf %63, %67 : vector<256x8xf32>
    %69 = arith.addf %62, %68 : vector<256x8xf32>
    %70 = vector.extract_strided_slice %42 {offsets = [16, 0], sizes = [256, 8], strides = [1, 1]} : vector<288x8xf32> to vector<256x8xf32>
    %71 = vector.extract_strided_slice %49 {offsets = [3, 0], sizes = [1, 8], strides = [1, 1]} : vector<9x8xf32> to vector<1x8xf32>
    %72 = vector.shape_cast %71 : vector<1x8xf32> to vector<8xf32>
    %73 = vector.shape_cast %72 : vector<8xf32> to vector<1x8xf32>
    %74 = vector.broadcast %73 : vector<1x8xf32> to vector<256x8xf32>
    %75 = arith.mulf %70, %74 : vector<256x8xf32>
    %76 = arith.addf %69, %75 : vector<256x8xf32>
    %77 = vector.extract_strided_slice %37 {offsets = [16, 0], sizes = [256, 8], strides = [1, 1]} : vector<288x8xf32> to vector<256x8xf32>
    %78 = vector.extract_strided_slice %49 {offsets = [4, 0], sizes = [1, 8], strides = [1, 1]} : vector<9x8xf32> to vector<1x8xf32>
    %79 = vector.shape_cast %78 : vector<1x8xf32> to vector<8xf32>
    %80 = vector.shape_cast %79 : vector<8xf32> to vector<1x8xf32>
    %81 = vector.broadcast %80 : vector<1x8xf32> to vector<256x8xf32>
    %82 = arith.mulf %77, %81 : vector<256x8xf32>
    %83 = arith.addf %76, %82 : vector<256x8xf32>
    %84 = vector.extract_strided_slice %47 {offsets = [16, 0], sizes = [256, 8], strides = [1, 1]} : vector<288x8xf32> to vector<256x8xf32>
    %85 = vector.extract_strided_slice %49 {offsets = [5, 0], sizes = [1, 8], strides = [1, 1]} : vector<9x8xf32> to vector<1x8xf32>
    %86 = vector.shape_cast %85 : vector<1x8xf32> to vector<8xf32>
    %87 = vector.shape_cast %86 : vector<8xf32> to vector<1x8xf32>
    %88 = vector.broadcast %87 : vector<1x8xf32> to vector<256x8xf32>
    %89 = arith.mulf %84, %88 : vector<256x8xf32>
    %90 = arith.addf %83, %89 : vector<256x8xf32>
    %91 = vector.extract_strided_slice %42 {offsets = [32, 0], sizes = [256, 8], strides = [1, 1]} : vector<288x8xf32> to vector<256x8xf32>
    %92 = vector.extract_strided_slice %49 {offsets = [6, 0], sizes = [1, 8], strides = [1, 1]} : vector<9x8xf32> to vector<1x8xf32>
    %93 = vector.shape_cast %92 : vector<1x8xf32> to vector<8xf32>
    %94 = vector.shape_cast %93 : vector<8xf32> to vector<1x8xf32>
    %95 = vector.broadcast %94 : vector<1x8xf32> to vector<256x8xf32>
    %96 = arith.mulf %91, %95 : vector<256x8xf32>
    %97 = arith.addf %90, %96 : vector<256x8xf32>
    %98 = vector.extract_strided_slice %37 {offsets = [32, 0], sizes = [256, 8], strides = [1, 1]} : vector<288x8xf32> to vector<256x8xf32>
    %99 = vector.extract_strided_slice %49 {offsets = [7, 0], sizes = [1, 8], strides = [1, 1]} : vector<9x8xf32> to vector<1x8xf32>
    %100 = vector.shape_cast %99 : vector<1x8xf32> to vector<8xf32>
    %101 = vector.shape_cast %100 : vector<8xf32> to vector<1x8xf32>
    %102 = vector.broadcast %101 : vector<1x8xf32> to vector<256x8xf32>
    %103 = arith.mulf %98, %102 : vector<256x8xf32>
    %104 = arith.addf %97, %103 : vector<256x8xf32>
    %105 = vector.extract_strided_slice %47 {offsets = [32, 0], sizes = [256, 8], strides = [1, 1]} : vector<288x8xf32> to vector<256x8xf32>
    %106 = vector.extract_strided_slice %49 {offsets = [8, 0], sizes = [1, 8], strides = [1, 1]} : vector<9x8xf32> to vector<1x8xf32>
    %107 = vector.shape_cast %106 : vector<1x8xf32> to vector<8xf32>
    %108 = vector.shape_cast %107 : vector<8xf32> to vector<1x8xf32>
    %109 = vector.broadcast %108 : vector<1x8xf32> to vector<256x8xf32>
    %110 = arith.mulf %105, %109 : vector<256x8xf32>
    %111 = arith.addf %104, %110 : vector<256x8xf32>
    %c0_30 = arith.constant 0 : index
    %c0_31 = arith.constant 0 : index
    %c0_32 = arith.constant 0 : index
    %112 = vector.load %arg7[%c0_30, %c0_31, %c0_32] : memref<2x1x8xf32, #tpu.memory_space<vmem>>, vector<1x1x8xf32>
    %113 = vector.shape_cast %112 : vector<1x1x8xf32> to vector<1x8xf32>
    %114 = vector.broadcast %113 : vector<1x8xf32> to vector<256x8xf32>
    %115 = arith.addf %111, %114 : vector<256x8xf32>
    %c1_33 = arith.constant 1 : index
    %c0_34 = arith.constant 0 : index
    %c0_35 = arith.constant 0 : index
    %116 = vector.load %arg4[%c1_33, %c0_34, %c0_35] : memref<2x4x8xf32, #tpu.memory_space<vmem>>, vector<1x4x8xf32>
    %117 = vector.shape_cast %116 : vector<1x4x8xf32> to vector<4x8xf32>
    %118 = arith.truncf %117 : vector<4x8xf32> to vector<4x8xbf16>
    %cst_36 = arith.constant dense<0.000000e+00> : vector<256x8xf32>
    %119 = tpu.matmul %3, %118, %cst_36 {dimension_numbers = #tpu.dot_dimension_numbers<[1], [0], [0], [1], [0, 0, 1, 1], [], []>} : vector<256x4xbf16>, vector<4x8xbf16>, vector<256x8xf32> -> vector<256x8xf32>
    %c1_37 = arith.constant 1 : index
    %c0_38 = arith.constant 0 : index
    %c0_39 = arith.constant 0 : index
    %120 = vector.load %arg5[%c1_37, %c0_38, %c0_39] : memref<2x1x8xf32, #tpu.memory_space<vmem>>, vector<1x1x8xf32>
    %121 = vector.shape_cast %120 : vector<1x1x8xf32> to vector<1x8xf32>
    %122 = vector.broadcast %121 : vector<1x8xf32> to vector<256x8xf32>
    %123 = arith.addf %119, %122 : vector<256x8xf32>
    %c0_40 = arith.constant 0 : index
    %c0_41 = arith.constant 0 : index
    %c1_42 = arith.constant 1 : index
    %c0_43 = arith.constant 0 : index
    %c0_44 = arith.constant 0 : index
    %c0_45 = arith.constant 0 : index
    %124 = vector.load %arg3[%c0_40, %c0_41, %c1_42, %c0_43, %c0_44, %c0_45] : memref<1x1x2x2x16x8xf32, #tpu.memory_space<vmem>>, vector<1x1x1x1x16x8xf32>
    %125 = vector.shape_cast %124 : vector<1x1x1x1x16x8xf32> to vector<16x8xf32>
    %c0_46 = arith.constant 0 : index
    %c0_47 = arith.constant 0 : index
    %c1_48 = arith.constant 1 : index
    %c1_49 = arith.constant 1 : index
    %c0_50 = arith.constant 0 : index
    %c0_51 = arith.constant 0 : index
    %126 = vector.load %arg3[%c0_46, %c0_47, %c1_48, %c1_49, %c0_50, %c0_51] : memref<1x1x2x2x16x8xf32, #tpu.memory_space<vmem>>, vector<1x1x1x1x16x8xf32>
    %127 = vector.shape_cast %126 : vector<1x1x1x1x16x8xf32> to vector<16x8xf32>
    %128 = tpu.concatenate %125, %123, %127 in 0 : vector<16x8xf32>, vector<256x8xf32>, vector<16x8xf32> -> vector<288x8xf32>
    %c1_i32_52 = arith.constant 1 : i32
    %129 = tpu.dynamic_rotate %128 by %c1_i32_52 dim 0 : vector<288x8xf32>, i32 -> vector<288x8xf32>
    %cst_53 = arith.constant 0.000000e+00 : f32
    %130 = vector.shape_cast %22 : vector<288x1xi1> to vector<288x1xi1>
    %131 = vector.broadcast %130 : vector<288x1xi1> to vector<288x8xi1>
    %132 = vector.broadcast %cst_53 : f32 to vector<288x8xf32>
    %133 = arith.select %131, %129, %132 : vector<288x8xi1>, vector<288x8xf32>
    %c287_i32_54 = arith.constant 287 : i32
    %134 = tpu.dynamic_rotate %128 by %c287_i32_54 dim 0 : vector<288x8xf32>, i32 -> vector<288x8xf32>
    %cst_55 = arith.constant 0.000000e+00 : f32
    %135 = vector.shape_cast %24 : vector<288x1xi1> to vector<288x1xi1>
    %136 = vector.broadcast %135 : vector<288x1xi1> to vector<288x8xi1>
    %137 = vector.broadcast %cst_55 : f32 to vector<288x8xf32>
    %138 = arith.select %136, %134, %137 : vector<288x8xi1>, vector<288x8xf32>
    %c1_56 = arith.constant 1 : index
    %c0_57 = arith.constant 0 : index
    %c0_58 = arith.constant 0 : index
    %139 = vector.load %arg6[%c1_56, %c0_57, %c0_58] : memref<2x9x8xf32, #tpu.memory_space<vmem>>, vector<1x9x8xf32>
    %140 = vector.shape_cast %139 : vector<1x9x8xf32> to vector<9x8xf32>
    %141 = vector.extract_strided_slice %133 {offsets = [0, 0], sizes = [256, 8], strides = [1, 1]} : vector<288x8xf32> to vector<256x8xf32>
    %142 = vector.extract_strided_slice %140 {offsets = [0, 0], sizes = [1, 8], strides = [1, 1]} : vector<9x8xf32> to vector<1x8xf32>
    %143 = vector.shape_cast %142 : vector<1x8xf32> to vector<8xf32>
    %144 = vector.shape_cast %143 : vector<8xf32> to vector<1x8xf32>
    %145 = vector.broadcast %144 : vector<1x8xf32> to vector<256x8xf32>
    %146 = arith.mulf %141, %145 : vector<256x8xf32>
    %147 = vector.extract_strided_slice %128 {offsets = [0, 0], sizes = [256, 8], strides = [1, 1]} : vector<288x8xf32> to vector<256x8xf32>
    %148 = vector.extract_strided_slice %140 {offsets = [1, 0], sizes = [1, 8], strides = [1, 1]} : vector<9x8xf32> to vector<1x8xf32>
    %149 = vector.shape_cast %148 : vector<1x8xf32> to vector<8xf32>
    %150 = vector.shape_cast %149 : vector<8xf32> to vector<1x8xf32>
    %151 = vector.broadcast %150 : vector<1x8xf32> to vector<256x8xf32>
    %152 = arith.mulf %147, %151 : vector<256x8xf32>
    %153 = arith.addf %146, %152 : vector<256x8xf32>
    %154 = vector.extract_strided_slice %138 {offsets = [0, 0], sizes = [256, 8], strides = [1, 1]} : vector<288x8xf32> to vector<256x8xf32>
    %155 = vector.extract_strided_slice %140 {offsets = [2, 0], sizes = [1, 8], strides = [1, 1]} : vector<9x8xf32> to vector<1x8xf32>
    %156 = vector.shape_cast %155 : vector<1x8xf32> to vector<8xf32>
    %157 = vector.shape_cast %156 : vector<8xf32> to vector<1x8xf32>
    %158 = vector.broadcast %157 : vector<1x8xf32> to vector<256x8xf32>
    %159 = arith.mulf %154, %158 : vector<256x8xf32>
    %160 = arith.addf %153, %159 : vector<256x8xf32>
    %161 = vector.extract_strided_slice %133 {offsets = [16, 0], sizes = [256, 8], strides = [1, 1]} : vector<288x8xf32> to vector<256x8xf32>
    %162 = vector.extract_strided_slice %140 {offsets = [3, 0], sizes = [1, 8], strides = [1, 1]} : vector<9x8xf32> to vector<1x8xf32>
    %163 = vector.shape_cast %162 : vector<1x8xf32> to vector<8xf32>
    %164 = vector.shape_cast %163 : vector<8xf32> to vector<1x8xf32>
    %165 = vector.broadcast %164 : vector<1x8xf32> to vector<256x8xf32>
    %166 = arith.mulf %161, %165 : vector<256x8xf32>
    %167 = arith.addf %160, %166 : vector<256x8xf32>
    %168 = vector.extract_strided_slice %128 {offsets = [16, 0], sizes = [256, 8], strides = [1, 1]} : vector<288x8xf32> to vector<256x8xf32>
    %169 = vector.extract_strided_slice %140 {offsets = [4, 0], sizes = [1, 8], strides = [1, 1]} : vector<9x8xf32> to vector<1x8xf32>
    %170 = vector.shape_cast %169 : vector<1x8xf32> to vector<8xf32>
    %171 = vector.shape_cast %170 : vector<8xf32> to vector<1x8xf32>
    %172 = vector.broadcast %171 : vector<1x8xf32> to vector<256x8xf32>
    %173 = arith.mulf %168, %172 : vector<256x8xf32>
    %174 = arith.addf %167, %173 : vector<256x8xf32>
    %175 = vector.extract_strided_slice %138 {offsets = [16, 0], sizes = [256, 8], strides = [1, 1]} : vector<288x8xf32> to vector<256x8xf32>
    %176 = vector.extract_strided_slice %140 {offsets = [5, 0], sizes = [1, 8], strides = [1, 1]} : vector<9x8xf32> to vector<1x8xf32>
    %177 = vector.shape_cast %176 : vector<1x8xf32> to vector<8xf32>
    %178 = vector.shape_cast %177 : vector<8xf32> to vector<1x8xf32>
    %179 = vector.broadcast %178 : vector<1x8xf32> to vector<256x8xf32>
    %180 = arith.mulf %175, %179 : vector<256x8xf32>
    %181 = arith.addf %174, %180 : vector<256x8xf32>
    %182 = vector.extract_strided_slice %133 {offsets = [32, 0], sizes = [256, 8], strides = [1, 1]} : vector<288x8xf32> to vector<256x8xf32>
    %183 = vector.extract_strided_slice %140 {offsets = [6, 0], sizes = [1, 8], strides = [1, 1]} : vector<9x8xf32> to vector<1x8xf32>
    %184 = vector.shape_cast %183 : vector<1x8xf32> to vector<8xf32>
    %185 = vector.shape_cast %184 : vector<8xf32> to vector<1x8xf32>
    %186 = vector.broadcast %185 : vector<1x8xf32> to vector<256x8xf32>
    %187 = arith.mulf %182, %186 : vector<256x8xf32>
    %188 = arith.addf %181, %187 : vector<256x8xf32>
    %189 = vector.extract_strided_slice %128 {offsets = [32, 0], sizes = [256, 8], strides = [1, 1]} : vector<288x8xf32> to vector<256x8xf32>
    %190 = vector.extract_strided_slice %140 {offsets = [7, 0], sizes = [1, 8], strides = [1, 1]} : vector<9x8xf32> to vector<1x8xf32>
    %191 = vector.shape_cast %190 : vector<1x8xf32> to vector<8xf32>
    %192 = vector.shape_cast %191 : vector<8xf32> to vector<1x8xf32>
    %193 = vector.broadcast %192 : vector<1x8xf32> to vector<256x8xf32>
    %194 = arith.mulf %189, %193 : vector<256x8xf32>
    %195 = arith.addf %188, %194 : vector<256x8xf32>
    %196 = vector.extract_strided_slice %138 {offsets = [32, 0], sizes = [256, 8], strides = [1, 1]} : vector<288x8xf32> to vector<256x8xf32>
    %197 = vector.extract_strided_slice %140 {offsets = [8, 0], sizes = [1, 8], strides = [1, 1]} : vector<9x8xf32> to vector<1x8xf32>
    %198 = vector.shape_cast %197 : vector<1x8xf32> to vector<8xf32>
    %199 = vector.shape_cast %198 : vector<8xf32> to vector<1x8xf32>
    %200 = vector.broadcast %199 : vector<1x8xf32> to vector<256x8xf32>
    %201 = arith.mulf %196, %200 : vector<256x8xf32>
    %202 = arith.addf %195, %201 : vector<256x8xf32>
    %c1_59 = arith.constant 1 : index
    %c0_60 = arith.constant 0 : index
    %c0_61 = arith.constant 0 : index
    %203 = vector.load %arg7[%c1_59, %c0_60, %c0_61] : memref<2x1x8xf32, #tpu.memory_space<vmem>>, vector<1x1x8xf32>
    %204 = vector.shape_cast %203 : vector<1x1x8xf32> to vector<1x8xf32>
    %205 = vector.broadcast %204 : vector<1x8xf32> to vector<256x8xf32>
    %206 = arith.addf %202, %205 : vector<256x8xf32>
    %cst_62 = arith.constant 0.707106769 : f32
    %207 = vector.broadcast %cst_62 : f32 to vector<256x8xf32>
    %208 = arith.mulf %115, %207 : vector<256x8xf32>
    %209 = math.absf %208 : vector<256x8xf32>
    %cst_63 = arith.constant 0.327591091 : f32
    %210 = vector.broadcast %cst_63 : f32 to vector<256x8xf32>
    %211 = arith.mulf %210, %209 : vector<256x8xf32>
    %cst_64 = arith.constant 1.000000e+00 : f32
    %212 = vector.broadcast %cst_64 : f32 to vector<256x8xf32>
    %213 = arith.addf %212, %211 : vector<256x8xf32>
    %cst_65 = arith.constant 1.000000e+00 : f32
    %214 = vector.broadcast %cst_65 : f32 to vector<256x8xf32>
    %215 = arith.divf %214, %213 : vector<256x8xf32>
    %cst_66 = arith.constant 1.06140542 : f32
    %216 = vector.broadcast %cst_66 : f32 to vector<256x8xf32>
    %217 = arith.mulf %216, %215 : vector<256x8xf32>
    %cst_67 = arith.constant -1.45315206 : f32
    %218 = vector.broadcast %cst_67 : f32 to vector<256x8xf32>
    %219 = arith.addf %217, %218 : vector<256x8xf32>
    %220 = arith.mulf %219, %215 : vector<256x8xf32>
    %cst_68 = arith.constant 1.42141378 : f32
    %221 = vector.broadcast %cst_68 : f32 to vector<256x8xf32>
    %222 = arith.addf %220, %221 : vector<256x8xf32>
    %223 = arith.mulf %222, %215 : vector<256x8xf32>
    %cst_69 = arith.constant -0.284496725 : f32
    %224 = vector.broadcast %cst_69 : f32 to vector<256x8xf32>
    %225 = arith.addf %223, %224 : vector<256x8xf32>
    %226 = arith.mulf %225, %215 : vector<256x8xf32>
    %cst_70 = arith.constant 0.254829586 : f32
    %227 = vector.broadcast %cst_70 : f32 to vector<256x8xf32>
    %228 = arith.addf %226, %227 : vector<256x8xf32>
    %229 = arith.mulf %228, %215 : vector<256x8xf32>
    %230 = arith.mulf %209, %209 : vector<256x8xf32>
    %cst_71 = arith.constant 0.000000e+00 : f32
    %231 = vector.broadcast %cst_71 : f32 to vector<256x8xf32>
    %232 = arith.subf %231, %230 : vector<256x8xf32>
    %233 = math.exp %232 : vector<256x8xf32>
    %234 = arith.mulf %229, %233 : vector<256x8xf32>
    %cst_72 = arith.constant 1.000000e+00 : f32
    %235 = vector.broadcast %cst_72 : f32 to vector<256x8xf32>
    %236 = arith.subf %235, %234 : vector<256x8xf32>
    %cst_73 = arith.constant 0.000000e+00 : f32
    %237 = vector.broadcast %cst_73 : f32 to vector<256x8xf32>
    %238 = arith.cmpf olt, %208, %237 : vector<256x8xf32>
    %cst_74 = arith.constant 0.000000e+00 : f32
    %239 = vector.broadcast %cst_74 : f32 to vector<256x8xf32>
    %240 = arith.subf %239, %236 : vector<256x8xf32>
    %241 = arith.select %238, %240, %236 : vector<256x8xi1>, vector<256x8xf32>
    %cst_75 = arith.constant 5.000000e-01 : f32
    %242 = vector.broadcast %cst_75 : f32 to vector<256x8xf32>
    %243 = arith.mulf %242, %115 : vector<256x8xf32>
    %cst_76 = arith.constant 1.000000e+00 : f32
    %244 = vector.broadcast %cst_76 : f32 to vector<256x8xf32>
    %245 = arith.addf %244, %241 : vector<256x8xf32>
    %246 = arith.mulf %243, %245 : vector<256x8xf32>
    %247 = arith.mulf %246, %206 : vector<256x8xf32>
    %248 = arith.truncf %247 : vector<256x8xf32> to vector<256x8xbf16>
    %c0_77 = arith.constant 0 : index
    %c0_78 = arith.constant 0 : index
    %249 = vector.load %arg8[%c0_77, %c0_78] : memref<8x4xf32, #tpu.memory_space<vmem>>, vector<8x4xf32>
    %250 = arith.truncf %249 : vector<8x4xf32> to vector<8x4xbf16>
    %cst_79 = arith.constant dense<0.000000e+00> : vector<256x4xf32>
    %251 = tpu.matmul %248, %250, %cst_79 {dimension_numbers = #tpu.dot_dimension_numbers<[1], [0], [0], [1], [0, 0, 1, 1], [], []>} : vector<256x8xbf16>, vector<8x4xbf16>, vector<256x4xf32> -> vector<256x4xf32>
    %c0_80 = arith.constant 0 : index
    %c0_81 = arith.constant 0 : index
    %252 = vector.load %arg9[%c0_80, %c0_81] : memref<1x4xf32, #tpu.memory_space<vmem>>, vector<1x4xf32>
    %253 = vector.broadcast %252 : vector<1x4xf32> to vector<256x4xf32>
    %254 = arith.addf %251, %253 : vector<256x4xf32>
    %255 = vector.shape_cast %254 : vector<256x4xf32> to vector<16x16x4xf32>
    %c0_82 = arith.constant 0 : index
    %c0_83 = arith.constant 0 : index
    %c0_84 = arith.constant 0 : index
    %c0_85 = arith.constant 0 : index
    %256 = vector.load %arg10[%c0_82, %c0_83, %c0_84, %c0_85] : memref<1x16x16x4xf32, #tpu.memory_space<vmem>>, vector<1x16x16x4xf32>
    %257 = vector.shape_cast %256 : vector<1x16x16x4xf32> to vector<16x16x4xf32>
    %258 = vector.shape_cast %255 : vector<16x16x4xf32> to vector<1x16x16x4xf32>
    tpu.vector_store %arg10[%c0_82, %c0_83, %c0_84, %c0_85], %258 {strides = array<i32>} : memref<1x16x16x4xf32, #tpu.memory_space<vmem>>, vector<1x16x16x4xf32>,
    return
  }
  func.func @transform_0(%arg0: i32, %arg1: i32) -> (i32, i32, i32, i32) {
    %c0_i32 = arith.constant 0 : i32
    %c0_i32_0 = arith.constant 0 : i32
    %c0_i32_1 = arith.constant 0 : i32
    return %arg0, %arg1, %c0_i32, %c0_i32_0 : i32, i32, i32, i32
  }
  func.func @transform_1(%arg0: i32, %arg1: i32) -> (i32, i32, i32, i32, i32, i32) {
    %c0_i32 = arith.constant 0 : i32
    %c0_i32_0 = arith.constant 0 : i32
    %c0_i32_1 = arith.constant 0 : i32
    %c0_i32_2 = arith.constant 0 : i32
    %c0_i32_3 = arith.constant 0 : i32
    return %arg0, %arg1, %c0_i32, %c0_i32_0, %c0_i32_1, %c0_i32_2 : i32, i32, i32, i32, i32, i32
  }
  func.func @transform_2(%arg0: i32, %arg1: i32) -> (i32, i32, i32) {
    %c0_i32 = arith.constant 0 : i32
    %c0_i32_0 = arith.constant 0 : i32
    %c0_i32_1 = arith.constant 0 : i32
    %c0_i32_2 = arith.constant 0 : i32
    return %c0_i32, %c0_i32_0, %c0_i32_1 : i32, i32, i32
  }
  func.func @transform_3(%arg0: i32, %arg1: i32) -> (i32, i32, i32) {
    %c0_i32 = arith.constant 0 : i32
    %c0_i32_0 = arith.constant 0 : i32
    %c0_i32_1 = arith.constant 0 : i32
    %c0_i32_2 = arith.constant 0 : i32
    return %c0_i32, %c0_i32_0, %c0_i32_1 : i32, i32, i32
  }
  func.func @transform_4(%arg0: i32, %arg1: i32) -> (i32, i32, i32) {
    %c0_i32 = arith.constant 0 : i32
    %c0_i32_0 = arith.constant 0 : i32
    %c0_i32_1 = arith.constant 0 : i32
    %c0_i32_2 = arith.constant 0 : i32
    return %c0_i32, %c0_i32_0, %c0_i32_1 : i32, i32, i32
  }
  func.func @transform_5(%arg0: i32, %arg1: i32) -> (i32, i32, i32) {
    %c0_i32 = arith.constant 0 : i32
    %c0_i32_0 = arith.constant 0 : i32
    %c0_i32_1 = arith.constant 0 : i32
    %c0_i32_2 = arith.constant 0 : i32
    return %c0_i32, %c0_i32_0, %c0_i32_1 : i32, i32, i32
  }
  func.func @transform_6(%arg0: i32, %arg1: i32) -> (i32, i32) {
    %c0_i32 = arith.constant 0 : i32
    %c0_i32_0 = arith.constant 0 : i32
    %c0_i32_1 = arith.constant 0 : i32
    return %c0_i32, %c0_i32_0 : i32, i32
  }
  func.func @transform_7(%arg0: i32, %arg1: i32) -> (i32, i32) {
    %c0_i32 = arith.constant 0 : i32
    %c0_i32_0 = arith.constant 0 : i32
    %c0_i32_1 = arith.constant 0 : i32
    return %c0_i32, %c0_i32_0 : i32, i32
  }
  func.func @transform_8(%arg0: i32, %arg1: i32) -> (i32, i32, i32, i32) {
    %c0_i32 = arith.constant 0 : i32
    %c0_i32_0 = arith.constant 0 : i32
    %c0_i32_1 = arith.constant 0 : i32
    return %arg0, %arg1, %c0_i32, %c0_i32_0 : i32, i32, i32, i32
  }
}

</mosaic_0001>

<llo_original>
// kernel: tpu_custom_call.1
$region0: #{tpu_custom_call.1}
  #allocation0 [shape = 'u32[]', space=smem, size = 0x4, offset = 0x4, fixed_abs, tag = 'smem constant byte address 0x4 - core index']
  #allocation1 [shape = 'u32[144,128]{1,0:T(1,128)}', space=vmem, size = 0x12000, scoped, tag = 'internal scratch']
  %s0 = inlined_call_operand.vmem [shape: f32[2,16,16,4], index: 0, kind: input, shape index: {}]
  %s1 = inlined_call_operand.vmem [shape: f32[2,1,2,2,16,8], index: 1, kind: input, shape index: {}]
  %s2 = inlined_call_operand.vmem [shape: f32[2,4,8], index: 2, kind: input, shape index: {}]
  %s3 = inlined_call_operand.vmem [shape: f32[2,1,8], index: 3, kind: input, shape index: {}]
  %s4 = inlined_call_operand.vmem [shape: f32[2,9,8], index: 4, kind: input, shape index: {}]
  %s5 = inlined_call_operand.vmem [shape: f32[2,1,8], index: 5, kind: input, shape index: {}]
  %s6 = inlined_call_operand.vmem [shape: f32[8,4], index: 6, kind: input, shape index: {}]
  %s7 = inlined_call_operand.vmem [shape: f32[1,4], index: 7, kind: input, shape index: {}]
  %s8 = inlined_call_operand.vmem [shape: f32[2,16,16,4], index: 8, kind: output, shape index: {}]
  %s9 = sld [smem:[#allocation0]]
  $region65: #{tpu_custom_call.1} parent=0
    _
  %s11 = ssub.s32 1, %s9
  %s12 = scalar_select 0, %s11, %s9
  loop: start=0, step=1, limit=4
  $region2: #{tpu_custom_call.1} parent=0 // loop_pre_header
    _
  $region3: #{tpu_custom_call.1} parent=0 // loop_header
    %s14 = sphi 0, %s18
    %p15 = scmp.ge.s32.totalorder %s14, 4
    %s21 = sphi 0, %s33
    %s22 = sphi 0, %s29
    %s23 = sphi 0, %s21
    %s24 = sphi 0, %s22
    %s25 = sphi 0, %s23
    %s26 = sphi 0, %s24
    %s38 = sphi 0, %s40
    %s41 = sphi 0, %s38
    %s42 = sphi 0, %s41
    %s58 = sphi 0, %s42
    %s66 = sphi 0, %s68
    %s69 = sphi 0, %s66
    %s70 = sphi 0, %s69
    %s86 = sphi 0, %s70
    %s90 = sphi 0, %s90
    %s92 = sphi 0, %s90
    %s93 = sphi 0, %s92
    %s107 = sphi 0, %s93
    %s111 = sphi 0, %s111
    %s113 = sphi 0, %s111
    %s114 = sphi 0, %s113
    %s128 = sphi 0, %s114
    %s132 = sphi 0, %s132
    %s134 = sphi 0, %s132
    %s135 = sphi 0, %s134
    %s149 = sphi 0, %s135
    %s153 = sphi 0, %s153
    %s155 = sphi 0, %s153
    %s156 = sphi 0, %s155
    %s170 = sphi 0, %s156
    %s174 = sphi 0, %s174
    %s176 = sphi 0, %s174
    %s177 = sphi 0, %s176
    %s191 = sphi 0, %s177
    %s195 = sphi 0, %s195
    %s197 = sphi 0, %s195
    %s198 = sphi 0, %s197
    %s212 = sphi 0, %s198
    %s220 = sphi 0, %s222
    %s223 = sphi 0, %s220
    %s224 = sphi 0, %s223
    %s240 = sphi 0, %s224
  $region4: #{tpu_custom_call.1} parent=0 // loop_header_branch
    %17 = sbr.rel (%p15) target = $region8
  $region5: #{tpu_custom_call.1} parent=0 // loop_body
    %s19 = ssub.s32 %s14, 1
    %s20 = ssub.s32 %s14, 2
    %s27 = sadd.s32 1, %s22
    %p28 = scmp.ge.s32.totalorder %s27, 1
    %s29 = scalar_select %p28, 0, %s27
    %s30 = sadd.s32 1, %s21
    %s31 = scalar_select %p28, %s30, %s21
    %p32 = scmp.ge.s32.totalorder %s31, 2
    %s33 = scalar_select %p32, 0, %s31
    %s34 = ssub.s32 %s21, %s33
    %s35 = ssub.s32 %s22, %s29
    %s36 = sor.u32 %s34, %s35
    %p37 = scmp.eq.s32.totalorder %s36, 0
    %s39 = sadd.s32 %s38, 1
    %s40 = scalar_select %p37, %s38, %s39
    %p43 = pneg %p37
    %p44 = scmp.eq.s32.totalorder %s14, 1
    %p45 = por %p43, %p44
    %p46 = scmp.ne.s32.totalorder %s38, %s41
    %p47 = scmp.eq.s32.totalorder %s14, 0
    %p48 = por %p46, %p47
    %p49 = scmp.ne.s32.totalorder %s38, %s41
    %p50 = scmp.eq.s32.totalorder %s19, 1
    %p51 = por %p49, %p50
    %p52 = scmp.ne.s32.totalorder %s41, %s42
    %p53 = scmp.eq.s32.totalorder %s19, 0
    %p54 = por %p52, %p53
    %p55 = scmp.ne.s32.totalorder %s41, %s42
    %p56 = scmp.eq.s32.totalorder %s20, 1
    %p57 = por %p55, %p56
    %p59 = scmp.ne.s32.totalorder %s42, %s58
    %p60 = scmp.eq.s32.totalorder %s20, 0
    %p61 = por %p59, %p60
    %s62 = ssub.s32 %s21, %s33
    %s63 = ssub.s32 %s22, %s29
    %s64 = sor.u32 %s62, %s63
    %p65 = scmp.eq.s32.totalorder %s64, 0
    %s67 = sadd.s32 %s66, 1
    %s68 = scalar_select %p65, %s66, %s67
    %p71 = pneg %p65
    %p72 = scmp.eq.s32.totalorder %s14, 1
    %p73 = por %p71, %p72
    %p74 = scmp.ne.s32.totalorder %s66, %s69
    %p75 = scmp.eq.s32.totalorder %s14, 0
    %p76 = por %p74, %p75
    %p77 = scmp.ne.s32.totalorder %s66, %s69
    %p78 = scmp.eq.s32.totalorder %s19, 1
    %p79 = por %p77, %p78
    %p80 = scmp.ne.s32.totalorder %s69, %s70
    %p81 = scmp.eq.s32.totalorder %s19, 0
    %p82 = por %p80, %p81
    %p83 = scmp.ne.s32.totalorder %s69, %s70
    %p84 = scmp.eq.s32.totalorder %s20, 1
    %p85 = por %p83, %p84
    %p87 = scmp.ne.s32.totalorder %s70, %s86
    %p88 = scmp.eq.s32.totalorder %s20, 0
    %p89 = por %p87, %p88
    %s91 = sadd.s32 %s90, 1
    %p94 = scmp.eq.s32.totalorder %s14, 1
    %p95 = scmp.ne.s32.totalorder %s90, %s92
    %p96 = scmp.eq.s32.totalorder %s14, 0
    %p97 = por %p95, %p96
    %p98 = scmp.ne.s32.totalorder %s90, %s92
    %p99 = scmp.eq.s32.totalorder %s19, 1
    %p100 = por %p98, %p99
    %p101 = scmp.ne.s32.totalorder %s92, %s93
    %p102 = scmp.eq.s32.totalorder %s19, 0
    %p103 = por %p101, %p102
    %p104 = scmp.ne.s32.totalorder %s92, %s93
    %p105 = scmp.eq.s32.totalorder %s20, 1
    %p106 = por %p104, %p105
    %p108 = scmp.ne.s32.totalorder %s93, %s107
    %p109 = scmp.eq.s32.totalorder %s20, 0
    %p110 = por %p108, %p109
    %s112 = sadd.s32 %s111, 1
    %p115 = scmp.eq.s32.totalorder %s14, 1
    %p116 = scmp.ne.s32.totalorder %s111, %s113
    %p117 = scmp.eq.s32.totalorder %s14, 0
    %p118 = por %p116, %p117
    %p119 = scmp.ne.s32.totalorder %s111, %s113
    %p120 = scmp.eq.s32.totalorder %s19, 1
    %p121 = por %p119, %p120
    %p122 = scmp.ne.s32.totalorder %s113, %s114
    %p123 = scmp.eq.s32.totalorder %s19, 0
    %p124 = por %p122, %p123
    %p125 = scmp.ne.s32.totalorder %s113, %s114
    %p126 = scmp.eq.s32.totalorder %s20, 1
    %p127 = por %p125, %p126
    %p129 = scmp.ne.s32.totalorder %s114, %s128
    %p130 = scmp.eq.s32.totalorder %s20, 0
    %p131 = por %p129, %p130
    %s133 = sadd.s32 %s132, 1
    %p136 = scmp.eq.s32.totalorder %s14, 1
    %p137 = scmp.ne.s32.totalorder %s132, %s134
    %p138 = scmp.eq.s32.totalorder %s14, 0
    %p139 = por %p137, %p138
    %p140 = scmp.ne.s32.totalorder %s132, %s134
    %p141 = scmp.eq.s32.totalorder %s19, 1
    %p142 = por %p140, %p141
    %p143 = scmp.ne.s32.totalorder %s134, %s135
    %p144 = scmp.eq.s32.totalorder %s19, 0
    %p145 = por %p143, %p144
    %p146 = scmp.ne.s32.totalorder %s134, %s135
    %p147 = scmp.eq.s32.totalorder %s20, 1
    %p148 = por %p146, %p147
    %p150 = scmp.ne.s32.totalorder %s135, %s149
    %p151 = scmp.eq.s32.totalorder %s20, 0
    %p152 = por %p150, %p151
    %s154 = sadd.s32 %s153, 1
    %p157 = scmp.eq.s32.totalorder %s14, 1
    %p158 = scmp.ne.s32.totalorder %s153, %s155
    %p159 = scmp.eq.s32.totalorder %s14, 0
    %p160 = por %p158, %p159
    %p161 = scmp.ne.s32.totalorder %s153, %s155
    %p162 = scmp.eq.s32.totalorder %s19, 1
    %p163 = por %p161, %p162
    %p164 = scmp.ne.s32.totalorder %s155, %s156
    %p165 = scmp.eq.s32.totalorder %s19, 0
    %p166 = por %p164, %p165
    %p167 = scmp.ne.s32.totalorder %s155, %s156
    %p168 = scmp.eq.s32.totalorder %s20, 1
    %p169 = por %p167, %p168
    %p171 = scmp.ne.s32.totalorder %s156, %s170
    %p172 = scmp.eq.s32.totalorder %s20, 0
    %p173 = por %p171, %p172
    %s175 = sadd.s32 %s174, 1
    %p178 = scmp.eq.s32.totalorder %s14, 1
    %p179 = scmp.ne.s32.totalorder %s174, %s176
    %p180 = scmp.eq.s32.totalorder %s14, 0
    %p181 = por %p179, %p180
    %p182 = scmp.ne.s32.totalorder %s174, %s176
    %p183 = scmp.eq.s32.totalorder %s19, 1
    %p184 = por %p182, %p183
    %p185 = scmp.ne.s32.totalorder %s176, %s177
    %p186 = scmp.eq.s32.totalorder %s19, 0
    %p187 = por %p185, %p186
    %p188 = scmp.ne.s32.totalorder %s176, %s177
    %p189 = scmp.eq.s32.totalorder %s20, 1
    %p190 = por %p188, %p189
    %p192 = scmp.ne.s32.totalorder %s177, %s191
    %p193 = scmp.eq.s32.totalorder %s20, 0
    %p194 = por %p192, %p193
    %s196 = sadd.s32 %s195, 1
    %p199 = scmp.eq.s32.totalorder %s14, 1
    %p200 = scmp.ne.s32.totalorder %s195, %s197
    %p201 = scmp.eq.s32.totalorder %s14, 0
    %p202 = por %p200, %p201
    %p203 = scmp.ne.s32.totalorder %s195, %s197
    %p204 = scmp.eq.s32.totalorder %s19, 1
    %p205 = por %p203, %p204
    %p206 = scmp.ne.s32.totalorder %s197, %s198
    %p207 = scmp.eq.s32.totalorder %s19, 0
    %p208 = por %p206, %p207
    %p209 = scmp.ne.s32.totalorder %s197, %s198
    %p210 = scmp.eq.s32.totalorder %s20, 1
    %p211 = por %p209, %p210
    %p213 = scmp.ne.s32.totalorder %s198, %s212
    %p214 = scmp.eq.s32.totalorder %s20, 0
    %p215 = por %p213, %p214
    %s216 = ssub.s32 %s21, %s33
    %s217 = ssub.s32 %s22, %s29
    %s218 = sor.u32 %s216, %s217
    %p219 = scmp.eq.s32.totalorder %s218, 0
    %s221 = sadd.s32 %s220, 1
    %s222 = scalar_select %p219, %s220, %s221
    %p225 = pneg %p219
    %p226 = scmp.eq.s32.totalorder %s14, 1
    %p227 = por %p225, %p226
    %p228 = scmp.ne.s32.totalorder %s220, %s223
    %p229 = scmp.eq.s32.totalorder %s14, 0
    %p230 = por %p228, %p229
    %p231 = scmp.ne.s32.totalorder %s220, %s223
    %p232 = scmp.eq.s32.totalorder %s19, 1
    %p233 = por %p231, %p232
    %p234 = scmp.ne.s32.totalorder %s223, %s224
    %p235 = scmp.eq.s32.totalorder %s19, 0
    %p236 = por %p234, %p235
    %p237 = scmp.ne.s32.totalorder %s223, %s224
    %p238 = scmp.eq.s32.totalorder %s20, 1
    %p239 = por %p237, %p238
    %p241 = scmp.ne.s32.totalorder %s224, %s240
    %p242 = scmp.eq.s32.totalorder %s20, 0
    %p243 = por %p241, %p242
    %p244 = scmp.le.s32.totalorder 1, %s14
    %p245 = scmp.lt.s32.totalorder %s14, 3
    %p246 = pnand %p244, %p245
    %p247 = pneg %p246
    // Predicated region
    $region9: #{tpu_custom_call.1} parent=5 // pred_check
      _
    $region10: #{tpu_custom_call.1} parent=5 // pred_check_branch
      %249 = sbr.rel (%p246) target = $region12
    $region11: #{tpu_custom_call.1} parent=5 // pred_region
      %s250 = ssub.s32 %s14, 1
      // Predicated region
      $region13: #{tpu_custom_call.1} parent=11 // pred_check
        %p251 = pneg %p103
      $region14: #{tpu_custom_call.1} parent=11 // pred_check_branch
        %253 = sbr.rel (%p251) target = $region16
      $region15: #{tpu_custom_call.1} parent=11 // pred_region
        _
      $region16: #{tpu_custom_call.1} parent=11 // pred_fallthru
        _
      // Predicated region
      $region17: #{tpu_custom_call.1} parent=11 // pred_check
        %p254 = pneg %p124
      $region18: #{tpu_custom_call.1} parent=11 // pred_check_branch
        %256 = sbr.rel (%p254) target = $region20
      $region19: #{tpu_custom_call.1} parent=11 // pred_region
        _
      $region20: #{tpu_custom_call.1} parent=11 // pred_fallthru
        _
      // Predicated region
      $region21: #{tpu_custom_call.1} parent=11 // pred_check
        %p257 = pneg %p145
      $region22: #{tpu_custom_call.1} parent=11 // pred_check_branch
        %259 = sbr.rel (%p257) target = $region24
      $region23: #{tpu_custom_call.1} parent=11 // pred_region
        _
      $region24: #{tpu_custom_call.1} parent=11 // pred_fallthru
        _
      // Predicated region
      $region25: #{tpu_custom_call.1} parent=11 // pred_check
        %p260 = pneg %p166
      $region26: #{tpu_custom_call.1} parent=11 // pred_check_branch
        %262 = sbr.rel (%p260) target = $region28
      $region27: #{tpu_custom_call.1} parent=11 // pred_region
        _
      $region28: #{tpu_custom_call.1} parent=11 // pred_fallthru
        _
      // Predicated region
      $region29: #{tpu_custom_call.1} parent=11 // pred_check
        %p263 = pneg %p187
      $region30: #{tpu_custom_call.1} parent=11 // pred_check_branch
        %265 = sbr.rel (%p263) target = $region32
      $region31: #{tpu_custom_call.1} parent=11 // pred_region
        _
      $region32: #{tpu_custom_call.1} parent=11 // pred_fallthru
        _
      // Predicated region
      $region33: #{tpu_custom_call.1} parent=11 // pred_check
        %p266 = pneg %p208
      $region34: #{tpu_custom_call.1} parent=11 // pred_check_branch
        %268 = sbr.rel (%p266) target = $region36
      $region35: #{tpu_custom_call.1} parent=11 // pred_region
        _
      $region36: #{tpu_custom_call.1} parent=11 // pred_fallthru
        _
    $region12: #{tpu_custom_call.1} parent=5 // pred_fallthru
      _
    %p269 = scmp.lt.s32.totalorder %s14, 2
    // Predicated region
    $region37: #{tpu_custom_call.1} parent=5 // pred_check
      %p270 = pneg %p269
    $region38: #{tpu_custom_call.1} parent=5 // pred_check_branch
      %272 = sbr.rel (%p270) target = $region40
    $region39: #{tpu_custom_call.1} parent=5 // pred_region
      // Predicated region
      $region41: #{tpu_custom_call.1} parent=39 // pred_check
        %p273 = pneg %p48
      $region42: #{tpu_custom_call.1} parent=39 // pred_check_branch
        %275 = sbr.rel (%p273) target = $region44
      $region43: #{tpu_custom_call.1} parent=39 // pred_region
        %s276 = smul.u32 16, %s22
        %p277 = scmp.lt.s32.totalorder %s21, 1
        %s278 = scalar_select %p277, %s21, 1
        %p279 = scmp.lt.s32.totalorder %s276, 15
        %s280 = scalar_select %p279, %s276, 15
        %s281 = smul.addr %s280, 2
        %s282 = smul.addr %s278, 32
        %s283 = sadd.s32 %s281, %s282
        %s284 = smul.addr %s283, 8
        %s285 = scalar_lea.vmem %s0, %s284
        %s286 = smul.u32 16, %s22
      $region44: #{tpu_custom_call.1} parent=39 // pred_fallthru
        _
      // Predicated region
      $region45: #{tpu_custom_call.1} parent=39 // pred_check
        %p287 = pneg %p76
      $region46: #{tpu_custom_call.1} parent=39 // pred_check_branch
        %289 = sbr.rel (%p287) target = $region48
      $region47: #{tpu_custom_call.1} parent=39 // pred_region
        %p290 = scmp.lt.s32.totalorder %s21, 1
        %s291 = scalar_select %p290, %s21, 1
        %p292 = scmp.lt.s32.totalorder %s22, 0
        %s293 = scalar_select %p292, %s22, 0
        %s294 = smul.addr %s293, 8
        %s295 = smul.addr %s291, 8
        %s296 = sadd.s32 %s294, %s295
        %s297 = smul.addr %s296, 8
        %s298 = scalar_lea.vmem %s1, %s297
      $region48: #{tpu_custom_call.1} parent=39 // pred_fallthru
        _
    $region40: #{tpu_custom_call.1} parent=5 // pred_fallthru
      _
    %p299 = scmp.le.s32.totalorder 1, %s14
    %p300 = scmp.lt.s32.totalorder %s14, 3
    %p301 = pnand %p299, %p300
    %p302 = pneg %p301
    // Predicated region
    $region49: #{tpu_custom_call.1} parent=5 // pred_check
      _
    $region50: #{tpu_custom_call.1} parent=5 // pred_check_branch
      %304 = sbr.rel (%p301) target = $region52
    $region51: #{tpu_custom_call.1} parent=5 // pred_region
      %s305 = ssub.s32 %s14, 1
      %s306 = smul.u32 16, %s24
      %p307 = scmp.lt.s32.totalorder %s23, 1
      %s308 = scalar_select %p307, %s23, 1
      %p309 = scmp.lt.s32.totalorder %s306, 15
      %s310 = scalar_select %p309, %s306, 15
      %s311 = smul.addr %s310, 2
      %s312 = smul.addr %s308, 32
      %s313 = sadd.s32 %s311, %s312
      %s314 = smul.addr %s313, 8
      %s315 = scalar_lea.vmem %s0, %s314
      %p316 = pneg %p54
      %p317 = pneg %p51
      %p318 = scmp.lt.s32.totalorder %s23, 1
      %s319 = scalar_select %p318, %s23, 1
      %p320 = scmp.lt.s32.totalorder %s24, 0
      %s321 = scalar_select %p320, %s24, 0
      %s322 = smul.addr %s321, 8
      %s323 = smul.addr %s319, 8
      %s324 = sadd.s32 %s322, %s323
      %s325 = smul.addr %s324, 8
      %s326 = scalar_lea.vmem %s1, %s325
      %p327 = pneg %p82
      %p328 = pneg %p79
      %p329 = pneg %p103
      %p330 = pneg %p100
      %p331 = pneg %p124
      %p332 = pneg %p121
      %p333 = pneg %p145
      %p334 = pneg %p142
      %p335 = pneg %p166
      %p336 = pneg %p163
      %p337 = pneg %p187
      %p338 = pneg %p184
      %p339 = pneg %p208
      %p340 = pneg %p205
      %p341 = pneg %p236
      %p342 = pneg %p233
      %s343 = smul.u32 16, %s24
      %p344 = scmp.lt.s32.totalorder %s23, 1
      %s345 = scalar_select %p344, %s23, 1
      %p346 = scmp.lt.s32.totalorder %s343, 15
      %s347 = scalar_select %p346, %s343, 15
      %s348 = smul.addr %s347, 2
      %s349 = smul.addr %s345, 32
      %s350 = sadd.s32 %s348, %s349
      %s351 = smul.addr %s350, 8
      %s352 = scalar_lea.vmem %s8, %s351
      %s353 = smul.u32 16, %s24
      %p354 = scmp.lt.s32.totalorder %s23, 1
      %s355 = scalar_select %p354, %s23, 1
      %p356 = scmp.lt.s32.totalorder %s353, 15
      %s357 = scalar_select %p356, %s353, 15
      %s358 = smul.addr %s357, 2
      %s359 = smul.addr %s355, 32
      %s360 = sadd.s32 %s358, %s359
      %s361 = smul.addr %s360, 8
      %s362 = scalar_lea.vmem %s0, %s361
      %s363 = smul.u32 16, %s24
      %p364 = scmp.lt.s32.totalorder %s23, 1
      %s365 = scalar_select %p364, %s23, 1
      %p366 = scmp.lt.s32.totalorder %s24, 0
      %s367 = scalar_select %p366, %s24, 0
      %s368 = smul.addr %s367, 8
      %s369 = smul.addr %s365, 8
      %s370 = sadd.s32 %s368, %s369
      %s371 = smul.addr %s370, 8
      %s372 = scalar_lea.vmem %s1, %s371
      %s373 = smul.u32 16, %s24
      %p374 = scmp.lt.s32.totalorder %s23, 1
      %s375 = scalar_select %p374, %s23, 1
      %p376 = scmp.lt.s32.totalorder %s373, 15
      %s377 = scalar_select %p376, %s373, 15
      %s378 = smul.addr %s377, 2
      %s379 = smul.addr %s375, 32
      %s380 = sadd.s32 %s378, %s379
      %s381 = smul.addr %s380, 8
      %s382 = scalar_lea.vmem %s8, %s381
      %s383 = smul.u32 16, %s24
      %v385 = vld [vmem:[%s362] sm:$0xff]
      %v386 = vld [vmem:[%s362 + $0x8] sm:$0xff]
      %v387 = vld [vmem:[%s362 + $0x10] sm:$0xff]
      %v388 = vld [vmem:[%s362 + $0x18] sm:$0xff]
      %v389 = vld [vmem:[%s362 + $0x20] sm:$0xff]
      %v390 = vld [vmem:[%s362 + $0x28] sm:$0xff]
      %v391 = vld [vmem:[%s362 + $0x30] sm:$0xff]
      %v392 = vld [vmem:[%s362 + $0x38] sm:$0xff]
      %v393 = vld [vmem:[%s362 + $0x40] sm:$0xff]
      %v394 = vld [vmem:[%s362 + $0x48] sm:$0xff]
      %v395 = vld [vmem:[%s362 + $0x50] sm:$0xff]
      %v396 = vld [vmem:[%s362 + $0x58] sm:$0xff]
      %v397 = vld [vmem:[%s362 + $0x60] sm:$0xff]
      %v398 = vld [vmem:[%s362 + $0x68] sm:$0xff]
      %v399 = vld [vmem:[%s362 + $0x70] sm:$0xff]
      %v400 = vld [vmem:[%s362 + $0x78] sm:$0xff]
      %v401 = vld [vmem:[%s362 + $0x80] sm:$0xff]
      %v402 = vld [vmem:[%s362 + $0x88] sm:$0xff]
      %v403 = vld [vmem:[%s362 + $0x90] sm:$0xff]
      %v404 = vld [vmem:[%s362 + $0x98] sm:$0xff]
      %v405 = vld [vmem:[%s362 + $0xa0] sm:$0xff]
      %v406 = vld [vmem:[%s362 + $0xa8] sm:$0xff]
      %v407 = vld [vmem:[%s362 + $0xb0] sm:$0xff]
      %v408 = vld [vmem:[%s362 + $0xb8] sm:$0xff]
      %v409 = vld [vmem:[%s362 + $0xc0] sm:$0xff]
      %v410 = vld [vmem:[%s362 + $0xc8] sm:$0xff]
      %v411 = vld [vmem:[%s362 + $0xd0] sm:$0xff]
      %v412 = vld [vmem:[%s362 + $0xd8] sm:$0xff]
      %v413 = vld [vmem:[%s362 + $0xe0] sm:$0xff]
      %v414 = vld [vmem:[%s362 + $0xe8] sm:$0xff]
      %v415 = vld [vmem:[%s362 + $0xf0] sm:$0xff]
      %v416 = vld [vmem:[%s362 + $0xf8] sm:$0xff]
      %v417 = vpack.c.bf16 %v386, %v385
      %v418 = vpack.c.bf16 %v388, %v387
      %v419 = vpack.c.bf16 %v390, %v389
      %v420 = vpack.c.bf16 %v392, %v391
      %v421 = vpack.c.bf16 %v394, %v393
      %v422 = vpack.c.bf16 %v396, %v395
      %v423 = vpack.c.bf16 %v398, %v397
      %v424 = vpack.c.bf16 %v400, %v399
      %v425 = vpack.c.bf16 %v402, %v401
      %v426 = vpack.c.bf16 %v404, %v403
      %v427 = vpack.c.bf16 %v406, %v405
      %v428 = vpack.c.bf16 %v408, %v407
      %v429 = vpack.c.bf16 %v410, %v409
      %v430 = vpack.c.bf16 %v412, %v411
      %v431 = vpack.c.bf16 %v414, %v413
      %v432 = vpack.c.bf16 %v416, %v415
      %v433 = vlaneseq
      %v434 = vshrl.u32 %v433, 7
      %v435 = vadd.s32 %v434, 8
      %v436 = vadd.s32 %v434, 16
      %v437 = vadd.s32 %v434, 24
      %v438 = vadd.s32 %v434, 32
      %v439 = vadd.s32 %v434, 40
      %v440 = vadd.s32 %v434, 48
      %v441 = vadd.s32 %v434, 56
      %v442 = vadd.s32 %v434, 64
      %v443 = vadd.s32 %v434, 72
      %v444 = vadd.s32 %v434, 80
      %v445 = vadd.s32 %v434, 88
      %v446 = vadd.s32 %v434, 96
      %v447 = vadd.s32 %v434, 104
      %v448 = vadd.s32 %v434, 112
      %v449 = vadd.s32 %v434, 120
      %v450 = vadd.s32 %v434, 128
      %v451 = vadd.s32 %v434, 136
      %v452 = vadd.s32 %v434, 144
      %v453 = vadd.s32 %v434, 152
      %v454 = vadd.s32 %v434, 160
      %v455 = vadd.s32 %v434, 168
      %v456 = vadd.s32 %v434, 176
      %v457 = vadd.s32 %v434, 184
      %v458 = vadd.s32 %v434, 192
      %v459 = vadd.s32 %v434, 200
      %v460 = vadd.s32 %v434, 208
      %v461 = vadd.s32 %v434, 216
      %v462 = vadd.s32 %v434, 224
      %v463 = vadd.s32 %v434, 232
      %v464 = vadd.s32 %v434, 240
      %v465 = vadd.s32 %v434, 248
      %v466 = vadd.s32 %v434, 256
      %v467 = vadd.s32 %v434, 264
      %v468 = vadd.s32 %v434, 272
      %v469 = vadd.s32 %v434, 280
      %vm470 = vcmp.lt.s32.totalorder %v434, 0
      %v471 = vsub.s32 0, %v434
      %v472 = vsel %vm470, %v471, %v434
      %v473 = vshrl.u32 %v472, 4
      %v474 = vand.u32 %v472, 15
      %v475 = vsub.s32 0, %v474
      %v476 = vsel %vm470, %v475, %v474
      %vm477 = vcmp.lt.s32.totalorder %v435, 0
      %v478 = vsub.s32 0, %v435
      %v479 = vsel %vm477, %v478, %v435
      %v480 = vshrl.u32 %v479, 4
      %v481 = vand.u32 %v479, 15
      %v482 = vsub.s32 0, %v481
      %v483 = vsel %vm477, %v482, %v481
      %vm484 = vcmp.lt.s32.totalorder %v436, 0
      %v485 = vsub.s32 0, %v436
      %v486 = vsel %vm484, %v485, %v436
      %v487 = vshrl.u32 %v486, 4
      %v488 = vand.u32 %v486, 15
      %v489 = vsub.s32 0, %v488
      %v490 = vsel %vm484, %v489, %v488
      %vm491 = vcmp.lt.s32.totalorder %v437, 0
      %v492 = vsub.s32 0, %v437
      %v493 = vsel %vm491, %v492, %v437
      %v494 = vshrl.u32 %v493, 4
      %v495 = vand.u32 %v493, 15
      %v496 = vsub.s32 0, %v495
      %v497 = vsel %vm491, %v496, %v495
      %vm498 = vcmp.lt.s32.totalorder %v438, 0
      %v499 = vsub.s32 0, %v438
      %v500 = vsel %vm498, %v499, %v438
      %v501 = vshrl.u32 %v500, 4
      %v502 = vand.u32 %v500, 15
      %v503 = vsub.s32 0, %v502
      %v504 = vsel %vm498, %v503, %v502
      %vm505 = vcmp.lt.s32.totalorder %v439, 0
      %v506 = vsub.s32 0, %v439
      %v507 = vsel %vm505, %v506, %v439
      %v508 = vshrl.u32 %v507, 4
      %v509 = vand.u32 %v507, 15
      %v510 = vsub.s32 0, %v509
      %v511 = vsel %vm505, %v510, %v509
      %vm512 = vcmp.lt.s32.totalorder %v440, 0
      %v513 = vsub.s32 0, %v440
      %v514 = vsel %vm512, %v513, %v440
      %v515 = vshrl.u32 %v514, 4
      %v516 = vand.u32 %v514, 15
      %v517 = vsub.s32 0, %v516
      %v518 = vsel %vm512, %v517, %v516
      %vm519 = vcmp.lt.s32.totalorder %v441, 0
      %v520 = vsub.s32 0, %v441
      %v521 = vsel %vm519, %v520, %v441
      %v522 = vshrl.u32 %v521, 4
      %v523 = vand.u32 %v521, 15
      %v524 = vsub.s32 0, %v523
      %v525 = vsel %vm519, %v524, %v523
      %vm526 = vcmp.lt.s32.totalorder %v442, 0
      %v527 = vsub.s32 0, %v442
      %v528 = vsel %vm526, %v527, %v442
      %v529 = vshrl.u32 %v528, 4
      %v530 = vand.u32 %v528, 15
      %v531 = vsub.s32 0, %v530
      %v532 = vsel %vm526, %v531, %v530
      %vm533 = vcmp.lt.s32.totalorder %v443, 0
      %v534 = vsub.s32 0, %v443
      %v535 = vsel %vm533, %v534, %v443
      %v536 = vshrl.u32 %v535, 4
      %v537 = vand.u32 %v535, 15
      %v538 = vsub.s32 0, %v537
      %v539 = vsel %vm533, %v538, %v537
      %vm540 = vcmp.lt.s32.totalorder %v444, 0
      %v541 = vsub.s32 0, %v444
      %v542 = vsel %vm540, %v541, %v444
      %v543 = vshrl.u32 %v542, 4
      %v544 = vand.u32 %v542, 15
      %v545 = vsub.s32 0, %v544
      %v546 = vsel %vm540, %v545, %v544
      %vm547 = vcmp.lt.s32.totalorder %v445, 0
      %v548 = vsub.s32 0, %v445
      %v549 = vsel %vm547, %v548, %v445
      %v550 = vshrl.u32 %v549, 4
      %v551 = vand.u32 %v549, 15
      %v552 = vsub.s32 0, %v551
      %v553 = vsel %vm547, %v552, %v551
      %vm554 = vcmp.lt.s32.totalorder %v446, 0
      %v555 = vsub.s32 0, %v446
      %v556 = vsel %vm554, %v555, %v446
      %v557 = vshrl.u32 %v556, 4
      %v558 = vand.u32 %v556, 15
      %v559 = vsub.s32 0, %v558
      %v560 = vsel %vm554, %v559, %v558
      %vm561 = vcmp.lt.s32.totalorder %v447, 0
      %v562 = vsub.s32 0, %v447
      %v563 = vsel %vm561, %v562, %v447
      %v564 = vshrl.u32 %v563, 4
      %v565 = vand.u32 %v563, 15
      %v566 = vsub.s32 0, %v565
      %v567 = vsel %vm561, %v566, %v565
      %vm568 = vcmp.lt.s32.totalorder %v448, 0
      %v569 = vsub.s32 0, %v448
      %v570 = vsel %vm568, %v569, %v448
      %v571 = vshrl.u32 %v570, 4
      %v572 = vand.u32 %v570, 15
      %v573 = vsub.s32 0, %v572
      %v574 = vsel %vm568, %v573, %v572
      %vm575 = vcmp.lt.s32.totalorder %v449, 0
      %v576 = vsub.s32 0, %v449
      %v577 = vsel %vm575, %v576, %v449
      %v578 = vshrl.u32 %v577, 4
      %v579 = vand.u32 %v577, 15
      %v580 = vsub.s32 0, %v579
      %v581 = vsel %vm575, %v580, %v579
      %vm582 = vcmp.lt.s32.totalorder %v450, 0
      %v583 = vsub.s32 0, %v450
      %v584 = vsel %vm582, %v583, %v450
      %v585 = vshrl.u32 %v584, 4
      %v586 = vand.u32 %v584, 15
      %v587 = vsub.s32 0, %v586
      %v588 = vsel %vm582, %v587, %v586
      %vm589 = vcmp.lt.s32.totalorder %v451, 0
      %v590 = vsub.s32 0, %v451
      %v591 = vsel %vm589, %v590, %v451
      %v592 = vshrl.u32 %v591, 4
      %v593 = vand.u32 %v591, 15
      %v594 = vsub.s32 0, %v593
      %v595 = vsel %vm589, %v594, %v593
      %vm596 = vcmp.lt.s32.totalorder %v452, 0
      %v597 = vsub.s32 0, %v452
      %v598 = vsel %vm596, %v597, %v452
      %v599 = vshrl.u32 %v598, 4
      %v600 = vand.u32 %v598, 15
      %v601 = vsub.s32 0, %v600
      %v602 = vsel %vm596, %v601, %v600
      %vm603 = vcmp.lt.s32.totalorder %v453, 0
      %v604 = vsub.s32 0, %v453
      %v605 = vsel %vm603, %v604, %v453
      %v606 = vshrl.u32 %v605, 4
      %v607 = vand.u32 %v605, 15
      %v608 = vsub.s32 0, %v607
      %v609 = vsel %vm603, %v608, %v607
      %vm610 = vcmp.lt.s32.totalorder %v454, 0
      %v611 = vsub.s32 0, %v454
      %v612 = vsel %vm610, %v611, %v454
      %v613 = vshrl.u32 %v612, 4
      %v614 = vand.u32 %v612, 15
      %v615 = vsub.s32 0, %v614
      %v616 = vsel %vm610, %v615, %v614
      %vm617 = vcmp.lt.s32.totalorder %v455, 0
      %v618 = vsub.s32 0, %v455
      %v619 = vsel %vm617, %v618, %v455
      %v620 = vshrl.u32 %v619, 4
      %v621 = vand.u32 %v619, 15
      %v622 = vsub.s32 0, %v621
      %v623 = vsel %vm617, %v622, %v621
      %vm624 = vcmp.lt.s32.totalorder %v456, 0
      %v625 = vsub.s32 0, %v456
      %v626 = vsel %vm624, %v625, %v456
      %v627 = vshrl.u32 %v626, 4
      %v628 = vand.u32 %v626, 15
      %v629 = vsub.s32 0, %v628
      %v630 = vsel %vm624, %v629, %v628
      %vm631 = vcmp.lt.s32.totalorder %v457, 0
      %v632 = vsub.s32 0, %v457
      %v633 = vsel %vm631, %v632, %v457
      %v634 = vshrl.u32 %v633, 4
      %v635 = vand.u32 %v633, 15
      %v636 = vsub.s32 0, %v635
      %v637 = vsel %vm631, %v636, %v635
      %vm638 = vcmp.lt.s32.totalorder %v458, 0
      %v639 = vsub.s32 0, %v458
      %v640 = vsel %vm638, %v639, %v458
      %v641 = vshrl.u32 %v640, 4
      %v642 = vand.u32 %v640, 15
      %v643 = vsub.s32 0, %v642
      %v644 = vsel %vm638, %v643, %v642
      %vm645 = vcmp.lt.s32.totalorder %v459, 0
      %v646 = vsub.s32 0, %v459
      %v647 = vsel %vm645, %v646, %v459
      %v648 = vshrl.u32 %v647, 4
      %v649 = vand.u32 %v647, 15
      %v650 = vsub.s32 0, %v649
      %v651 = vsel %vm645, %v650, %v649
      %vm652 = vcmp.lt.s32.totalorder %v460, 0
      %v653 = vsub.s32 0, %v460
      %v654 = vsel %vm652, %v653, %v460
      %v655 = vshrl.u32 %v654, 4
      %v656 = vand.u32 %v654, 15
      %v657 = vsub.s32 0, %v656
      %v658 = vsel %vm652, %v657, %v656
      %vm659 = vcmp.lt.s32.totalorder %v461, 0
      %v660 = vsub.s32 0, %v461
      %v661 = vsel %vm659, %v660, %v461
      %v662 = vshrl.u32 %v661, 4
      %v663 = vand.u32 %v661, 15
      %v664 = vsub.s32 0, %v663
      %v665 = vsel %vm659, %v664, %v663
      %vm666 = vcmp.lt.s32.totalorder %v462, 0
      %v667 = vsub.s32 0, %v462
      %v668 = vsel %vm666, %v667, %v462
      %v669 = vshrl.u32 %v668, 4
      %v670 = vand.u32 %v668, 15
      %v671 = vsub.s32 0, %v670
      %v672 = vsel %vm666, %v671, %v670
      %vm673 = vcmp.lt.s32.totalorder %v463, 0
      %v674 = vsub.s32 0, %v463
      %v675 = vsel %vm673, %v674, %v463
      %v676 = vshrl.u32 %v675, 4
      %v677 = vand.u32 %v675, 15
      %v678 = vsub.s32 0, %v677
      %v679 = vsel %vm673, %v678, %v677
      %vm680 = vcmp.lt.s32.totalorder %v464, 0
      %v681 = vsub.s32 0, %v464
      %v682 = vsel %vm680, %v681, %v464
      %v683 = vshrl.u32 %v682, 4
      %v684 = vand.u32 %v682, 15
      %v685 = vsub.s32 0, %v684
      %v686 = vsel %vm680, %v685, %v684
      %vm687 = vcmp.lt.s32.totalorder %v465, 0
      %v688 = vsub.s32 0, %v465
      %v689 = vsel %vm687, %v688, %v465
      %v690 = vshrl.u32 %v689, 4
      %v691 = vand.u32 %v689, 15
      %v692 = vsub.s32 0, %v691
      %v693 = vsel %vm687, %v692, %v691
      %vm694 = vcmp.lt.s32.totalorder %v466, 0
      %v695 = vsub.s32 0, %v466
      %v696 = vsel %vm694, %v695, %v466
      %v697 = vshrl.u32 %v696, 4
      %v698 = vand.u32 %v696, 15
      %v699 = vsub.s32 0, %v698
      %v700 = vsel %vm694, %v699, %v698
      %vm701 = vcmp.lt.s32.totalorder %v467, 0
      %v702 = vsub.s32 0, %v467
      %v703 = vsel %vm701, %v702, %v467
      %v704 = vshrl.u32 %v703, 4
      %v705 = vand.u32 %v703, 15
      %v706 = vsub.s32 0, %v705
      %v707 = vsel %vm701, %v706, %v705
      %vm708 = vcmp.lt.s32.totalorder %v468, 0
      %v709 = vsub.s32 0, %v468
      %v710 = vsel %vm708, %v709, %v468
      %v711 = vshrl.u32 %v710, 4
      %v712 = vand.u32 %v710, 15
      %v713 = vsub.s32 0, %v712
      %v714 = vsel %vm708, %v713, %v712
      %vm715 = vcmp.lt.s32.totalorder %v469, 0
      %v716 = vsub.s32 0, %v469
      %v717 = vsel %vm715, %v716, %v469
      %v718 = vshrl.u32 %v717, 4
      %v719 = vand.u32 %v717, 15
      %v720 = vsub.s32 0, %v719
      %v721 = vsel %vm715, %v720, %v719
      %vm722 = vcmp.ne.s32.totalorder %v476, 0
      %vm723 = vcmp.ne.s32.totalorder %v483, 0
      %vm724 = vcmp.ne.s32.totalorder %v490, 0
      %vm725 = vcmp.ne.s32.totalorder %v497, 0
      %vm726 = vcmp.ne.s32.totalorder %v504, 0
      %vm727 = vcmp.ne.s32.totalorder %v511, 0
      %vm728 = vcmp.ne.s32.totalorder %v518, 0
      %vm729 = vcmp.ne.s32.totalorder %v525, 0
      %vm730 = vcmp.ne.s32.totalorder %v532, 0
      %vm731 = vcmp.ne.s32.totalorder %v539, 0
      %vm732 = vcmp.ne.s32.totalorder %v546, 0
      %vm733 = vcmp.ne.s32.totalorder %v553, 0
      %vm734 = vcmp.ne.s32.totalorder %v560, 0
      %vm735 = vcmp.ne.s32.totalorder %v567, 0
      %vm736 = vcmp.ne.s32.totalorder %v574, 0
      %vm737 = vcmp.ne.s32.totalorder %v581, 0
      %vm738 = vcmp.ne.s32.totalorder %v588, 0
      %vm739 = vcmp.ne.s32.totalorder %v595, 0
      %vm740 = vcmp.ne.s32.totalorder %v602, 0
      %vm741 = vcmp.ne.s32.totalorder %v609, 0
      %vm742 = vcmp.ne.s32.totalorder %v616, 0
      %vm743 = vcmp.ne.s32.totalorder %v623, 0
      %vm744 = vcmp.ne.s32.totalorder %v630, 0
      %vm745 = vcmp.ne.s32.totalorder %v637, 0
      %vm746 = vcmp.ne.s32.totalorder %v644, 0
      %vm747 = vcmp.ne.s32.totalorder %v651, 0
      %vm748 = vcmp.ne.s32.totalorder %v658, 0
      %vm749 = vcmp.ne.s32.totalorder %v665, 0
      %vm750 = vcmp.ne.s32.totalorder %v672, 0
      %vm751 = vcmp.ne.s32.totalorder %v679, 0
      %vm752 = vcmp.ne.s32.totalorder %v686, 0
      %vm753 = vcmp.ne.s32.totalorder %v693, 0
      %vm754 = vcmp.ne.s32.totalorder %v700, 0
      %vm755 = vcmp.ne.s32.totalorder %v707, 0
      %vm756 = vcmp.ne.s32.totalorder %v714, 0
      %vm757 = vcmp.ne.s32.totalorder %v721, 0
      %vm758 = vcmp.lt.s32.totalorder %v476, 0
      %vm759 = vcmp.lt.s32.totalorder %v483, 0
      %vm760 = vcmp.lt.s32.totalorder %v490, 0
      %vm761 = vcmp.lt.s32.totalorder %v497, 0
      %vm762 = vcmp.lt.s32.totalorder %v504, 0
      %vm763 = vcmp.lt.s32.totalorder %v511, 0
      %vm764 = vcmp.lt.s32.totalorder %v518, 0
      %vm765 = vcmp.lt.s32.totalorder %v525, 0
      %vm766 = vcmp.lt.s32.totalorder %v532, 0
      %vm767 = vcmp.lt.s32.totalorder %v539, 0
      %vm768 = vcmp.lt.s32.totalorder %v546, 0
      %vm769 = vcmp.lt.s32.totalorder %v553, 0
      %vm770 = vcmp.lt.s32.totalorder %v560, 0
      %vm771 = vcmp.lt.s32.totalorder %v567, 0
      %vm772 = vcmp.lt.s32.totalorder %v574, 0
      %vm773 = vcmp.lt.s32.totalorder %v581, 0
      %vm774 = vcmp.lt.s32.totalorder %v588, 0
      %vm775 = vcmp.lt.s32.totalorder %v595, 0
      %vm776 = vcmp.lt.s32.totalorder %v602, 0
      %vm777 = vcmp.lt.s32.totalorder %v609, 0
      %vm778 = vcmp.lt.s32.totalorder %v616, 0
      %vm779 = vcmp.lt.s32.totalorder %v623, 0
      %vm780 = vcmp.lt.s32.totalorder %v630, 0
      %vm781 = vcmp.lt.s32.totalorder %v637, 0
      %vm782 = vcmp.lt.s32.totalorder %v644, 0
      %vm783 = vcmp.lt.s32.totalorder %v651, 0
      %vm784 = vcmp.lt.s32.totalorder %v658, 0
      %vm785 = vcmp.lt.s32.totalorder %v665, 0
      %vm786 = vcmp.lt.s32.totalorder %v672, 0
      %vm787 = vcmp.lt.s32.totalorder %v679, 0
      %vm788 = vcmp.lt.s32.totalorder %v686, 0
      %vm789 = vcmp.lt.s32.totalorder %v693, 0
      %vm790 = vcmp.lt.s32.totalorder %v700, 0
      %vm791 = vcmp.lt.s32.totalorder %v707, 0
      %vm792 = vcmp.lt.s32.totalorder %v714, 0
      %vm793 = vcmp.lt.s32.totalorder %v721, 0
      %vm794 = vmand %vm758, %vm722
      %vm795 = vmand %vm759, %vm723
      %vm796 = vmand %vm760, %vm724
      %vm797 = vmand %vm761, %vm725
      %vm798 = vmand %vm762, %vm726
      %vm799 = vmand %vm763, %vm727
      %vm800 = vmand %vm764, %vm728
      %vm801 = vmand %vm765, %vm729
      %vm802 = vmand %vm766, %vm730
      %vm803 = vmand %vm767, %vm731
      %vm804 = vmand %vm768, %vm732
      %vm805 = vmand %vm769, %vm733
      %vm806 = vmand %vm770, %vm734
      %vm807 = vmand %vm771, %vm735
      %vm808 = vmand %vm772, %vm736
      %vm809 = vmand %vm773, %vm737
      %vm810 = vmand %vm774, %vm738
      %vm811 = vmand %vm775, %vm739
      %vm812 = vmand %vm776, %vm740
      %vm813 = vmand %vm777, %vm741
      %vm814 = vmand %vm778, %vm742
      %vm815 = vmand %vm779, %vm743
      %vm816 = vmand %vm780, %vm744
      %vm817 = vmand %vm781, %vm745
      %vm818 = vmand %vm782, %vm746
      %vm819 = vmand %vm783, %vm747
      %vm820 = vmand %vm784, %vm748
      %vm821 = vmand %vm785, %vm749
      %vm822 = vmand %vm786, %vm750
      %vm823 = vmand %vm787, %vm751
      %vm824 = vmand %vm788, %vm752
      %vm825 = vmand %vm789, %vm753
      %vm826 = vmand %vm790, %vm754
      %vm827 = vmand %vm791, %vm755
      %vm828 = vmand %vm792, %vm756
      %vm829 = vmand %vm793, %vm757
      %v830 = vadd.s32 %v476, 16
      %v831 = vadd.s32 %v483, 16
      %v832 = vadd.s32 %v490, 16
      %v833 = vadd.s32 %v497, 16
      %v834 = vadd.s32 %v504, 16
      %v835 = vadd.s32 %v511, 16
      %v836 = vadd.s32 %v518, 16
      %v837 = vadd.s32 %v525, 16
      %v838 = vadd.s32 %v532, 16
      %v839 = vadd.s32 %v539, 16
      %v840 = vadd.s32 %v546, 16
      %v841 = vadd.s32 %v553, 16
      %v842 = vadd.s32 %v560, 16
      %v843 = vadd.s32 %v567, 16
      %v844 = vadd.s32 %v574, 16
      %v845 = vadd.s32 %v581, 16
      %v846 = vadd.s32 %v588, 16
      %v847 = vadd.s32 %v595, 16
      %v848 = vadd.s32 %v602, 16
      %v849 = vadd.s32 %v609, 16
      %v850 = vadd.s32 %v616, 16
      %v851 = vadd.s32 %v623, 16
      %v852 = vadd.s32 %v630, 16
      %v853 = vadd.s32 %v637, 16
      %v854 = vadd.s32 %v644, 16
      %v855 = vadd.s32 %v651, 16
      %v856 = vadd.s32 %v658, 16
      %v857 = vadd.s32 %v665, 16
      %v858 = vadd.s32 %v672, 16
      %v859 = vadd.s32 %v679, 16
      %v860 = vadd.s32 %v686, 16
      %v861 = vadd.s32 %v693, 16
      %v862 = vadd.s32 %v700, 16
      %v863 = vadd.s32 %v707, 16
      %v864 = vadd.s32 %v714, 16
      %v865 = vadd.s32 %v721, 16
      %v866 = vsel %vm794, %v830, %v476
      %v867 = vsel %vm795, %v831, %v483
      %v868 = vsel %vm796, %v832, %v490
      %v869 = vsel %vm797, %v833, %v497
      %v870 = vsel %vm798, %v834, %v504
      %v871 = vsel %vm799, %v835, %v511
      %v872 = vsel %vm800, %v836, %v518
      %v873 = vsel %vm801, %v837, %v525
      %v874 = vsel %vm802, %v838, %v532
      %v875 = vsel %vm803, %v839, %v539
      %v876 = vsel %vm804, %v840, %v546
      %v877 = vsel %vm805, %v841, %v553
      %v878 = vsel %vm806, %v842, %v560
      %v879 = vsel %vm807, %v843, %v567
      %v880 = vsel %vm808, %v844, %v574
      %v881 = vsel %vm809, %v845, %v581
      %v882 = vsel %vm810, %v846, %v588
      %v883 = vsel %vm811, %v847, %v595
      %v884 = vsel %vm812, %v848, %v602
      %v885 = vsel %vm813, %v849, %v609
      %v886 = vsel %vm814, %v850, %v616
      %v887 = vsel %vm815, %v851, %v623
      %v888 = vsel %vm816, %v852, %v630
      %v889 = vsel %vm817, %v853, %v637
      %v890 = vsel %vm818, %v854, %v644
      %v891 = vsel %vm819, %v855, %v651
      %v892 = vsel %vm820, %v856, %v658
      %v893 = vsel %vm821, %v857, %v665
      %v894 = vsel %vm822, %v858, %v672
      %v895 = vsel %vm823, %v859, %v679
      %v896 = vsel %vm824, %v860, %v686
      %v897 = vsel %vm825, %v861, %v693
      %v898 = vsel %vm826, %v862, %v700
      %v899 = vsel %vm827, %v863, %v707
      %v900 = vsel %vm828, %v864, %v714
      %v901 = vsel %vm829, %v865, %v721
      %vm902 = vcmp.ge.s32.totalorder %v866, 1
      %vm903 = vcmp.ge.s32.totalorder %v867, 1
      %vm904 = vcmp.ge.s32.totalorder %v868, 1
      %vm905 = vcmp.ge.s32.totalorder %v869, 1
      %vm906 = vcmp.ge.s32.totalorder %v870, 1
      %vm907 = vcmp.ge.s32.totalorder %v871, 1
      %vm908 = vcmp.ge.s32.totalorder %v872, 1
      %vm909 = vcmp.ge.s32.totalorder %v873, 1
      %vm910 = vcmp.ge.s32.totalorder %v874, 1
      %vm911 = vcmp.ge.s32.totalorder %v875, 1
      %vm912 = vcmp.ge.s32.totalorder %v876, 1
      %vm913 = vcmp.ge.s32.totalorder %v877, 1
      %vm914 = vcmp.ge.s32.totalorder %v878, 1
      %vm915 = vcmp.ge.s32.totalorder %v879, 1
      %vm916 = vcmp.ge.s32.totalorder %v880, 1
      %vm917 = vcmp.ge.s32.totalorder %v881, 1
      %vm918 = vcmp.ge.s32.totalorder %v882, 1
      %vm919 = vcmp.ge.s32.totalorder %v883, 1
      %vm920 = vcmp.ge.s32.totalorder %v884, 1
      %vm921 = vcmp.ge.s32.totalorder %v885, 1
      %vm922 = vcmp.ge.s32.totalorder %v886, 1
      %vm923 = vcmp.ge.s32.totalorder %v887, 1
      %vm924 = vcmp.ge.s32.totalorder %v888, 1
      %vm925 = vcmp.ge.s32.totalorder %v889, 1
      %vm926 = vcmp.ge.s32.totalorder %v890, 1
      %vm927 = vcmp.ge.s32.totalorder %v891, 1
      %vm928 = vcmp.ge.s32.totalorder %v892, 1
      %vm929 = vcmp.ge.s32.totalorder %v893, 1
      %vm930 = vcmp.ge.s32.totalorder %v894, 1
      %vm931 = vcmp.ge.s32.totalorder %v895, 1
      %vm932 = vcmp.ge.s32.totalorder %v896, 1
      %vm933 = vcmp.ge.s32.totalorder %v897, 1
      %vm934 = vcmp.ge.s32.totalorder %v898, 1
      %vm935 = vcmp.ge.s32.totalorder %v899, 1
      %vm936 = vcmp.ge.s32.totalorder %v900, 1
      %vm937 = vcmp.ge.s32.totalorder %v901, 1
      %vm938 = vcmp.lt.s32.totalorder %v866, 15
      %vm939 = vcmp.lt.s32.totalorder %v867, 15
      %vm940 = vcmp.lt.s32.totalorder %v868, 15
      %vm941 = vcmp.lt.s32.totalorder %v869, 15
      %vm942 = vcmp.lt.s32.totalorder %v870, 15
      %vm943 = vcmp.lt.s32.totalorder %v871, 15
      %vm944 = vcmp.lt.s32.totalorder %v872, 15
      %vm945 = vcmp.lt.s32.totalorder %v873, 15
      %vm946 = vcmp.lt.s32.totalorder %v874, 15
      %vm947 = vcmp.lt.s32.totalorder %v875, 15
      %vm948 = vcmp.lt.s32.totalorder %v876, 15
      %vm949 = vcmp.lt.s32.totalorder %v877, 15
      %vm950 = vcmp.lt.s32.totalorder %v878, 15
      %vm951 = vcmp.lt.s32.totalorder %v879, 15
      %vm952 = vcmp.lt.s32.totalorder %v880, 15
      %vm953 = vcmp.lt.s32.totalorder %v881, 15
      %vm954 = vcmp.lt.s32.totalorder %v882, 15
      %vm955 = vcmp.lt.s32.totalorder %v883, 15
      %vm956 = vcmp.lt.s32.totalorder %v884, 15
      %vm957 = vcmp.lt.s32.totalorder %v885, 15
      %vm958 = vcmp.lt.s32.totalorder %v886, 15
      %vm959 = vcmp.lt.s32.totalorder %v887, 15
      %vm960 = vcmp.lt.s32.totalorder %v888, 15
      %vm961 = vcmp.lt.s32.totalorder %v889, 15
      %vm962 = vcmp.lt.s32.totalorder %v890, 15
      %vm963 = vcmp.lt.s32.totalorder %v891, 15
      %vm964 = vcmp.lt.s32.totalorder %v892, 15
      %vm965 = vcmp.lt.s32.totalorder %v893, 15
      %vm966 = vcmp.lt.s32.totalorder %v894, 15
      %vm967 = vcmp.lt.s32.totalorder %v895, 15
      %vm968 = vcmp.lt.s32.totalorder %v896, 15
      %vm969 = vcmp.lt.s32.totalorder %v897, 15
      %vm970 = vcmp.lt.s32.totalorder %v898, 15
      %vm971 = vcmp.lt.s32.totalorder %v899, 15
      %vm972 = vcmp.lt.s32.totalorder %v900, 15
      %vm973 = vcmp.lt.s32.totalorder %v901, 15
      %v974 = vld [vmem:[%s2] sm:$0xf]
      %v975 = vpack.c.bf16 %v974, %v974
      %v976 = vld [vmem:[%s3] sm:$0x1]
      %v978 = vlaneseq
      %v979 = vshrl.u32 %v978, 7
      %v980 = vsub.s32 0, %v979
      %v981 = vrot.slane %v976, %v980
      %vm983 = vcmask 31744
      %v985 = vsel %vm983, %v417, 0
      %v988 = vsel %vm983, %v418, 0
      %v991 = vsel %vm983, %v419, 0
      %v994 = vsel %vm983, %v420, 0
      %v997 = vsel %vm983, %v421, 0
      %v1000 = vsel %vm983, %v422, 0
      %v1003 = vsel %vm983, %v423, 0
      %v1006 = vsel %vm983, %v424, 0
      %v1009 = vsel %vm983, %v425, 0
      %v1012 = vsel %vm983, %v426, 0
      %v1015 = vsel %vm983, %v427, 0
      %v1018 = vsel %vm983, %v428, 0
      %v1021 = vsel %vm983, %v429, 0
      %v1024 = vsel %vm983, %v430, 0
      %v1027 = vsel %vm983, %v431, 0
      %v1030 = vsel %vm983, %v432, 0
      %vm1032 = vcmask 1041408
      %v1034 = vsel %vm1032, %v975, 0
      %1036 = vmatprep.subr.bf16.mxu0 0
      %1037 = vmatpush1.bf16.msra.mxu0 %v1034
      %1038 = vmatprep.subr.bf16.mxu0 0
      %1039 = vmatpush1.bf16.msra.mxu0 0
      %1040 = vmatprep.subr.bf16.mxu0 0
      %1041 = vmatpush1.bf16.msra.mxu0 0
      %1042 = vmatprep.subr.bf16.mxu0 0
      %1043 = vmatpush1.bf16.msra.mxu0 0
      %1044 = vmatprep.subr.bf16.mxu0 0
      %1045 = vmatpush1.bf16.msra.mxu0 0
      %1046 = vmatprep.subr.bf16.mxu0 0
      %1047 = vmatpush1.bf16.msra.mxu0 0
      %1048 = vmatprep.subr.bf16.mxu0 0
      %1049 = vmatpush1.bf16.msra.mxu0 0
      %1050 = vmatprep.subr.bf16.mxu0 0
      %1051 = vmatpush1.bf16.msra.mxu0 0
      %1052 = vmatprep.subr.bf16.mxu0 0
      %1053 = vmatpush1.bf16.msra.mxu0 0
      %1054 = vmatprep.subr.bf16.mxu0 0
      %1055 = vmatpush1.bf16.msra.mxu0 0
      %1056 = vmatprep.subr.bf16.mxu0 0
      %1057 = vmatpush1.bf16.msra.mxu0 0
      %1058 = vmatprep.subr.bf16.mxu0 0
      %1059 = vmatpush1.bf16.msra.mxu0 0
      %1060 = vmatprep.subr.bf16.mxu0 0
      %1061 = vmatpush1.bf16.msra.mxu0 0
      %1062 = vmatprep.subr.bf16.mxu0 0
      %1063 = vmatpush1.bf16.msra.mxu0 0
      %1064 = vmatprep.subr.bf16.mxu0 0
      %1065 = vmatpush1.bf16.msra.mxu0 0
      %1066 = vmatprep.subr.bf16.mxu0 0
      %1067 = vmatpush1.bf16.msra.mxu0 0
      %1068 = vmatprep.mubr.bf16.mxu0 0
      %1069 = vmatmul.mubr.bf16.gmra.mrb[0].mxu0 %v985
      %v1070 = vpop.f32.mrb[0].mxu0
      %v1071 = vadd.f32 %v981, %v1070
      %v1072 = vpop.f32.mrb[0].mxu0
      %v1073 = vpop.f32.mrb[0].mxu0
      %v1074 = vadd.f32 %v981, %v1073
      %v1075 = vpop.f32.mrb[0].mxu0
      %1076 = vmatprep.mubr.bf16.mxu0 0
      %1077 = vmatmul.mubr.bf16.gmra.mrb[0].mxu0 %v988
      %v1078 = vpop.f32.mrb[0].mxu0
      %v1079 = vadd.f32 %v981, %v1078
      %v1080 = vpop.f32.mrb[0].mxu0
      %v1081 = vpop.f32.mrb[0].mxu0
      %v1082 = vadd.f32 %v981, %v1081
      %v1083 = vpop.f32.mrb[0].mxu0
      %1084 = vmatprep.mubr.bf16.mxu0 0
      %1085 = vmatmul.mubr.bf16.gmra.mrb[0].mxu0 %v991
      %v1086 = vpop.f32.mrb[0].mxu0
      %v1087 = vadd.f32 %v981, %v1086
      %v1088 = vpop.f32.mrb[0].mxu0
      %v1089 = vpop.f32.mrb[0].mxu0
      %v1090 = vadd.f32 %v981, %v1089
      %v1091 = vpop.f32.mrb[0].mxu0
      %1092 = vmatprep.mubr.bf16.mxu0 0
      %1093 = vmatmul.mubr.bf16.gmra.mrb[0].mxu0 %v994
      %v1094 = vpop.f32.mrb[0].mxu0
      %v1095 = vadd.f32 %v981, %v1094
      %v1096 = vpop.f32.mrb[0].mxu0
      %v1097 = vpop.f32.mrb[0].mxu0
      %v1098 = vadd.f32 %v981, %v1097
      %v1099 = vpop.f32.mrb[0].mxu0
      %1100 = vmatprep.mubr.bf16.mxu0 0
      %1101 = vmatmul.mubr.bf16.gmra.mrb[0].mxu0 %v997
      %v1102 = vpop.f32.mrb[0].mxu0
      %v1103 = vadd.f32 %v981, %v1102
      %v1104 = vpop.f32.mrb[0].mxu0
      %v1105 = vpop.f32.mrb[0].mxu0
      %v1106 = vadd.f32 %v981, %v1105
      %v1107 = vpop.f32.mrb[0].mxu0
      %1108 = vmatprep.mubr.bf16.mxu0 0
      %1109 = vmatmul.mubr.bf16.gmra.mrb[0].mxu0 %v1000
      %v1110 = vpop.f32.mrb[0].mxu0
      %v1111 = vadd.f32 %v981, %v1110
      %v1112 = vpop.f32.mrb[0].mxu0
      %v1113 = vpop.f32.mrb[0].mxu0
      %v1114 = vadd.f32 %v981, %v1113
      %v1115 = vpop.f32.mrb[0].mxu0
      %1116 = vmatprep.mubr.bf16.mxu0 0
      %1117 = vmatmul.mubr.bf16.gmra.mrb[0].mxu0 %v1003
      %v1118 = vpop.f32.mrb[0].mxu0
      %v1119 = vadd.f32 %v981, %v1118
      %v1120 = vpop.f32.mrb[0].mxu0
      %v1121 = vpop.f32.mrb[0].mxu0
      %v1122 = vadd.f32 %v981, %v1121
      %v1123 = vpop.f32.mrb[0].mxu0
      %1124 = vmatprep.mubr.bf16.mxu0 0
      %1125 = vmatmul.mubr.bf16.gmra.mrb[0].mxu0 %v1006
      %v1126 = vpop.f32.mrb[0].mxu0
      %v1127 = vadd.f32 %v981, %v1126
      %v1128 = vpop.f32.mrb[0].mxu0
      %v1129 = vpop.f32.mrb[0].mxu0
      %v1130 = vadd.f32 %v981, %v1129
      %v1131 = vpop.f32.mrb[0].mxu0
      %1132 = vmatprep.mubr.bf16.mxu0 0
      %1133 = vmatmul.mubr.bf16.gmra.mrb[0].mxu0 %v1009
      %v1134 = vpop.f32.mrb[0].mxu0
      %v1135 = vadd.f32 %v981, %v1134
      %v1136 = vpop.f32.mrb[0].mxu0
      %v1137 = vpop.f32.mrb[0].mxu0
      %v1138 = vadd.f32 %v981, %v1137
      %v1139 = vpop.f32.mrb[0].mxu0
      %1140 = vmatprep.mubr.bf16.mxu0 0
      %1141 = vmatmul.mubr.bf16.gmra.mrb[0].mxu0 %v1012
      %v1142 = vpop.f32.mrb[0].mxu0
      %v1143 = vadd.f32 %v981, %v1142
      %v1144 = vpop.f32.mrb[0].mxu0
      %v1145 = vpop.f32.mrb[0].mxu0
      %v1146 = vadd.f32 %v981, %v1145
      %v1147 = vpop.f32.mrb[0].mxu0
      %1148 = vmatprep.mubr.bf16.mxu0 0
      %1149 = vmatmul.mubr.bf16.gmra.mrb[0].mxu0 %v1015
      %v1150 = vpop.f32.mrb[0].mxu0
      %v1151 = vadd.f32 %v981, %v1150
      %v1152 = vpop.f32.mrb[0].mxu0
      %v1153 = vpop.f32.mrb[0].mxu0
      %v1154 = vadd.f32 %v981, %v1153
      %v1155 = vpop.f32.mrb[0].mxu0
      %1156 = vmatprep.mubr.bf16.mxu0 0
      %1157 = vmatmul.mubr.bf16.gmra.mrb[0].mxu0 %v1018
      %v1158 = vpop.f32.mrb[0].mxu0
      %v1159 = vadd.f32 %v981, %v1158
      %v1160 = vpop.f32.mrb[0].mxu0
      %v1161 = vpop.f32.mrb[0].mxu0
      %v1162 = vadd.f32 %v981, %v1161
      %v1163 = vpop.f32.mrb[0].mxu0
      %1164 = vmatprep.mubr.bf16.mxu0 0
      %1165 = vmatmul.mubr.bf16.gmra.mrb[0].mxu0 %v1021
      %v1166 = vpop.f32.mrb[0].mxu0
      %v1167 = vadd.f32 %v981, %v1166
      %v1168 = vpop.f32.mrb[0].mxu0
      %v1169 = vpop.f32.mrb[0].mxu0
      %v1170 = vadd.f32 %v981, %v1169
      %v1171 = vpop.f32.mrb[0].mxu0
      %1172 = vmatprep.mubr.bf16.mxu0 0
      %1173 = vmatmul.mubr.bf16.gmra.mrb[0].mxu0 %v1024
      %v1174 = vpop.f32.mrb[0].mxu0
      %v1175 = vadd.f32 %v981, %v1174
      %v1176 = vpop.f32.mrb[0].mxu0
      %v1177 = vpop.f32.mrb[0].mxu0
      %v1178 = vadd.f32 %v981, %v1177
      %v1179 = vpop.f32.mrb[0].mxu0
      %1180 = vmatprep.mubr.bf16.mxu0 0
      %1181 = vmatmul.mubr.bf16.gmra.mrb[0].mxu0 %v1027
      %v1182 = vpop.f32.mrb[0].mxu0
      %v1183 = vadd.f32 %v981, %v1182
      %v1184 = vpop.f32.mrb[0].mxu0
      %v1185 = vpop.f32.mrb[0].mxu0
      %v1186 = vadd.f32 %v981, %v1185
      %v1187 = vpop.f32.mrb[0].mxu0
      %1188 = vmatprep.mubr.bf16.mxu0 0
      %1189 = vmatmul.mubr.bf16.gmra.mrb[0].mxu0 %v1030
      %v1190 = vpop.f32.mrb[0].mxu0
      %v1191 = vadd.f32 %v981, %v1190
      %v1192 = vpop.f32.mrb[0].mxu0
      %v1193 = vpop.f32.mrb[0].mxu0
      %v1194 = vadd.f32 %v981, %v1193
      %v1195 = vpop.f32.mrb[0].mxu0
      %1196 = vdwg.mxu0
      %v1197 = vld [vmem:[%s372] sm:$0xff]
      %v1198 = vld [vmem:[%s372 + $0x8] sm:$0xff]
      %s1199 = scalar_lea.vmem %s372, 16
      %v1200 = vld [vmem:[%s1199] sm:$0xff]
      %v1201 = vld [vmem:[%s1199 + $0x8] sm:$0xff]
      %v1202 = vrot.slane %v1197, 7
      %v1203 = vrot.slane %v1198, 7
      %v1204 = vrot.slane %v1071, 7
      %v1205 = vrot.slane %v1074, 7
      %v1206 = vrot.slane %v1079, 7
      %v1207 = vrot.slane %v1082, 7
      %v1208 = vrot.slane %v1087, 7
      %v1209 = vrot.slane %v1090, 7
      %v1210 = vrot.slane %v1095, 7
      %v1211 = vrot.slane %v1098, 7
      %v1212 = vrot.slane %v1103, 7
      %v1213 = vrot.slane %v1106, 7
      %v1214 = vrot.slane %v1111, 7
      %v1215 = vrot.slane %v1114, 7
      %v1216 = vrot.slane %v1119, 7
      %v1217 = vrot.slane %v1122, 7
      %v1218 = vrot.slane %v1127, 7
      %v1219 = vrot.slane %v1130, 7
      %v1220 = vrot.slane %v1135, 7
      %v1221 = vrot.slane %v1138, 7
      %v1222 = vrot.slane %v1143, 7
      %v1223 = vrot.slane %v1146, 7
      %v1224 = vrot.slane %v1151, 7
      %v1225 = vrot.slane %v1154, 7
      %v1226 = vrot.slane %v1159, 7
      %v1227 = vrot.slane %v1162, 7
      %v1228 = vrot.slane %v1167, 7
      %v1229 = vrot.slane %v1170, 7
      %v1230 = vrot.slane %v1175, 7
      %v1231 = vrot.slane %v1178, 7
      %v1232 = vrot.slane %v1183, 7
      %v1233 = vrot.slane %v1186, 7
      %v1234 = vrot.slane %v1191, 7
      %v1235 = vrot.slane %v1194, 7
      %v1236 = vrot.slane %v1200, 7
      %v1237 = vrot.slane %v1201, 7
      %vm1238 = vcmp.lt.s32.totalorder %v434, 1
      %v1239 = vsel %vm1238, %v1236, %v1237
      %v1240 = vsel %vm1238, %v1235, %v1236
      %v1241 = vsel %vm1238, %v1234, %v1235
      %v1242 = vsel %vm1238, %v1233, %v1234
      %v1243 = vsel %vm1238, %v1232, %v1233
      %v1244 = vsel %vm1238, %v1231, %v1232
      %v1245 = vsel %vm1238, %v1230, %v1231
      %v1246 = vsel %vm1238, %v1229, %v1230
      %v1247 = vsel %vm1238, %v1228, %v1229
      %v1248 = vsel %vm1238, %v1227, %v1228
      %v1249 = vsel %vm1238, %v1226, %v1227
      %v1250 = vsel %vm1238, %v1225, %v1226
      %v1251 = vsel %vm1238, %v1224, %v1225
      %v1252 = vsel %vm1238, %v1223, %v1224
      %v1253 = vsel %vm1238, %v1222, %v1223
      %v1254 = vsel %vm1238, %v1221, %v1222
      %v1255 = vsel %vm1238, %v1220, %v1221
      %v1256 = vsel %vm1238, %v1219, %v1220
      %v1257 = vsel %vm1238, %v1218, %v1219
      %v1258 = vsel %vm1238, %v1217, %v1218
      %v1259 = vsel %vm1238, %v1216, %v1217
      %v1260 = vsel %vm1238, %v1215, %v1216
      %v1261 = vsel %vm1238, %v1214, %v1215
      %v1262 = vsel %vm1238, %v1213, %v1214
      %v1263 = vsel %vm1238, %v1212, %v1213
      %v1264 = vsel %vm1238, %v1211, %v1212
      %v1265 = vsel %vm1238, %v1210, %v1211
      %v1266 = vsel %vm1238, %v1209, %v1210
      %v1267 = vsel %vm1238, %v1208, %v1209
      %v1268 = vsel %vm1238, %v1207, %v1208
      %v1269 = vsel %vm1238, %v1206, %v1207
      %v1270 = vsel %vm1238, %v1205, %v1206
      %v1271 = vsel %vm1238, %v1204, %v1205
      %v1272 = vsel %vm1238, %v1203, %v1204
      %v1273 = vsel %vm1238, %v1202, %v1203
      %v1274 = vsel %vm1238, %v1237, %v1202
      %v1275 = vsel %vm902, 1, 0
      %v1276 = vsel %vm903, 1, 0
      %v1277 = vsel %vm904, 1, 0
      %v1278 = vsel %vm905, 1, 0
      %v1279 = vsel %vm906, 1, 0
      %v1280 = vsel %vm907, 1, 0
      %v1281 = vsel %vm908, 1, 0
      %v1282 = vsel %vm909, 1, 0
      %v1283 = vsel %vm910, 1, 0
      %v1284 = vsel %vm911, 1, 0
      %v1285 = vsel %vm912, 1, 0
      %v1286 = vsel %vm913, 1, 0
      %v1287 = vsel %vm914, 1, 0
      %v1288 = vsel %vm915, 1, 0
      %v1289 = vsel %vm916, 1, 0
      %v1290 = vsel %vm917, 1, 0
      %v1291 = vsel %vm918, 1, 0
      %v1292 = vsel %vm919, 1, 0
      %v1293 = vsel %vm920, 1, 0
      %v1294 = vsel %vm921, 1, 0
      %v1295 = vsel %vm922, 1, 0
      %v1296 = vsel %vm923, 1, 0
      %v1297 = vsel %vm924, 1, 0
      %v1298 = vsel %vm925, 1, 0
      %v1299 = vsel %vm926, 1, 0
      %v1300 = vsel %vm927, 1, 0
      %v1301 = vsel %vm928, 1, 0
      %v1302 = vsel %vm929, 1, 0
      %v1303 = vsel %vm930, 1, 0
      %v1304 = vsel %vm931, 1, 0
      %v1305 = vsel %vm932, 1, 0
      %v1306 = vsel %vm933, 1, 0
      %v1307 = vsel %vm934, 1, 0
      %v1308 = vsel %vm935, 1, 0
      %v1309 = vsel %vm936, 1, 0
      %v1310 = vsel %vm937, 1, 0
      %vm1311 = vcmp.eq.s32.totalorder %v1275, 1
      %vm1312 = vcmp.eq.s32.totalorder %v1276, 1
      %vm1313 = vcmp.eq.s32.totalorder %v1277, 1
      %vm1314 = vcmp.eq.s32.totalorder %v1278, 1
      %vm1315 = vcmp.eq.s32.totalorder %v1279, 1
      %vm1316 = vcmp.eq.s32.totalorder %v1280, 1
      %vm1317 = vcmp.eq.s32.totalorder %v1281, 1
      %vm1318 = vcmp.eq.s32.totalorder %v1282, 1
      %vm1319 = vcmp.eq.s32.totalorder %v1283, 1
      %vm1320 = vcmp.eq.s32.totalorder %v1284, 1
      %vm1321 = vcmp.eq.s32.totalorder %v1285, 1
      %vm1322 = vcmp.eq.s32.totalorder %v1286, 1
      %vm1323 = vcmp.eq.s32.totalorder %v1287, 1
      %vm1324 = vcmp.eq.s32.totalorder %v1288, 1
      %vm1325 = vcmp.eq.s32.totalorder %v1289, 1
      %vm1326 = vcmp.eq.s32.totalorder %v1290, 1
      %vm1327 = vcmp.eq.s32.totalorder %v1291, 1
      %vm1328 = vcmp.eq.s32.totalorder %v1292, 1
      %vm1329 = vcmp.eq.s32.totalorder %v1293, 1
      %vm1330 = vcmp.eq.s32.totalorder %v1294, 1
      %vm1331 = vcmp.eq.s32.totalorder %v1295, 1
      %vm1332 = vcmp.eq.s32.totalorder %v1296, 1
      %vm1333 = vcmp.eq.s32.totalorder %v1297, 1
      %vm1334 = vcmp.eq.s32.totalorder %v1298, 1
      %vm1335 = vcmp.eq.s32.totalorder %v1299, 1
      %vm1336 = vcmp.eq.s32.totalorder %v1300, 1
      %vm1337 = vcmp.eq.s32.totalorder %v1301, 1
      %vm1338 = vcmp.eq.s32.totalorder %v1302, 1
      %vm1339 = vcmp.eq.s32.totalorder %v1303, 1
      %vm1340 = vcmp.eq.s32.totalorder %v1304, 1
      %vm1341 = vcmp.eq.s32.totalorder %v1305, 1
      %vm1342 = vcmp.eq.s32.totalorder %v1306, 1
      %vm1343 = vcmp.eq.s32.totalorder %v1307, 1
      %vm1344 = vcmp.eq.s32.totalorder %v1308, 1
      %vm1345 = vcmp.eq.s32.totalorder %v1309, 1
      %vm1346 = vcmp.eq.s32.totalorder %v1310, 1
      %v1347 = vsel %vm1311, %v1274, 0.0
      %v1348 = vsel %vm1312, %v1273, 0.0
      %v1349 = vsel %vm1313, %v1272, 0.0
      %v1350 = vsel %vm1314, %v1271, 0.0
      %v1351 = vsel %vm1315, %v1270, 0.0
      %v1352 = vsel %vm1316, %v1269, 0.0
      %v1353 = vsel %vm1317, %v1268, 0.0
      %v1354 = vsel %vm1318, %v1267, 0.0
      %v1355 = vsel %vm1319, %v1266, 0.0
      %v1356 = vsel %vm1320, %v1265, 0.0
      %v1357 = vsel %vm1321, %v1264, 0.0
      %v1358 = vsel %vm1322, %v1263, 0.0
      %v1359 = vsel %vm1323, %v1262, 0.0
      %v1360 = vsel %vm1324, %v1261, 0.0
      %v1361 = vsel %vm1325, %v1260, 0.0
      %v1362 = vsel %vm1326, %v1259, 0.0
      %v1363 = vsel %vm1327, %v1258, 0.0
      %v1364 = vsel %vm1328, %v1257, 0.0
      %v1365 = vsel %vm1329, %v1256, 0.0
      %v1366 = vsel %vm1330, %v1255, 0.0
      %v1367 = vsel %vm1331, %v1254, 0.0
      %v1368 = vsel %vm1332, %v1253, 0.0
      %v1369 = vsel %vm1333, %v1252, 0.0
      %v1370 = vsel %vm1334, %v1251, 0.0
      %v1371 = vsel %vm1335, %v1250, 0.0
      %v1372 = vsel %vm1336, %v1249, 0.0
      %v1373 = vsel %vm1337, %v1248, 0.0
      %v1374 = vsel %vm1338, %v1247, 0.0
      %v1375 = vsel %vm1339, %v1246, 0.0
      %v1376 = vsel %vm1340, %v1245, 0.0
      %v1377 = vsel %vm1341, %v1244, 0.0
      %v1378 = vsel %vm1342, %v1243, 0.0
      %v1379 = vsel %vm1343, %v1242, 0.0
      %v1380 = vsel %vm1344, %v1241, 0.0
      %v1381 = vsel %vm1345, %v1240, 0.0
      %v1382 = vsel %vm1346, %v1239, 0.0
      %v1383 = vrot.slane %v1197, 1
      %v1384 = vrot.slane %v1198, 1
      %v1385 = vrot.slane %v1071, 1
      %v1386 = vrot.slane %v1074, 1
      %v1387 = vrot.slane %v1079, 1
      %v1388 = vrot.slane %v1082, 1
      %v1389 = vrot.slane %v1087, 1
      %v1390 = vrot.slane %v1090, 1
      %v1391 = vrot.slane %v1095, 1
      %v1392 = vrot.slane %v1098, 1
      %v1393 = vrot.slane %v1103, 1
      %v1394 = vrot.slane %v1106, 1
      %v1395 = vrot.slane %v1111, 1
      %v1396 = vrot.slane %v1114, 1
      %v1397 = vrot.slane %v1119, 1
      %v1398 = vrot.slane %v1122, 1
      %v1399 = vrot.slane %v1127, 1
      %v1400 = vrot.slane %v1130, 1
      %v1401 = vrot.slane %v1135, 1
      %v1402 = vrot.slane %v1138, 1
      %v1403 = vrot.slane %v1143, 1
      %v1404 = vrot.slane %v1146, 1
      %v1405 = vrot.slane %v1151, 1
      %v1406 = vrot.slane %v1154, 1
      %v1407 = vrot.slane %v1159, 1
      %v1408 = vrot.slane %v1162, 1
      %v1409 = vrot.slane %v1167, 1
      %v1410 = vrot.slane %v1170, 1
      %v1411 = vrot.slane %v1175, 1
      %v1412 = vrot.slane %v1178, 1
      %v1413 = vrot.slane %v1183, 1
      %v1414 = vrot.slane %v1186, 1
      %v1415 = vrot.slane %v1191, 1
      %v1416 = vrot.slane %v1194, 1
      %v1417 = vrot.slane %v1200, 1
      %v1418 = vrot.slane %v1201, 1
      %vm1419 = vcmp.lt.s32.totalorder %v434, 7
      %v1420 = vsel %vm1419, %v1417, %v1418
      %v1421 = vsel %vm1419, %v1416, %v1417
      %v1422 = vsel %vm1419, %v1415, %v1416
      %v1423 = vsel %vm1419, %v1414, %v1415
      %v1424 = vsel %vm1419, %v1413, %v1414
      %v1425 = vsel %vm1419, %v1412, %v1413
      %v1426 = vsel %vm1419, %v1411, %v1412
      %v1427 = vsel %vm1419, %v1410, %v1411
      %v1428 = vsel %vm1419, %v1409, %v1410
      %v1429 = vsel %vm1419, %v1408, %v1409
      %v1430 = vsel %vm1419, %v1407, %v1408
      %v1431 = vsel %vm1419, %v1406, %v1407
      %v1432 = vsel %vm1419, %v1405, %v1406
      %v1433 = vsel %vm1419, %v1404, %v1405
      %v1434 = vsel %vm1419, %v1403, %v1404
      %v1435 = vsel %vm1419, %v1402, %v1403
      %v1436 = vsel %vm1419, %v1401, %v1402
      %v1437 = vsel %vm1419, %v1400, %v1401
      %v1438 = vsel %vm1419, %v1399, %v1400
      %v1439 = vsel %vm1419, %v1398, %v1399
      %v1440 = vsel %vm1419, %v1397, %v1398
      %v1441 = vsel %vm1419, %v1396, %v1397
      %v1442 = vsel %vm1419, %v1395, %v1396
      %v1443 = vsel %vm1419, %v1394, %v1395
      %v1444 = vsel %vm1419, %v1393, %v1394
      %v1445 = vsel %vm1419, %v1392, %v1393
      %v1446 = vsel %vm1419, %v1391, %v1392
      %v1447 = vsel %vm1419, %v1390, %v1391
      %v1448 = vsel %vm1419, %v1389, %v1390
      %v1449 = vsel %vm1419, %v1388, %v1389
      %v1450 = vsel %vm1419, %v1387, %v1388
      %v1451 = vsel %vm1419, %v1386, %v1387
      %v1452 = vsel %vm1419, %v1385, %v1386
      %v1453 = vsel %vm1419, %v1384, %v1385
      %v1454 = vsel %vm1419, %v1383, %v1384
      %v1455 = vsel %vm1419, %v1418, %v1383
      %v1456 = vsel %vm938, 1, 0
      %v1457 = vsel %vm939, 1, 0
      %v1458 = vsel %vm940, 1, 0
      %v1459 = vsel %vm941, 1, 0
      %v1460 = vsel %vm942, 1, 0
      %v1461 = vsel %vm943, 1, 0
      %v1462 = vsel %vm944, 1, 0
      %v1463 = vsel %vm945, 1, 0
      %v1464 = vsel %vm946, 1, 0
      %v1465 = vsel %vm947, 1, 0
      %v1466 = vsel %vm948, 1, 0
      %v1467 = vsel %vm949, 1, 0
      %v1468 = vsel %vm950, 1, 0
      %v1469 = vsel %vm951, 1, 0
      %v1470 = vsel %vm952, 1, 0
      %v1471 = vsel %vm953, 1, 0
      %v1472 = vsel %vm954, 1, 0
      %v1473 = vsel %vm955, 1, 0
      %v1474 = vsel %vm956, 1, 0
      %v1475 = vsel %vm957, 1, 0
      %v1476 = vsel %vm958, 1, 0
      %v1477 = vsel %vm959, 1, 0
      %v1478 = vsel %vm960, 1, 0
      %v1479 = vsel %vm961, 1, 0
      %v1480 = vsel %vm962, 1, 0
      %v1481 = vsel %vm963, 1, 0
      %v1482 = vsel %vm964, 1, 0
      %v1483 = vsel %vm965, 1, 0
      %v1484 = vsel %vm966, 1, 0
      %v1485 = vsel %vm967, 1, 0
      %v1486 = vsel %vm968, 1, 0
      %v1487 = vsel %vm969, 1, 0
      %v1488 = vsel %vm970, 1, 0
      %v1489 = vsel %vm971, 1, 0
      %v1490 = vsel %vm972, 1, 0
      %v1491 = vsel %vm973, 1, 0
      %vm1492 = vcmp.eq.s32.totalorder %v1456, 1
      %vm1493 = vcmp.eq.s32.totalorder %v1457, 1
      %vm1494 = vcmp.eq.s32.totalorder %v1458, 1
      %vm1495 = vcmp.eq.s32.totalorder %v1459, 1
      %vm1496 = vcmp.eq.s32.totalorder %v1460, 1
      %vm1497 = vcmp.eq.s32.totalorder %v1461, 1
      %vm1498 = vcmp.eq.s32.totalorder %v1462, 1
      %vm1499 = vcmp.eq.s32.totalorder %v1463, 1
      %vm1500 = vcmp.eq.s32.totalorder %v1464, 1
      %vm1501 = vcmp.eq.s32.totalorder %v1465, 1
      %vm1502 = vcmp.eq.s32.totalorder %v1466, 1
      %vm1503 = vcmp.eq.s32.totalorder %v1467, 1
      %vm1504 = vcmp.eq.s32.totalorder %v1468, 1
      %vm1505 = vcmp.eq.s32.totalorder %v1469, 1
      %vm1506 = vcmp.eq.s32.totalorder %v1470, 1
      %vm1507 = vcmp.eq.s32.totalorder %v1471, 1
      %vm1508 = vcmp.eq.s32.totalorder %v1472, 1
      %vm1509 = vcmp.eq.s32.totalorder %v1473, 1
      %vm1510 = vcmp.eq.s32.totalorder %v1474, 1
      %vm1511 = vcmp.eq.s32.totalorder %v1475, 1
      %vm1512 = vcmp.eq.s32.totalorder %v1476, 1
      %vm1513 = vcmp.eq.s32.totalorder %v1477, 1
      %vm1514 = vcmp.eq.s32.totalorder %v1478, 1
      %vm1515 = vcmp.eq.s32.totalorder %v1479, 1
      %vm1516 = vcmp.eq.s32.totalorder %v1480, 1
      %vm1517 = vcmp.eq.s32.totalorder %v1481, 1
      %vm1518 = vcmp.eq.s32.totalorder %v1482, 1
      %vm1519 = vcmp.eq.s32.totalorder %v1483, 1
      %vm1520 = vcmp.eq.s32.totalorder %v1484, 1
      %vm1521 = vcmp.eq.s32.totalorder %v1485, 1
      %vm1522 = vcmp.eq.s32.totalorder %v1486, 1
      %vm1523 = vcmp.eq.s32.totalorder %v1487, 1
      %vm1524 = vcmp.eq.s32.totalorder %v1488, 1
      %vm1525 = vcmp.eq.s32.totalorder %v1489, 1
      %vm1526 = vcmp.eq.s32.totalorder %v1490, 1
      %vm1527 = vcmp.eq.s32.totalorder %v1491, 1
      %v1528 = vsel %vm1492, %v1454, 0.0
      %v1529 = vsel %vm1493, %v1453, 0.0
      %v1530 = vsel %vm1494, %v1452, 0.0
      %v1531 = vsel %vm1495, %v1451, 0.0
      %v1532 = vsel %vm1496, %v1450, 0.0
      %v1533 = vsel %vm1497, %v1449, 0.0
      %v1534 = vsel %vm1498, %v1448, 0.0
      %v1535 = vsel %vm1499, %v1447, 0.0
      %v1536 = vsel %vm1500, %v1446, 0.0
      %v1537 = vsel %vm1501, %v1445, 0.0
      %v1538 = vsel %vm1502, %v1444, 0.0
      %v1539 = vsel %vm1503, %v1443, 0.0
      %v1540 = vsel %vm1504, %v1442, 0.0
      %v1541 = vsel %vm1505, %v1441, 0.0
      %v1542 = vsel %vm1506, %v1440, 0.0
      %v1543 = vsel %vm1507, %v1439, 0.0
      %v1544 = vsel %vm1508, %v1438, 0.0
      %v1545 = vsel %vm1509, %v1437, 0.0
      %v1546 = vsel %vm1510, %v1436, 0.0
      %v1547 = vsel %vm1511, %v1435, 0.0
      %v1548 = vsel %vm1512, %v1434, 0.0
      %v1549 = vsel %vm1513, %v1433, 0.0
      %v1550 = vsel %vm1514, %v1432, 0.0
      %v1551 = vsel %vm1515, %v1431, 0.0
      %v1552 = vsel %vm1516, %v1430, 0.0
      %v1553 = vsel %vm1517, %v1429, 0.0
      %v1554 = vsel %vm1518, %v1428, 0.0
      %v1555 = vsel %vm1519, %v1427, 0.0
      %v1556 = vsel %vm1520, %v1426, 0.0
      %v1557 = vsel %vm1521, %v1425, 0.0
      %v1558 = vsel %vm1522, %v1424, 0.0
      %v1559 = vsel %vm1523, %v1423, 0.0
      %v1560 = vsel %vm1524, %v1422, 0.0
      %v1561 = vsel %vm1525, %v1421, 0.0
      %v1562 = vsel %vm1526, %v1420, 0.0
      %v1563 = vsel %vm1527, %v1455, 0.0
      %v1564 = vld [vmem:[%s4] sm:$0xff]
      %v1565 = vld [vmem:[%s4 + $0x8] sm:$0x1]
      %v1566 = vlaneseq
      %v1567 = vshrl.u32 %v1566, 7
      %v1568 = vsub.s32 0, %v1567
      %v1569 = vrot.slane %v1564, %v1568
      %v1570 = vmul.f32 %v1347, %v1569
      %v1571 = vmul.f32 %v1348, %v1569
      %v1572 = vmul.f32 %v1349, %v1569
      %v1573 = vmul.f32 %v1350, %v1569
      %v1574 = vmul.f32 %v1351, %v1569
      %v1575 = vmul.f32 %v1352, %v1569
      %v1576 = vmul.f32 %v1353, %v1569
      %v1577 = vmul.f32 %v1354, %v1569
      %v1578 = vmul.f32 %v1355, %v1569
      %v1579 = vmul.f32 %v1356, %v1569
      %v1580 = vmul.f32 %v1357, %v1569
      %v1581 = vmul.f32 %v1358, %v1569
      %v1582 = vmul.f32 %v1359, %v1569
      %v1583 = vmul.f32 %v1360, %v1569
      %v1584 = vmul.f32 %v1361, %v1569
      %v1585 = vmul.f32 %v1362, %v1569
      %v1586 = vmul.f32 %v1363, %v1569
      %v1587 = vmul.f32 %v1364, %v1569
      %v1588 = vmul.f32 %v1365, %v1569
      %v1589 = vmul.f32 %v1366, %v1569
      %v1590 = vmul.f32 %v1367, %v1569
      %v1591 = vmul.f32 %v1368, %v1569
      %v1592 = vmul.f32 %v1369, %v1569
      %v1593 = vmul.f32 %v1370, %v1569
      %v1594 = vmul.f32 %v1371, %v1569
      %v1595 = vmul.f32 %v1372, %v1569
      %v1596 = vmul.f32 %v1373, %v1569
      %v1597 = vmul.f32 %v1374, %v1569
      %v1598 = vmul.f32 %v1375, %v1569
      %v1599 = vmul.f32 %v1376, %v1569
      %v1600 = vmul.f32 %v1377, %v1569
      %v1601 = vmul.f32 %v1378, %v1569
      %v1602 = vlaneseq
      %v1603 = vshrl.u32 %v1602, 7
      %v1604 = vsub.s32 1, %v1603
      %v1605 = vrot.slane %v1564, %v1604
      %v1606 = vmul.f32 %v1197, %v1605
      %v1607 = vmul.f32 %v1198, %v1605
      %v1608 = vmul.f32 %v1071, %v1605
      %v1609 = vmul.f32 %v1074, %v1605
      %v1610 = vmul.f32 %v1079, %v1605
      %v1611 = vmul.f32 %v1082, %v1605
      %v1612 = vmul.f32 %v1087, %v1605
      %v1613 = vmul.f32 %v1090, %v1605
      %v1614 = vmul.f32 %v1095, %v1605
      %v1615 = vmul.f32 %v1098, %v1605
      %v1616 = vmul.f32 %v1103, %v1605
      %v1617 = vmul.f32 %v1106, %v1605
      %v1618 = vmul.f32 %v1111, %v1605
      %v1619 = vmul.f32 %v1114, %v1605
      %v1620 = vmul.f32 %v1119, %v1605
      %v1621 = vmul.f32 %v1122, %v1605
      %v1622 = vmul.f32 %v1127, %v1605
      %v1623 = vmul.f32 %v1130, %v1605
      %v1624 = vmul.f32 %v1135, %v1605
      %v1625 = vmul.f32 %v1138, %v1605
      %v1626 = vmul.f32 %v1143, %v1605
      %v1627 = vmul.f32 %v1146, %v1605
      %v1628 = vmul.f32 %v1151, %v1605
      %v1629 = vmul.f32 %v1154, %v1605
      %v1630 = vmul.f32 %v1159, %v1605
      %v1631 = vmul.f32 %v1162, %v1605
      %v1632 = vmul.f32 %v1167, %v1605
      %v1633 = vmul.f32 %v1170, %v1605
      %v1634 = vmul.f32 %v1175, %v1605
      %v1635 = vmul.f32 %v1178, %v1605
      %v1636 = vmul.f32 %v1183, %v1605
      %v1637 = vmul.f32 %v1186, %v1605
      %v1638 = vadd.f32 %v1570, %v1606
      %v1639 = vadd.f32 %v1571, %v1607
      %v1640 = vadd.f32 %v1572, %v1608
      %v1641 = vadd.f32 %v1573, %v1609
      %v1642 = vadd.f32 %v1574, %v1610
      %v1643 = vadd.f32 %v1575, %v1611
      %v1644 = vadd.f32 %v1576, %v1612
      %v1645 = vadd.f32 %v1577, %v1613
      %v1646 = vadd.f32 %v1578, %v1614
      %v1647 = vadd.f32 %v1579, %v1615
      %v1648 = vadd.f32 %v1580, %v1616
      %v1649 = vadd.f32 %v1581, %v1617
      %v1650 = vadd.f32 %v1582, %v1618
      %v1651 = vadd.f32 %v1583, %v1619
      %v1652 = vadd.f32 %v1584, %v1620
      %v1653 = vadd.f32 %v1585, %v1621
      %v1654 = vadd.f32 %v1586, %v1622
      %v1655 = vadd.f32 %v1587, %v1623
      %v1656 = vadd.f32 %v1588, %v1624
      %v1657 = vadd.f32 %v1589, %v1625
      %v1658 = vadd.f32 %v1590, %v1626
      %v1659 = vadd.f32 %v1591, %v1627
      %v1660 = vadd.f32 %v1592, %v1628
      %v1661 = vadd.f32 %v1593, %v1629
      %v1662 = vadd.f32 %v1594, %v1630
      %v1663 = vadd.f32 %v1595, %v1631
      %v1664 = vadd.f32 %v1596, %v1632
      %v1665 = vadd.f32 %v1597, %v1633
      %v1666 = vadd.f32 %v1598, %v1634
      %v1667 = vadd.f32 %v1599, %v1635
      %v1668 = vadd.f32 %v1600, %v1636
      %v1669 = vadd.f32 %v1601, %v1637
      %v1670 = vlaneseq
      %v1671 = vshrl.u32 %v1670, 7
      %v1672 = vsub.s32 2, %v1671
      %v1673 = vrot.slane %v1564, %v1672
      %v1674 = vmul.f32 %v1528, %v1673
      %v1675 = vmul.f32 %v1529, %v1673
      %v1676 = vmul.f32 %v1530, %v1673
      %v1677 = vmul.f32 %v1531, %v1673
      %v1678 = vmul.f32 %v1532, %v1673
      %v1679 = vmul.f32 %v1533, %v1673
      %v1680 = vmul.f32 %v1534, %v1673
      %v1681 = vmul.f32 %v1535, %v1673
      %v1682 = vmul.f32 %v1536, %v1673
      %v1683 = vmul.f32 %v1537, %v1673
      %v1684 = vmul.f32 %v1538, %v1673
      %v1685 = vmul.f32 %v1539, %v1673
      %v1686 = vmul.f32 %v1540, %v1673
      %v1687 = vmul.f32 %v1541, %v1673
      %v1688 = vmul.f32 %v1542, %v1673
      %v1689 = vmul.f32 %v1543, %v1673
      %v1690 = vmul.f32 %v1544, %v1673
      %v1691 = vmul.f32 %v1545, %v1673
      %v1692 = vmul.f32 %v1546, %v1673
      %v1693 = vmul.f32 %v1547, %v1673
      %v1694 = vmul.f32 %v1548, %v1673
      %v1695 = vmul.f32 %v1549, %v1673
      %v1696 = vmul.f32 %v1550, %v1673
      %v1697 = vmul.f32 %v1551, %v1673
      %v1698 = vmul.f32 %v1552, %v1673
      %v1699 = vmul.f32 %v1553, %v1673
      %v1700 = vmul.f32 %v1554, %v1673
      %v1701 = vmul.f32 %v1555, %v1673
      %v1702 = vmul.f32 %v1556, %v1673
      %v1703 = vmul.f32 %v1557, %v1673
      %v1704 = vmul.f32 %v1558, %v1673
      %v1705 = vmul.f32 %v1559, %v1673
      %v1706 = vadd.f32 %v1638, %v1674
      %v1707 = vadd.f32 %v1639, %v1675
      %v1708 = vadd.f32 %v1640, %v1676
      %v1709 = vadd.f32 %v1641, %v1677
      %v1710 = vadd.f32 %v1642, %v1678
      %v1711 = vadd.f32 %v1643, %v1679
      %v1712 = vadd.f32 %v1644, %v1680
      %v1713 = vadd.f32 %v1645, %v1681
      %v1714 = vadd.f32 %v1646, %v1682
      %v1715 = vadd.f32 %v1647, %v1683
      %v1716 = vadd.f32 %v1648, %v1684
      %v1717 = vadd.f32 %v1649, %v1685
      %v1718 = vadd.f32 %v1650, %v1686
      %v1719 = vadd.f32 %v1651, %v1687
      %v1720 = vadd.f32 %v1652, %v1688
      %v1721 = vadd.f32 %v1653, %v1689
      %v1722 = vadd.f32 %v1654, %v1690
      %v1723 = vadd.f32 %v1655, %v1691
      %v1724 = vadd.f32 %v1656, %v1692
      %v1725 = vadd.f32 %v1657, %v1693
      %v1726 = vadd.f32 %v1658, %v1694
      %v1727 = vadd.f32 %v1659, %v1695
      %v1728 = vadd.f32 %v1660, %v1696
      %v1729 = vadd.f32 %v1661, %v1697
      %v1730 = vadd.f32 %v1662, %v1698
      %v1731 = vadd.f32 %v1663, %v1699
      %v1732 = vadd.f32 %v1664, %v1700
      %v1733 = vadd.f32 %v1665, %v1701
      %v1734 = vadd.f32 %v1666, %v1702
      %v1735 = vadd.f32 %v1667, %v1703
      %v1736 = vadd.f32 %v1668, %v1704
      %v1737 = vadd.f32 %v1669, %v1705
      %v1738 = vlaneseq
      %v1739 = vshrl.u32 %v1738, 7
      %v1740 = vsub.s32 3, %v1739
      %v1741 = vrot.slane %v1564, %v1740
      %v1742 = vmul.f32 %v1349, %v1741
      %v1743 = vmul.f32 %v1350, %v1741
      %v1744 = vmul.f32 %v1351, %v1741
      %v1745 = vmul.f32 %v1352, %v1741
      %v1746 = vmul.f32 %v1353, %v1741
      %v1747 = vmul.f32 %v1354, %v1741
      %v1748 = vmul.f32 %v1355, %v1741
      %v1749 = vmul.f32 %v1356, %v1741
      %v1750 = vmul.f32 %v1357, %v1741
      %v1751 = vmul.f32 %v1358, %v1741
      %v1752 = vmul.f32 %v1359, %v1741
      %v1753 = vmul.f32 %v1360, %v1741
      %v1754 = vmul.f32 %v1361, %v1741
      %v1755 = vmul.f32 %v1362, %v1741
      %v1756 = vmul.f32 %v1363, %v1741
      %v1757 = vmul.f32 %v1364, %v1741
      %v1758 = vmul.f32 %v1365, %v1741
      %v1759 = vmul.f32 %v1366, %v1741
      %v1760 = vmul.f32 %v1367, %v1741
      %v1761 = vmul.f32 %v1368, %v1741
      %v1762 = vmul.f32 %v1369, %v1741
      %v1763 = vmul.f32 %v1370, %v1741
      %v1764 = vmul.f32 %v1371, %v1741
      %v1765 = vmul.f32 %v1372, %v1741
      %v1766 = vmul.f32 %v1373, %v1741
      %v1767 = vmul.f32 %v1374, %v1741
      %v1768 = vmul.f32 %v1375, %v1741
      %v1769 = vmul.f32 %v1376, %v1741
      %v1770 = vmul.f32 %v1377, %v1741
      %v1771 = vmul.f32 %v1378, %v1741
      %v1772 = vmul.f32 %v1379, %v1741
      %v1773 = vmul.f32 %v1380, %v1741
      %v1774 = vadd.f32 %v1706, %v1742
      %v1775 = vadd.f32 %v1707, %v1743
      %v1776 = vadd.f32 %v1708, %v1744
      %v1777 = vadd.f32 %v1709, %v1745
      %v1778 = vadd.f32 %v1710, %v1746
      %v1779 = vadd.f32 %v1711, %v1747
      %v1780 = vadd.f32 %v1712, %v1748
      %v1781 = vadd.f32 %v1713, %v1749
      %v1782 = vadd.f32 %v1714, %v1750
      %v1783 = vadd.f32 %v1715, %v1751
      %v1784 = vadd.f32 %v1716, %v1752
      %v1785 = vadd.f32 %v1717, %v1753
      %v1786 = vadd.f32 %v1718, %v1754
      %v1787 = vadd.f32 %v1719, %v1755
      %v1788 = vadd.f32 %v1720, %v1756
      %v1789 = vadd.f32 %v1721, %v1757
      %v1790 = vadd.f32 %v1722, %v1758
      %v1791 = vadd.f32 %v1723, %v1759
      %v1792 = vadd.f32 %v1724, %v1760
      %v1793 = vadd.f32 %v1725, %v1761
      %v1794 = vadd.f32 %v1726, %v1762
      %v1795 = vadd.f32 %v1727, %v1763
      %v1796 = vadd.f32 %v1728, %v1764
      %v1797 = vadd.f32 %v1729, %v1765
      %v1798 = vadd.f32 %v1730, %v1766
      %v1799 = vadd.f32 %v1731, %v1767
      %v1800 = vadd.f32 %v1732, %v1768
      %v1801 = vadd.f32 %v1733, %v1769
      %v1802 = vadd.f32 %v1734, %v1770
      %v1803 = vadd.f32 %v1735, %v1771
      %v1804 = vadd.f32 %v1736, %v1772
      %v1805 = vadd.f32 %v1737, %v1773
      %v1806 = vlaneseq
      %v1807 = vshrl.u32 %v1806, 7
      %v1808 = vsub.s32 4, %v1807
      %v1809 = vrot.slane %v1564, %v1808
      %v1810 = vmul.f32 %v1071, %v1809
      %v1811 = vmul.f32 %v1074, %v1809
      %v1812 = vmul.f32 %v1079, %v1809
      %v1813 = vmul.f32 %v1082, %v1809
      %v1814 = vmul.f32 %v1087, %v1809
      %v1815 = vmul.f32 %v1090, %v1809
      %v1816 = vmul.f32 %v1095, %v1809
      %v1817 = vmul.f32 %v1098, %v1809
      %v1818 = vmul.f32 %v1103, %v1809
      %v1819 = vmul.f32 %v1106, %v1809
      %v1820 = vmul.f32 %v1111, %v1809
      %v1821 = vmul.f32 %v1114, %v1809
      %v1822 = vmul.f32 %v1119, %v1809
      %v1823 = vmul.f32 %v1122, %v1809
      %v1824 = vmul.f32 %v1127, %v1809
      %v1825 = vmul.f32 %v1130, %v1809
      %v1826 = vmul.f32 %v1135, %v1809
      %v1827 = vmul.f32 %v1138, %v1809
      %v1828 = vmul.f32 %v1143, %v1809
      %v1829 = vmul.f32 %v1146, %v1809
      %v1830 = vmul.f32 %v1151, %v1809
      %v1831 = vmul.f32 %v1154, %v1809
      %v1832 = vmul.f32 %v1159, %v1809
      %v1833 = vmul.f32 %v1162, %v1809
      %v1834 = vmul.f32 %v1167, %v1809
      %v1835 = vmul.f32 %v1170, %v1809
      %v1836 = vmul.f32 %v1175, %v1809
      %v1837 = vmul.f32 %v1178, %v1809
      %v1838 = vmul.f32 %v1183, %v1809
      %v1839 = vmul.f32 %v1186, %v1809
      %v1840 = vmul.f32 %v1191, %v1809
      %v1841 = vmul.f32 %v1194, %v1809
      %v1842 = vadd.f32 %v1774, %v1810
      %v1843 = vadd.f32 %v1775, %v1811
      %v1844 = vadd.f32 %v1776, %v1812
      %v1845 = vadd.f32 %v1777, %v1813
      %v1846 = vadd.f32 %v1778, %v1814
      %v1847 = vadd.f32 %v1779, %v1815
      %v1848 = vadd.f32 %v1780, %v1816
      %v1849 = vadd.f32 %v1781, %v1817
      %v1850 = vadd.f32 %v1782, %v1818
      %v1851 = vadd.f32 %v1783, %v1819
      %v1852 = vadd.f32 %v1784, %v1820
      %v1853 = vadd.f32 %v1785, %v1821
      %v1854 = vadd.f32 %v1786, %v1822
      %v1855 = vadd.f32 %v1787, %v1823
      %v1856 = vadd.f32 %v1788, %v1824
      %v1857 = vadd.f32 %v1789, %v1825
      %v1858 = vadd.f32 %v1790, %v1826
      %v1859 = vadd.f32 %v1791, %v1827
      %v1860 = vadd.f32 %v1792, %v1828
      %v1861 = vadd.f32 %v1793, %v1829
      %v1862 = vadd.f32 %v1794, %v1830
      %v1863 = vadd.f32 %v1795, %v1831
      %v1864 = vadd.f32 %v1796, %v1832
      %v1865 = vadd.f32 %v1797, %v1833
      %v1866 = vadd.f32 %v1798, %v1834
      %v1867 = vadd.f32 %v1799, %v1835
      %v1868 = vadd.f32 %v1800, %v1836
      %v1869 = vadd.f32 %v1801, %v1837
      %v1870 = vadd.f32 %v1802, %v1838
      %v1871 = vadd.f32 %v1803, %v1839
      %v1872 = vadd.f32 %v1804, %v1840
      %v1873 = vadd.f32 %v1805, %v1841
      %v1874 = vlaneseq
      %v1875 = vshrl.u32 %v1874, 7
      %v1876 = vsub.s32 5, %v1875
      %v1877 = vrot.slane %v1564, %v1876
      %v1878 = vmul.f32 %v1530, %v1877
      %v1879 = vmul.f32 %v1531, %v1877
      %v1880 = vmul.f32 %v1532, %v1877
      %v1881 = vmul.f32 %v1533, %v1877
      %v1882 = vmul.f32 %v1534, %v1877
      %v1883 = vmul.f32 %v1535, %v1877
      %v1884 = vmul.f32 %v1536, %v1877
      %v1885 = vmul.f32 %v1537, %v1877
      %v1886 = vmul.f32 %v1538, %v1877
      %v1887 = vmul.f32 %v1539, %v1877
      %v1888 = vmul.f32 %v1540, %v1877
      %v1889 = vmul.f32 %v1541, %v1877
      %v1890 = vmul.f32 %v1542, %v1877
      %v1891 = vmul.f32 %v1543, %v1877
      %v1892 = vmul.f32 %v1544, %v1877
      %v1893 = vmul.f32 %v1545, %v1877
      %v1894 = vmul.f32 %v1546, %v1877
      %v1895 = vmul.f32 %v1547, %v1877
      %v1896 = vmul.f32 %v1548, %v1877
      %v1897 = vmul.f32 %v1549, %v1877
      %v1898 = vmul.f32 %v1550, %v1877
      %v1899 = vmul.f32 %v1551, %v1877
      %v1900 = vmul.f32 %v1552, %v1877
      %v1901 = vmul.f32 %v1553, %v1877
      %v1902 = vmul.f32 %v1554, %v1877
      %v1903 = vmul.f32 %v1555, %v1877
      %v1904 = vmul.f32 %v1556, %v1877
      %v1905 = vmul.f32 %v1557, %v1877
      %v1906 = vmul.f32 %v1558, %v1877
      %v1907 = vmul.f32 %v1559, %v1877
      %v1908 = vmul.f32 %v1560, %v1877
      %v1909 = vmul.f32 %v1561, %v1877
      %v1910 = vadd.f32 %v1842, %v1878
      %v1911 = vadd.f32 %v1843, %v1879
      %v1912 = vadd.f32 %v1844, %v1880
      %v1913 = vadd.f32 %v1845, %v1881
      %v1914 = vadd.f32 %v1846, %v1882
      %v1915 = vadd.f32 %v1847, %v1883
      %v1916 = vadd.f32 %v1848, %v1884
      %v1917 = vadd.f32 %v1849, %v1885
      %v1918 = vadd.f32 %v1850, %v1886
      %v1919 = vadd.f32 %v1851, %v1887
      %v1920 = vadd.f32 %v1852, %v1888
      %v1921 = vadd.f32 %v1853, %v1889
      %v1922 = vadd.f32 %v1854, %v1890
      %v1923 = vadd.f32 %v1855, %v1891
      %v1924 = vadd.f32 %v1856, %v1892
      %v1925 = vadd.f32 %v1857, %v1893
      %v1926 = vadd.f32 %v1858, %v1894
      %v1927 = vadd.f32 %v1859, %v1895
      %v1928 = vadd.f32 %v1860, %v1896
      %v1929 = vadd.f32 %v1861, %v1897
      %v1930 = vadd.f32 %v1862, %v1898
      %v1931 = vadd.f32 %v1863, %v1899
      %v1932 = vadd.f32 %v1864, %v1900
      %v1933 = vadd.f32 %v1865, %v1901
      %v1934 = vadd.f32 %v1866, %v1902
      %v1935 = vadd.f32 %v1867, %v1903
      %v1936 = vadd.f32 %v1868, %v1904
      %v1937 = vadd.f32 %v1869, %v1905
      %v1938 = vadd.f32 %v1870, %v1906
      %v1939 = vadd.f32 %v1871, %v1907
      %v1940 = vadd.f32 %v1872, %v1908
      %v1941 = vadd.f32 %v1873, %v1909
      %v1942 = vlaneseq
      %v1943 = vshrl.u32 %v1942, 7
      %v1944 = vsub.s32 6, %v1943
      %v1945 = vrot.slane %v1564, %v1944
      %v1946 = vmul.f32 %v1351, %v1945
      %v1947 = vmul.f32 %v1352, %v1945
      %v1948 = vmul.f32 %v1353, %v1945
      %v1949 = vmul.f32 %v1354, %v1945
      %v1950 = vmul.f32 %v1355, %v1945
      %v1951 = vmul.f32 %v1356, %v1945
      %v1952 = vmul.f32 %v1357, %v1945
      %v1953 = vmul.f32 %v1358, %v1945
      %v1954 = vmul.f32 %v1359, %v1945
      %v1955 = vmul.f32 %v1360, %v1945
      %v1956 = vmul.f32 %v1361, %v1945
      %v1957 = vmul.f32 %v1362, %v1945
      %v1958 = vmul.f32 %v1363, %v1945
      %v1959 = vmul.f32 %v1364, %v1945
      %v1960 = vmul.f32 %v1365, %v1945
      %v1961 = vmul.f32 %v1366, %v1945
      %v1962 = vmul.f32 %v1367, %v1945
      %v1963 = vmul.f32 %v1368, %v1945
      %v1964 = vmul.f32 %v1369, %v1945
      %v1965 = vmul.f32 %v1370, %v1945
      %v1966 = vmul.f32 %v1371, %v1945
      %v1967 = vmul.f32 %v1372, %v1945
      %v1968 = vmul.f32 %v1373, %v1945
      %v1969 = vmul.f32 %v1374, %v1945
      %v1970 = vmul.f32 %v1375, %v1945
      %v1971 = vmul.f32 %v1376, %v1945
      %v1972 = vmul.f32 %v1377, %v1945
      %v1973 = vmul.f32 %v1378, %v1945
      %v1974 = vmul.f32 %v1379, %v1945
      %v1975 = vmul.f32 %v1380, %v1945
      %v1976 = vmul.f32 %v1381, %v1945
      %v1977 = vmul.f32 %v1382, %v1945
      %v1978 = vadd.f32 %v1910, %v1946
      %v1979 = vadd.f32 %v1911, %v1947
      %v1980 = vadd.f32 %v1912, %v1948
      %v1981 = vadd.f32 %v1913, %v1949
      %v1982 = vadd.f32 %v1914, %v1950
      %v1983 = vadd.f32 %v1915, %v1951
      %v1984 = vadd.f32 %v1916, %v1952
      %v1985 = vadd.f32 %v1917, %v1953
      %v1986 = vadd.f32 %v1918, %v1954
      %v1987 = vadd.f32 %v1919, %v1955
      %v1988 = vadd.f32 %v1920, %v1956
      %v1989 = vadd.f32 %v1921, %v1957
      %v1990 = vadd.f32 %v1922, %v1958
      %v1991 = vadd.f32 %v1923, %v1959
      %v1992 = vadd.f32 %v1924, %v1960
      %v1993 = vadd.f32 %v1925, %v1961
      %v1994 = vadd.f32 %v1926, %v1962
      %v1995 = vadd.f32 %v1927, %v1963
      %v1996 = vadd.f32 %v1928, %v1964
      %v1997 = vadd.f32 %v1929, %v1965
      %v1998 = vadd.f32 %v1930, %v1966
      %v1999 = vadd.f32 %v1931, %v1967
      %v2000 = vadd.f32 %v1932, %v1968
      %v2001 = vadd.f32 %v1933, %v1969
      %v2002 = vadd.f32 %v1934, %v1970
      %v2003 = vadd.f32 %v1935, %v1971
      %v2004 = vadd.f32 %v1936, %v1972
      %v2005 = vadd.f32 %v1937, %v1973
      %v2006 = vadd.f32 %v1938, %v1974
      %v2007 = vadd.f32 %v1939, %v1975
      %v2008 = vadd.f32 %v1940, %v1976
      %v2009 = vadd.f32 %v1941, %v1977
      %v2010 = vlaneseq
      %v2011 = vshrl.u32 %v2010, 7
      %v2012 = vsub.s32 7, %v2011
      %v2013 = vrot.slane %v1564, %v2012
      %v2014 = vmul.f32 %v1079, %v2013
      %v2015 = vmul.f32 %v1082, %v2013
      %v2016 = vmul.f32 %v1087, %v2013
      %v2017 = vmul.f32 %v1090, %v2013
      %v2018 = vmul.f32 %v1095, %v2013
      %v2019 = vmul.f32 %v1098, %v2013
      %v2020 = vmul.f32 %v1103, %v2013
      %v2021 = vmul.f32 %v1106, %v2013
      %v2022 = vmul.f32 %v1111, %v2013
      %v2023 = vmul.f32 %v1114, %v2013
      %v2024 = vmul.f32 %v1119, %v2013
      %v2025 = vmul.f32 %v1122, %v2013
      %v2026 = vmul.f32 %v1127, %v2013
      %v2027 = vmul.f32 %v1130, %v2013
      %v2028 = vmul.f32 %v1135, %v2013
      %v2029 = vmul.f32 %v1138, %v2013
      %v2030 = vmul.f32 %v1143, %v2013
      %v2031 = vmul.f32 %v1146, %v2013
      %v2032 = vmul.f32 %v1151, %v2013
      %v2033 = vmul.f32 %v1154, %v2013
      %v2034 = vmul.f32 %v1159, %v2013
      %v2035 = vmul.f32 %v1162, %v2013
      %v2036 = vmul.f32 %v1167, %v2013
      %v2037 = vmul.f32 %v1170, %v2013
      %v2038 = vmul.f32 %v1175, %v2013
      %v2039 = vmul.f32 %v1178, %v2013
      %v2040 = vmul.f32 %v1183, %v2013
      %v2041 = vmul.f32 %v1186, %v2013
      %v2042 = vmul.f32 %v1191, %v2013
      %v2043 = vmul.f32 %v1194, %v2013
      %v2044 = vmul.f32 %v1200, %v2013
      %v2045 = vmul.f32 %v1201, %v2013
      %v2046 = vadd.f32 %v1978, %v2014
      %v2047 = vadd.f32 %v1979, %v2015
      %v2048 = vadd.f32 %v1980, %v2016
      %v2049 = vadd.f32 %v1981, %v2017
      %v2050 = vadd.f32 %v1982, %v2018
      %v2051 = vadd.f32 %v1983, %v2019
      %v2052 = vadd.f32 %v1984, %v2020
      %v2053 = vadd.f32 %v1985, %v2021
      %v2054 = vadd.f32 %v1986, %v2022
      %v2055 = vadd.f32 %v1987, %v2023
      %v2056 = vadd.f32 %v1988, %v2024
      %v2057 = vadd.f32 %v1989, %v2025
      %v2058 = vadd.f32 %v1990, %v2026
      %v2059 = vadd.f32 %v1991, %v2027
      %v2060 = vadd.f32 %v1992, %v2028
      %v2061 = vadd.f32 %v1993, %v2029
      %v2062 = vadd.f32 %v1994, %v2030
      %v2063 = vadd.f32 %v1995, %v2031
      %v2064 = vadd.f32 %v1996, %v2032
      %v2065 = vadd.f32 %v1997, %v2033
      %v2066 = vadd.f32 %v1998, %v2034
      %v2067 = vadd.f32 %v1999, %v2035
      %v2068 = vadd.f32 %v2000, %v2036
      %v2069 = vadd.f32 %v2001, %v2037
      %v2070 = vadd.f32 %v2002, %v2038
      %v2071 = vadd.f32 %v2003, %v2039
      %v2072 = vadd.f32 %v2004, %v2040
      %v2073 = vadd.f32 %v2005, %v2041
      %v2074 = vadd.f32 %v2006, %v2042
      %v2075 = vadd.f32 %v2007, %v2043
      %v2076 = vadd.f32 %v2008, %v2044
      %v2077 = vadd.f32 %v2009, %v2045
      %v2078 = vlaneseq
      %v2079 = vshrl.u32 %v2078, 7
      %v2080 = vsub.s32 0, %v2079
      %v2081 = vrot.slane %v1565, %v2080
      %v2082 = vmul.f32 %v1532, %v2081
      %v2083 = vmul.f32 %v1533, %v2081
      %v2084 = vmul.f32 %v1534, %v2081
      %v2085 = vmul.f32 %v1535, %v2081
      %v2086 = vmul.f32 %v1536, %v2081
      %v2087 = vmul.f32 %v1537, %v2081
      %v2088 = vmul.f32 %v1538, %v2081
      %v2089 = vmul.f32 %v1539, %v2081
      %v2090 = vmul.f32 %v1540, %v2081
      %v2091 = vmul.f32 %v1541, %v2081
      %v2092 = vmul.f32 %v1542, %v2081
      %v2093 = vmul.f32 %v1543, %v2081
      %v2094 = vmul.f32 %v1544, %v2081
      %v2095 = vmul.f32 %v1545, %v2081
      %v2096 = vmul.f32 %v1546, %v2081
      %v2097 = vmul.f32 %v1547, %v2081
      %v2098 = vmul.f32 %v1548, %v2081
      %v2099 = vmul.f32 %v1549, %v2081
      %v2100 = vmul.f32 %v1550, %v2081
      %v2101 = vmul.f32 %v1551, %v2081
      %v2102 = vmul.f32 %v1552, %v2081
      %v2103 = vmul.f32 %v1553, %v2081
      %v2104 = vmul.f32 %v1554, %v2081
      %v2105 = vmul.f32 %v1555, %v2081
      %v2106 = vmul.f32 %v1556, %v2081
      %v2107 = vmul.f32 %v1557, %v2081
      %v2108 = vmul.f32 %v1558, %v2081
      %v2109 = vmul.f32 %v1559, %v2081
      %v2110 = vmul.f32 %v1560, %v2081
      %v2111 = vmul.f32 %v1561, %v2081
      %v2112 = vmul.f32 %v1562, %v2081
      %v2113 = vmul.f32 %v1563, %v2081
      %v2114 = vadd.f32 %v2046, %v2082
      %v2115 = vadd.f32 %v2047, %v2083
      %v2116 = vadd.f32 %v2048, %v2084
      %v2117 = vadd.f32 %v2049, %v2085
      %v2118 = vadd.f32 %v2050, %v2086
      %v2119 = vadd.f32 %v2051, %v2087
      %v2120 = vadd.f32 %v2052, %v2088
      %v2121 = vadd.f32 %v2053, %v2089
      %v2122 = vadd.f32 %v2054, %v2090
      %v2123 = vadd.f32 %v2055, %v2091
      %v2124 = vadd.f32 %v2056, %v2092
      %v2125 = vadd.f32 %v2057, %v2093
      %v2126 = vadd.f32 %v2058, %v2094
      %v2127 = vadd.f32 %v2059, %v2095
      %v2128 = vadd.f32 %v2060, %v2096
      %v2129 = vadd.f32 %v2061, %v2097
      %v2130 = vadd.f32 %v2062, %v2098
      %v2131 = vadd.f32 %v2063, %v2099
      %v2132 = vadd.f32 %v2064, %v2100
      %v2133 = vadd.f32 %v2065, %v2101
      %v2134 = vadd.f32 %v2066, %v2102
      %v2135 = vadd.f32 %v2067, %v2103
      %v2136 = vadd.f32 %v2068, %v2104
      %v2137 = vadd.f32 %v2069, %v2105
      %v2138 = vadd.f32 %v2070, %v2106
      %v2139 = vadd.f32 %v2071, %v2107
      %v2140 = vadd.f32 %v2072, %v2108
      %v2141 = vadd.f32 %v2073, %v2109
      %v2142 = vadd.f32 %v2074, %v2110
      %v2143 = vadd.f32 %v2075, %v2111
      %v2144 = vadd.f32 %v2076, %v2112
      %v2145 = vadd.f32 %v2077, %v2113
      %v2146 = vld [vmem:[%s5] sm:$0x1]
      %v2148 = vlaneseq
      %v2149 = vshrl.u32 %v2148, 7
      %v2150 = vsub.s32 0, %v2149
      %v2151 = vrot.slane %v2146, %v2150
      %v2153 = vadd.f32 %v2114, %v2151
      %v2154 = vadd.f32 %v2115, %v2151
      %v2155 = vadd.f32 %v2116, %v2151
      %v2156 = vadd.f32 %v2117, %v2151
      %v2157 = vadd.f32 %v2118, %v2151
      %v2158 = vadd.f32 %v2119, %v2151
      %v2159 = vadd.f32 %v2120, %v2151
      %v2160 = vadd.f32 %v2121, %v2151
      %v2161 = vadd.f32 %v2122, %v2151
      %v2162 = vadd.f32 %v2123, %v2151
      %v2163 = vadd.f32 %v2124, %v2151
      %v2164 = vadd.f32 %v2125, %v2151
      %v2165 = vadd.f32 %v2126, %v2151
      %v2166 = vadd.f32 %v2127, %v2151
      %v2167 = vadd.f32 %v2128, %v2151
      %v2168 = vadd.f32 %v2129, %v2151
      %v2169 = vadd.f32 %v2130, %v2151
      %v2170 = vadd.f32 %v2131, %v2151
      %v2171 = vadd.f32 %v2132, %v2151
      %v2172 = vadd.f32 %v2133, %v2151
      %v2173 = vadd.f32 %v2134, %v2151
      %v2174 = vadd.f32 %v2135, %v2151
      %v2175 = vadd.f32 %v2136, %v2151
      %v2176 = vadd.f32 %v2137, %v2151
      %v2177 = vadd.f32 %v2138, %v2151
      %v2178 = vadd.f32 %v2139, %v2151
      %v2179 = vadd.f32 %v2140, %v2151
      %v2180 = vadd.f32 %v2141, %v2151
      %v2181 = vadd.f32 %v2142, %v2151
      %v2182 = vadd.f32 %v2143, %v2151
      %v2183 = vadd.f32 %v2144, %v2151
      %v2184 = vadd.f32 %v2145, %v2151
      %s2185 = scalar_lea.vmem %s2, 4
      %v2186 = vld [vmem:[%s2185] sm:$0xf]
      %v2187 = vpack.c.bf16 %v2186, %v2186
      %s2188 = scalar_lea.vmem %s3, 1
      %v2189 = vld [vmem:[%s2188] sm:$0x1]
      %v2191 = vlaneseq
      %v2192 = vshrl.u32 %v2191, 7
      %v2193 = vsub.s32 0, %v2192
      %v2194 = vrot.slane %v2189, %v2193
      %v2197 = vsel %vm1032, %v2187, 0
      %2199 = vmatprep.subr.bf16.mxu0 0
      %2200 = vmatpush1.bf16.msra.mxu0 %v2197
      %2201 = vmatprep.subr.bf16.mxu0 0
      %2202 = vmatpush1.bf16.msra.mxu0 0
      %2203 = vmatprep.subr.bf16.mxu0 0
      %2204 = vmatpush1.bf16.msra.mxu0 0
      %2205 = vmatprep.subr.bf16.mxu0 0
      %2206 = vmatpush1.bf16.msra.mxu0 0
      %2207 = vmatprep.subr.bf16.mxu0 0
      %2208 = vmatpush1.bf16.msra.mxu0 0
      %2209 = vmatprep.subr.bf16.mxu0 0
      %2210 = vmatpush1.bf16.msra.mxu0 0
      %2211 = vmatprep.subr.bf16.mxu0 0
      %2212 = vmatpush1.bf16.msra.mxu0 0
      %2213 = vmatprep.subr.bf16.mxu0 0
      %2214 = vmatpush1.bf16.msra.mxu0 0
      %2215 = vmatprep.subr.bf16.mxu0 0
      %2216 = vmatpush1.bf16.msra.mxu0 0
      %2217 = vmatprep.subr.bf16.mxu0 0
      %2218 = vmatpush1.bf16.msra.mxu0 0
      %2219 = vmatprep.subr.bf16.mxu0 0
      %2220 = vmatpush1.bf16.msra.mxu0 0
      %2221 = vmatprep.subr.bf16.mxu0 0
      %2222 = vmatpush1.bf16.msra.mxu0 0
      %2223 = vmatprep.subr.bf16.mxu0 0
      %2224 = vmatpush1.bf16.msra.mxu0 0
      %2225 = vmatprep.subr.bf16.mxu0 0
      %2226 = vmatpush1.bf16.msra.mxu0 0
      %2227 = vmatprep.subr.bf16.mxu0 0
      %2228 = vmatpush1.bf16.msra.mxu0 0
      %2229 = vmatprep.subr.bf16.mxu0 0
      %2230 = vmatpush1.bf16.msra.mxu0 0
      %2231 = vmatprep.mubr.bf16.mxu0 0
      %2232 = vmatmul.mubr.bf16.gmra.mrb[0].mxu0 %v985
      %v2233 = vpop.f32.mrb[0].mxu0
      %v2234 = vadd.f32 %v2194, %v2233
      %v2235 = vpop.f32.mrb[0].mxu0
      %v2236 = vpop.f32.mrb[0].mxu0
      %v2237 = vadd.f32 %v2194, %v2236
      %v2238 = vpop.f32.mrb[0].mxu0
      %2239 = vmatprep.mubr.bf16.mxu0 0
      %2240 = vmatmul.mubr.bf16.gmra.mrb[0].mxu0 %v988
      %v2241 = vpop.f32.mrb[0].mxu0
      %v2242 = vadd.f32 %v2194, %v2241
      %v2243 = vpop.f32.mrb[0].mxu0
      %v2244 = vpop.f32.mrb[0].mxu0
      %v2245 = vadd.f32 %v2194, %v2244
      %v2246 = vpop.f32.mrb[0].mxu0
      %2247 = vmatprep.mubr.bf16.mxu0 0
      %2248 = vmatmul.mubr.bf16.gmra.mrb[0].mxu0 %v991
      %v2249 = vpop.f32.mrb[0].mxu0
      %v2250 = vadd.f32 %v2194, %v2249
      %v2251 = vpop.f32.mrb[0].mxu0
      %v2252 = vpop.f32.mrb[0].mxu0
      %v2253 = vadd.f32 %v2194, %v2252
      %v2254 = vpop.f32.mrb[0].mxu0
      %2255 = vmatprep.mubr.bf16.mxu0 0
      %2256 = vmatmul.mubr.bf16.gmra.mrb[0].mxu0 %v994
      %v2257 = vpop.f32.mrb[0].mxu0
      %v2258 = vadd.f32 %v2194, %v2257
      %v2259 = vpop.f32.mrb[0].mxu0
      %v2260 = vpop.f32.mrb[0].mxu0
      %v2261 = vadd.f32 %v2194, %v2260
      %v2262 = vpop.f32.mrb[0].mxu0
      %2263 = vmatprep.mubr.bf16.mxu0 0
      %2264 = vmatmul.mubr.bf16.gmra.mrb[0].mxu0 %v997
      %v2265 = vpop.f32.mrb[0].mxu0
      %v2266 = vadd.f32 %v2194, %v2265
      %v2267 = vpop.f32.mrb[0].mxu0
      %v2268 = vpop.f32.mrb[0].mxu0
      %v2269 = vadd.f32 %v2194, %v2268
      %v2270 = vpop.f32.mrb[0].mxu0
      %2271 = vmatprep.mubr.bf16.mxu0 0
      %2272 = vmatmul.mubr.bf16.gmra.mrb[0].mxu0 %v1000
      %v2273 = vpop.f32.mrb[0].mxu0
      %v2274 = vadd.f32 %v2194, %v2273
      %v2275 = vpop.f32.mrb[0].mxu0
      %v2276 = vpop.f32.mrb[0].mxu0
      %v2277 = vadd.f32 %v2194, %v2276
      %v2278 = vpop.f32.mrb[0].mxu0
      %2279 = vmatprep.mubr.bf16.mxu0 0
      %2280 = vmatmul.mubr.bf16.gmra.mrb[0].mxu0 %v1003
      %v2281 = vpop.f32.mrb[0].mxu0
      %v2282 = vadd.f32 %v2194, %v2281
      %v2283 = vpop.f32.mrb[0].mxu0
      %v2284 = vpop.f32.mrb[0].mxu0
      %v2285 = vadd.f32 %v2194, %v2284
      %v2286 = vpop.f32.mrb[0].mxu0
      %2287 = vmatprep.mubr.bf16.mxu0 0
      %2288 = vmatmul.mubr.bf16.gmra.mrb[0].mxu0 %v1006
      %v2289 = vpop.f32.mrb[0].mxu0
      %v2290 = vadd.f32 %v2194, %v2289
      %v2291 = vpop.f32.mrb[0].mxu0
      %v2292 = vpop.f32.mrb[0].mxu0
      %v2293 = vadd.f32 %v2194, %v2292
      %v2294 = vpop.f32.mrb[0].mxu0
      %2295 = vmatprep.mubr.bf16.mxu0 0
      %2296 = vmatmul.mubr.bf16.gmra.mrb[0].mxu0 %v1009
      %v2297 = vpop.f32.mrb[0].mxu0
      %v2298 = vadd.f32 %v2194, %v2297
      %v2299 = vpop.f32.mrb[0].mxu0
      %v2300 = vpop.f32.mrb[0].mxu0
      %v2301 = vadd.f32 %v2194, %v2300
      %v2302 = vpop.f32.mrb[0].mxu0
      %2303 = vmatprep.mubr.bf16.mxu0 0
      %2304 = vmatmul.mubr.bf16.gmra.mrb[0].mxu0 %v1012
      %v2305 = vpop.f32.mrb[0].mxu0
      %v2306 = vadd.f32 %v2194, %v2305
      %v2307 = vpop.f32.mrb[0].mxu0
      %v2308 = vpop.f32.mrb[0].mxu0
      %v2309 = vadd.f32 %v2194, %v2308
      %v2310 = vpop.f32.mrb[0].mxu0
      %2311 = vmatprep.mubr.bf16.mxu0 0
      %2312 = vmatmul.mubr.bf16.gmra.mrb[0].mxu0 %v1015
      %v2313 = vpop.f32.mrb[0].mxu0
      %v2314 = vadd.f32 %v2194, %v2313
      %v2315 = vpop.f32.mrb[0].mxu0
      %v2316 = vpop.f32.mrb[0].mxu0
      %v2317 = vadd.f32 %v2194, %v2316
      %v2318 = vpop.f32.mrb[0].mxu0
      %2319 = vmatprep.mubr.bf16.mxu0 0
      %2320 = vmatmul.mubr.bf16.gmra.mrb[0].mxu0 %v1018
      %v2321 = vpop.f32.mrb[0].mxu0
      %v2322 = vadd.f32 %v2194, %v2321
      %v2323 = vpop.f32.mrb[0].mxu0
      %v2324 = vpop.f32.mrb[0].mxu0
      %v2325 = vadd.f32 %v2194, %v2324
      %v2326 = vpop.f32.mrb[0].mxu0
      %2327 = vmatprep.mubr.bf16.mxu0 0
      %2328 = vmatmul.mubr.bf16.gmra.mrb[0].mxu0 %v1021
      %v2329 = vpop.f32.mrb[0].mxu0
      %v2330 = vadd.f32 %v2194, %v2329
      %v2331 = vpop.f32.mrb[0].mxu0
      %v2332 = vpop.f32.mrb[0].mxu0
      %v2333 = vadd.f32 %v2194, %v2332
      %v2334 = vpop.f32.mrb[0].mxu0
      %2335 = vmatprep.mubr.bf16.mxu0 0
      %2336 = vmatmul.mubr.bf16.gmra.mrb[0].mxu0 %v1024
      %v2337 = vpop.f32.mrb[0].mxu0
      %v2338 = vadd.f32 %v2194, %v2337
      %v2339 = vpop.f32.mrb[0].mxu0
      %v2340 = vpop.f32.mrb[0].mxu0
      %v2341 = vadd.f32 %v2194, %v2340
      %v2342 = vpop.f32.mrb[0].mxu0
      %2343 = vmatprep.mubr.bf16.mxu0 0
      %2344 = vmatmul.mubr.bf16.gmra.mrb[0].mxu0 %v1027
      %v2345 = vpop.f32.mrb[0].mxu0
      %v2346 = vadd.f32 %v2194, %v2345
      %v2347 = vpop.f32.mrb[0].mxu0
      %v2348 = vpop.f32.mrb[0].mxu0
      %v2349 = vadd.f32 %v2194, %v2348
      %v2350 = vpop.f32.mrb[0].mxu0
      %2351 = vmatprep.mubr.bf16.mxu0 0
      %2352 = vmatmul.mubr.bf16.gmra.mrb[0].mxu0 %v1030
      %v2353 = vpop.f32.mrb[0].mxu0
      %v2354 = vadd.f32 %v2194, %v2353
      %v2355 = vpop.f32.mrb[0].mxu0
      %v2356 = vpop.f32.mrb[0].mxu0
      %v2357 = vadd.f32 %v2194, %v2356
      %v2358 = vpop.f32.mrb[0].mxu0
      %2359 = vdwg.mxu0
      %s2360 = scalar_lea.vmem %s372, 32
      %v2361 = vld [vmem:[%s2360] sm:$0xff]
      %v2362 = vld [vmem:[%s2360 + $0x8] sm:$0xff]
      %s2363 = scalar_lea.vmem %s372, 48
      %v2364 = vld [vmem:[%s2363] sm:$0xff]
      %v2365 = vld [vmem:[%s2363 + $0x8] sm:$0xff]
      %v2366 = vrot.slane %v2361, 7
      %v2367 = vrot.slane %v2362, 7
      %v2368 = vrot.slane %v2234, 7
      %v2369 = vrot.slane %v2237, 7
      %v2370 = vrot.slane %v2242, 7
      %v2371 = vrot.slane %v2245, 7
      %v2372 = vrot.slane %v2250, 7
      %v2373 = vrot.slane %v2253, 7
      %v2374 = vrot.slane %v2258, 7
      %v2375 = vrot.slane %v2261, 7
      %v2376 = vrot.slane %v2266, 7
      %v2377 = vrot.slane %v2269, 7
      %v2378 = vrot.slane %v2274, 7
      %v2379 = vrot.slane %v2277, 7
      %v2380 = vrot.slane %v2282, 7
      %v2381 = vrot.slane %v2285, 7
      %v2382 = vrot.slane %v2290, 7
      %v2383 = vrot.slane %v2293, 7
      %v2384 = vrot.slane %v2298, 7
      %v2385 = vrot.slane %v2301, 7
      %v2386 = vrot.slane %v2306, 7
      %v2387 = vrot.slane %v2309, 7
      %v2388 = vrot.slane %v2314, 7
      %v2389 = vrot.slane %v2317, 7
      %v2390 = vrot.slane %v2322, 7
      %v2391 = vrot.slane %v2325, 7
      %v2392 = vrot.slane %v2330, 7
      %v2393 = vrot.slane %v2333, 7
      %v2394 = vrot.slane %v2338, 7
      %v2395 = vrot.slane %v2341, 7
      %v2396 = vrot.slane %v2346, 7
      %v2397 = vrot.slane %v2349, 7
      %v2398 = vrot.slane %v2354, 7
      %v2399 = vrot.slane %v2357, 7
      %v2400 = vrot.slane %v2364, 7
      %v2401 = vrot.slane %v2365, 7
      %v2402 = vsel %vm1238, %v2400, %v2401
      %v2403 = vsel %vm1238, %v2399, %v2400
      %v2404 = vsel %vm1238, %v2398, %v2399
      %v2405 = vsel %vm1238, %v2397, %v2398
      %v2406 = vsel %vm1238, %v2396, %v2397
      %v2407 = vsel %vm1238, %v2395, %v2396
      %v2408 = vsel %vm1238, %v2394, %v2395
      %v2409 = vsel %vm1238, %v2393, %v2394
      %v2410 = vsel %vm1238, %v2392, %v2393
      %v2411 = vsel %vm1238, %v2391, %v2392
      %v2412 = vsel %vm1238, %v2390, %v2391
      %v2413 = vsel %vm1238, %v2389, %v2390
      %v2414 = vsel %vm1238, %v2388, %v2389
      %v2415 = vsel %vm1238, %v2387, %v2388
      %v2416 = vsel %vm1238, %v2386, %v2387
      %v2417 = vsel %vm1238, %v2385, %v2386
      %v2418 = vsel %vm1238, %v2384, %v2385
      %v2419 = vsel %vm1238, %v2383, %v2384
      %v2420 = vsel %vm1238, %v2382, %v2383
      %v2421 = vsel %vm1238, %v2381, %v2382
      %v2422 = vsel %vm1238, %v2380, %v2381
      %v2423 = vsel %vm1238, %v2379, %v2380
      %v2424 = vsel %vm1238, %v2378, %v2379
      %v2425 = vsel %vm1238, %v2377, %v2378
      %v2426 = vsel %vm1238, %v2376, %v2377
      %v2427 = vsel %vm1238, %v2375, %v2376
      %v2428 = vsel %vm1238, %v2374, %v2375
      %v2429 = vsel %vm1238, %v2373, %v2374
      %v2430 = vsel %vm1238, %v2372, %v2373
      %v2431 = vsel %vm1238, %v2371, %v2372
      %v2432 = vsel %vm1238, %v2370, %v2371
      %v2433 = vsel %vm1238, %v2369, %v2370
      %v2434 = vsel %vm1238, %v2368, %v2369
      %v2435 = vsel %vm1238, %v2367, %v2368
      %v2436 = vsel %vm1238, %v2366, %v2367
      %v2437 = vsel %vm1238, %v2401, %v2366
      %v2438 = vsel %vm1311, %v2437, 0.0
      %v2439 = vsel %vm1312, %v2436, 0.0
      %v2440 = vsel %vm1313, %v2435, 0.0
      %v2441 = vsel %vm1314, %v2434, 0.0
      %v2442 = vsel %vm1315, %v2433, 0.0
      %v2443 = vsel %vm1316, %v2432, 0.0
      %v2444 = vsel %vm1317, %v2431, 0.0
      %v2445 = vsel %vm1318, %v2430, 0.0
      %v2446 = vsel %vm1319, %v2429, 0.0
      %v2447 = vsel %vm1320, %v2428, 0.0
      %v2448 = vsel %vm1321, %v2427, 0.0
      %v2449 = vsel %vm1322, %v2426, 0.0
      %v2450 = vsel %vm1323, %v2425, 0.0
      %v2451 = vsel %vm1324, %v2424, 0.0
      %v2452 = vsel %vm1325, %v2423, 0.0
      %v2453 = vsel %vm1326, %v2422, 0.0
      %v2454 = vsel %vm1327, %v2421, 0.0
      %v2455 = vsel %vm1328, %v2420, 0.0
      %v2456 = vsel %vm1329, %v2419, 0.0
      %v2457 = vsel %vm1330, %v2418, 0.0
      %v2458 = vsel %vm1331, %v2417, 0.0
      %v2459 = vsel %vm1332, %v2416, 0.0
      %v2460 = vsel %vm1333, %v2415, 0.0
      %v2461 = vsel %vm1334, %v2414, 0.0
      %v2462 = vsel %vm1335, %v2413, 0.0
      %v2463 = vsel %vm1336, %v2412, 0.0
      %v2464 = vsel %vm1337, %v2411, 0.0
      %v2465 = vsel %vm1338, %v2410, 0.0
      %v2466 = vsel %vm1339, %v2409, 0.0
      %v2467 = vsel %vm1340, %v2408, 0.0
      %v2468 = vsel %vm1341, %v2407, 0.0
      %v2469 = vsel %vm1342, %v2406, 0.0
      %v2470 = vsel %vm1343, %v2405, 0.0
      %v2471 = vsel %vm1344, %v2404, 0.0
      %v2472 = vsel %vm1345, %v2403, 0.0
      %v2473 = vsel %vm1346, %v2402, 0.0
      %v2474 = vrot.slane %v2361, 1
      %v2475 = vrot.slane %v2362, 1
      %v2476 = vrot.slane %v2234, 1
      %v2477 = vrot.slane %v2237, 1
      %v2478 = vrot.slane %v2242, 1
      %v2479 = vrot.slane %v2245, 1
      %v2480 = vrot.slane %v2250, 1
      %v2481 = vrot.slane %v2253, 1
      %v2482 = vrot.slane %v2258, 1
      %v2483 = vrot.slane %v2261, 1
      %v2484 = vrot.slane %v2266, 1
      %v2485 = vrot.slane %v2269, 1
      %v2486 = vrot.slane %v2274, 1
      %v2487 = vrot.slane %v2277, 1
      %v2488 = vrot.slane %v2282, 1
      %v2489 = vrot.slane %v2285, 1
      %v2490 = vrot.slane %v2290, 1
      %v2491 = vrot.slane %v2293, 1
      %v2492 = vrot.slane %v2298, 1
      %v2493 = vrot.slane %v2301, 1
      %v2494 = vrot.slane %v2306, 1
      %v2495 = vrot.slane %v2309, 1
      %v2496 = vrot.slane %v2314, 1
      %v2497 = vrot.slane %v2317, 1
      %v2498 = vrot.slane %v2322, 1
      %v2499 = vrot.slane %v2325, 1
      %v2500 = vrot.slane %v2330, 1
      %v2501 = vrot.slane %v2333, 1
      %v2502 = vrot.slane %v2338, 1
      %v2503 = vrot.slane %v2341, 1
      %v2504 = vrot.slane %v2346, 1
      %v2505 = vrot.slane %v2349, 1
      %v2506 = vrot.slane %v2354, 1
      %v2507 = vrot.slane %v2357, 1
      %v2508 = vrot.slane %v2364, 1
      %v2509 = vrot.slane %v2365, 1
      %v2510 = vsel %vm1419, %v2508, %v2509
      %v2511 = vsel %vm1419, %v2507, %v2508
      %v2512 = vsel %vm1419, %v2506, %v2507
      %v2513 = vsel %vm1419, %v2505, %v2506
      %v2514 = vsel %vm1419, %v2504, %v2505
      %v2515 = vsel %vm1419, %v2503, %v2504
      %v2516 = vsel %vm1419, %v2502, %v2503
      %v2517 = vsel %vm1419, %v2501, %v2502
      %v2518 = vsel %vm1419, %v2500, %v2501
      %v2519 = vsel %vm1419, %v2499, %v2500
      %v2520 = vsel %vm1419, %v2498, %v2499
      %v2521 = vsel %vm1419, %v2497, %v2498
      %v2522 = vsel %vm1419, %v2496, %v2497
      %v2523 = vsel %vm1419, %v2495, %v2496
      %v2524 = vsel %vm1419, %v2494, %v2495
      %v2525 = vsel %vm1419, %v2493, %v2494
      %v2526 = vsel %vm1419, %v2492, %v2493
      %v2527 = vsel %vm1419, %v2491, %v2492
      %v2528 = vsel %vm1419, %v2490, %v2491
      %v2529 = vsel %vm1419, %v2489, %v2490
      %v2530 = vsel %vm1419, %v2488, %v2489
      %v2531 = vsel %vm1419, %v2487, %v2488
      %v2532 = vsel %vm1419, %v2486, %v2487
      %v2533 = vsel %vm1419, %v2485, %v2486
      %v2534 = vsel %vm1419, %v2484, %v2485
      %v2535 = vsel %vm1419, %v2483, %v2484
      %v2536 = vsel %vm1419, %v2482, %v2483
      %v2537 = vsel %vm1419, %v2481, %v2482
      %v2538 = vsel %vm1419, %v2480, %v2481
      %v2539 = vsel %vm1419, %v2479, %v2480
      %v2540 = vsel %vm1419, %v2478, %v2479
      %v2541 = vsel %vm1419, %v2477, %v2478
      %v2542 = vsel %vm1419, %v2476, %v2477
      %v2543 = vsel %vm1419, %v2475, %v2476
      %v2544 = vsel %vm1419, %v2474, %v2475
      %v2545 = vsel %vm1419, %v2509, %v2474
      %v2546 = vsel %vm1492, %v2544, 0.0
      %v2547 = vsel %vm1493, %v2543, 0.0
      %v2548 = vsel %vm1494, %v2542, 0.0
      %v2549 = vsel %vm1495, %v2541, 0.0
      %v2550 = vsel %vm1496, %v2540, 0.0
      %v2551 = vsel %vm1497, %v2539, 0.0
      %v2552 = vsel %vm1498, %v2538, 0.0
      %v2553 = vsel %vm1499, %v2537, 0.0
      %v2554 = vsel %vm1500, %v2536, 0.0
      %v2555 = vsel %vm1501, %v2535, 0.0
      %v2556 = vsel %vm1502, %v2534, 0.0
      %v2557 = vsel %vm1503, %v2533, 0.0
      %v2558 = vsel %vm1504, %v2532, 0.0
      %v2559 = vsel %vm1505, %v2531, 0.0
      %v2560 = vsel %vm1506, %v2530, 0.0
      %v2561 = vsel %vm1507, %v2529, 0.0
      %v2562 = vsel %vm1508, %v2528, 0.0
      %v2563 = vsel %vm1509, %v2527, 0.0
      %v2564 = vsel %vm1510, %v2526, 0.0
      %v2565 = vsel %vm1511, %v2525, 0.0
      %v2566 = vsel %vm1512, %v2524, 0.0
      %v2567 = vsel %vm1513, %v2523, 0.0
      %v2568 = vsel %vm1514, %v2522, 0.0
      %v2569 = vsel %vm1515, %v2521, 0.0
      %v2570 = vsel %vm1516, %v2520, 0.0
      %v2571 = vsel %vm1517, %v2519, 0.0
      %v2572 = vsel %vm1518, %v2518, 0.0
      %v2573 = vsel %vm1519, %v2517, 0.0
      %v2574 = vsel %vm1520, %v2516, 0.0
      %v2575 = vsel %vm1521, %v2515, 0.0
      %v2576 = vsel %vm1522, %v2514, 0.0
      %v2577 = vsel %vm1523, %v2513, 0.0
      %v2578 = vsel %vm1524, %v2512, 0.0
      %v2579 = vsel %vm1525, %v2511, 0.0
      %v2580 = vsel %vm1526, %v2510, 0.0
      %v2581 = vsel %vm1527, %v2545, 0.0
      %s2582 = scalar_lea.vmem %s4, 16
      %v2583 = vld [vmem:[%s2582] sm:$0xff]
      %v2584 = vld [vmem:[%s2582 + $0x8] sm:$0x1]
      %v2585 = vlaneseq
      %v2586 = vshrl.u32 %v2585, 7
      %v2587 = vsub.s32 0, %v2586
      %v2588 = vrot.slane %v2583, %v2587
      %v2589 = vmul.f32 %v2438, %v2588
      %v2590 = vmul.f32 %v2439, %v2588
      %v2591 = vmul.f32 %v2440, %v2588
      %v2592 = vmul.f32 %v2441, %v2588
      %v2593 = vmul.f32 %v2442, %v2588
      %v2594 = vmul.f32 %v2443, %v2588
      %v2595 = vmul.f32 %v2444, %v2588
      %v2596 = vmul.f32 %v2445, %v2588
      %v2597 = vmul.f32 %v2446, %v2588
      %v2598 = vmul.f32 %v2447, %v2588
      %v2599 = vmul.f32 %v2448, %v2588
      %v2600 = vmul.f32 %v2449, %v2588
      %v2601 = vmul.f32 %v2450, %v2588
      %v2602 = vmul.f32 %v2451, %v2588
      %v2603 = vmul.f32 %v2452, %v2588
      %v2604 = vmul.f32 %v2453, %v2588
      %v2605 = vmul.f32 %v2454, %v2588
      %v2606 = vmul.f32 %v2455, %v2588
      %v2607 = vmul.f32 %v2456, %v2588
      %v2608 = vmul.f32 %v2457, %v2588
      %v2609 = vmul.f32 %v2458, %v2588
      %v2610 = vmul.f32 %v2459, %v2588
      %v2611 = vmul.f32 %v2460, %v2588
      %v2612 = vmul.f32 %v2461, %v2588
      %v2613 = vmul.f32 %v2462, %v2588
      %v2614 = vmul.f32 %v2463, %v2588
      %v2615 = vmul.f32 %v2464, %v2588
      %v2616 = vmul.f32 %v2465, %v2588
      %v2617 = vmul.f32 %v2466, %v2588
      %v2618 = vmul.f32 %v2467, %v2588
      %v2619 = vmul.f32 %v2468, %v2588
      %v2620 = vmul.f32 %v2469, %v2588
      %v2621 = vlaneseq
      %v2622 = vshrl.u32 %v2621, 7
      %v2623 = vsub.s32 1, %v2622
      %v2624 = vrot.slane %v2583, %v2623
      %v2625 = vmul.f32 %v2361, %v2624
      %v2626 = vmul.f32 %v2362, %v2624
      %v2627 = vmul.f32 %v2234, %v2624
      %v2628 = vmul.f32 %v2237, %v2624
      %v2629 = vmul.f32 %v2242, %v2624
      %v2630 = vmul.f32 %v2245, %v2624
      %v2631 = vmul.f32 %v2250, %v2624
      %v2632 = vmul.f32 %v2253, %v2624
      %v2633 = vmul.f32 %v2258, %v2624
      %v2634 = vmul.f32 %v2261, %v2624
      %v2635 = vmul.f32 %v2266, %v2624
      %v2636 = vmul.f32 %v2269, %v2624
      %v2637 = vmul.f32 %v2274, %v2624
      %v2638 = vmul.f32 %v2277, %v2624
      %v2639 = vmul.f32 %v2282, %v2624
      %v2640 = vmul.f32 %v2285, %v2624
      %v2641 = vmul.f32 %v2290, %v2624
      %v2642 = vmul.f32 %v2293, %v2624
      %v2643 = vmul.f32 %v2298, %v2624
      %v2644 = vmul.f32 %v2301, %v2624
      %v2645 = vmul.f32 %v2306, %v2624
      %v2646 = vmul.f32 %v2309, %v2624
      %v2647 = vmul.f32 %v2314, %v2624
      %v2648 = vmul.f32 %v2317, %v2624
      %v2649 = vmul.f32 %v2322, %v2624
      %v2650 = vmul.f32 %v2325, %v2624
      %v2651 = vmul.f32 %v2330, %v2624
      %v2652 = vmul.f32 %v2333, %v2624
      %v2653 = vmul.f32 %v2338, %v2624
      %v2654 = vmul.f32 %v2341, %v2624
      %v2655 = vmul.f32 %v2346, %v2624
      %v2656 = vmul.f32 %v2349, %v2624
      %v2657 = vadd.f32 %v2589, %v2625
      %v2658 = vadd.f32 %v2590, %v2626
      %v2659 = vadd.f32 %v2591, %v2627
      %v2660 = vadd.f32 %v2592, %v2628
      %v2661 = vadd.f32 %v2593, %v2629
      %v2662 = vadd.f32 %v2594, %v2630
      %v2663 = vadd.f32 %v2595, %v2631
      %v2664 = vadd.f32 %v2596, %v2632
      %v2665 = vadd.f32 %v2597, %v2633
      %v2666 = vadd.f32 %v2598, %v2634
      %v2667 = vadd.f32 %v2599, %v2635
      %v2668 = vadd.f32 %v2600, %v2636
      %v2669 = vadd.f32 %v2601, %v2637
      %v2670 = vadd.f32 %v2602, %v2638
      %v2671 = vadd.f32 %v2603, %v2639
      %v2672 = vadd.f32 %v2604, %v2640
      %v2673 = vadd.f32 %v2605, %v2641
      %v2674 = vadd.f32 %v2606, %v2642
      %v2675 = vadd.f32 %v2607, %v2643
      %v2676 = vadd.f32 %v2608, %v2644
      %v2677 = vadd.f32 %v2609, %v2645
      %v2678 = vadd.f32 %v2610, %v2646
      %v2679 = vadd.f32 %v2611, %v2647
      %v2680 = vadd.f32 %v2612, %v2648
      %v2681 = vadd.f32 %v2613, %v2649
      %v2682 = vadd.f32 %v2614, %v2650
      %v2683 = vadd.f32 %v2615, %v2651
      %v2684 = vadd.f32 %v2616, %v2652
      %v2685 = vadd.f32 %v2617, %v2653
      %v2686 = vadd.f32 %v2618, %v2654
      %v2687 = vadd.f32 %v2619, %v2655
      %v2688 = vadd.f32 %v2620, %v2656
      %v2689 = vlaneseq
      %v2690 = vshrl.u32 %v2689, 7
      %v2691 = vsub.s32 2, %v2690
      %v2692 = vrot.slane %v2583, %v2691
      %v2693 = vmul.f32 %v2546, %v2692
      %v2694 = vmul.f32 %v2547, %v2692
      %v2695 = vmul.f32 %v2548, %v2692
      %v2696 = vmul.f32 %v2549, %v2692
      %v2697 = vmul.f32 %v2550, %v2692
      %v2698 = vmul.f32 %v2551, %v2692
      %v2699 = vmul.f32 %v2552, %v2692
      %v2700 = vmul.f32 %v2553, %v2692
      %v2701 = vmul.f32 %v2554, %v2692
      %v2702 = vmul.f32 %v2555, %v2692
      %v2703 = vmul.f32 %v2556, %v2692
      %v2704 = vmul.f32 %v2557, %v2692
      %v2705 = vmul.f32 %v2558, %v2692
      %v2706 = vmul.f32 %v2559, %v2692
      %v2707 = vmul.f32 %v2560, %v2692
      %v2708 = vmul.f32 %v2561, %v2692
      %v2709 = vmul.f32 %v2562, %v2692
      %v2710 = vmul.f32 %v2563, %v2692
      %v2711 = vmul.f32 %v2564, %v2692
      %v2712 = vmul.f32 %v2565, %v2692
      %v2713 = vmul.f32 %v2566, %v2692
      %v2714 = vmul.f32 %v2567, %v2692
      %v2715 = vmul.f32 %v2568, %v2692
      %v2716 = vmul.f32 %v2569, %v2692
      %v2717 = vmul.f32 %v2570, %v2692
      %v2718 = vmul.f32 %v2571, %v2692
      %v2719 = vmul.f32 %v2572, %v2692
      %v2720 = vmul.f32 %v2573, %v2692
      %v2721 = vmul.f32 %v2574, %v2692
      %v2722 = vmul.f32 %v2575, %v2692
      %v2723 = vmul.f32 %v2576, %v2692
      %v2724 = vmul.f32 %v2577, %v2692
      %v2725 = vadd.f32 %v2657, %v2693
      %v2726 = vadd.f32 %v2658, %v2694
      %v2727 = vadd.f32 %v2659, %v2695
      %v2728 = vadd.f32 %v2660, %v2696
      %v2729 = vadd.f32 %v2661, %v2697
      %v2730 = vadd.f32 %v2662, %v2698
      %v2731 = vadd.f32 %v2663, %v2699
      %v2732 = vadd.f32 %v2664, %v2700
      %v2733 = vadd.f32 %v2665, %v2701
      %v2734 = vadd.f32 %v2666, %v2702
      %v2735 = vadd.f32 %v2667, %v2703
      %v2736 = vadd.f32 %v2668, %v2704
      %v2737 = vadd.f32 %v2669, %v2705
      %v2738 = vadd.f32 %v2670, %v2706
      %v2739 = vadd.f32 %v2671, %v2707
      %v2740 = vadd.f32 %v2672, %v2708
      %v2741 = vadd.f32 %v2673, %v2709
      %v2742 = vadd.f32 %v2674, %v2710
      %v2743 = vadd.f32 %v2675, %v2711
      %v2744 = vadd.f32 %v2676, %v2712
      %v2745 = vadd.f32 %v2677, %v2713
      %v2746 = vadd.f32 %v2678, %v2714
      %v2747 = vadd.f32 %v2679, %v2715
      %v2748 = vadd.f32 %v2680, %v2716
      %v2749 = vadd.f32 %v2681, %v2717
      %v2750 = vadd.f32 %v2682, %v2718
      %v2751 = vadd.f32 %v2683, %v2719
      %v2752 = vadd.f32 %v2684, %v2720
      %v2753 = vadd.f32 %v2685, %v2721
      %v2754 = vadd.f32 %v2686, %v2722
      %v2755 = vadd.f32 %v2687, %v2723
      %v2756 = vadd.f32 %v2688, %v2724
      %v2757 = vlaneseq
      %v2758 = vshrl.u32 %v2757, 7
      %v2759 = vsub.s32 3, %v2758
      %v2760 = vrot.slane %v2583, %v2759
      %v2761 = vmul.f32 %v2440, %v2760
      %v2762 = vmul.f32 %v2441, %v2760
      %v2763 = vmul.f32 %v2442, %v2760
      %v2764 = vmul.f32 %v2443, %v2760
      %v2765 = vmul.f32 %v2444, %v2760
      %v2766 = vmul.f32 %v2445, %v2760
      %v2767 = vmul.f32 %v2446, %v2760
      %v2768 = vmul.f32 %v2447, %v2760
      %v2769 = vmul.f32 %v2448, %v2760
      %v2770 = vmul.f32 %v2449, %v2760
      %v2771 = vmul.f32 %v2450, %v2760
      %v2772 = vmul.f32 %v2451, %v2760
      %v2773 = vmul.f32 %v2452, %v2760
      %v2774 = vmul.f32 %v2453, %v2760
      %v2775 = vmul.f32 %v2454, %v2760
      %v2776 = vmul.f32 %v2455, %v2760
      %v2777 = vmul.f32 %v2456, %v2760
      %v2778 = vmul.f32 %v2457, %v2760
      %v2779 = vmul.f32 %v2458, %v2760
      %v2780 = vmul.f32 %v2459, %v2760
      %v2781 = vmul.f32 %v2460, %v2760
      %v2782 = vmul.f32 %v2461, %v2760
      %v2783 = vmul.f32 %v2462, %v2760
      %v2784 = vmul.f32 %v2463, %v2760
      %v2785 = vmul.f32 %v2464, %v2760
      %v2786 = vmul.f32 %v2465, %v2760
      %v2787 = vmul.f32 %v2466, %v2760
      %v2788 = vmul.f32 %v2467, %v2760
      %v2789 = vmul.f32 %v2468, %v2760
      %v2790 = vmul.f32 %v2469, %v2760
      %v2791 = vmul.f32 %v2470, %v2760
      %v2792 = vmul.f32 %v2471, %v2760
      %v2793 = vadd.f32 %v2725, %v2761
      %v2794 = vadd.f32 %v2726, %v2762
      %v2795 = vadd.f32 %v2727, %v2763
      %v2796 = vadd.f32 %v2728, %v2764
      %v2797 = vadd.f32 %v2729, %v2765
      %v2798 = vadd.f32 %v2730, %v2766
      %v2799 = vadd.f32 %v2731, %v2767
      %v2800 = vadd.f32 %v2732, %v2768
      %v2801 = vadd.f32 %v2733, %v2769
      %v2802 = vadd.f32 %v2734, %v2770
      %v2803 = vadd.f32 %v2735, %v2771
      %v2804 = vadd.f32 %v2736, %v2772
      %v2805 = vadd.f32 %v2737, %v2773
      %v2806 = vadd.f32 %v2738, %v2774
      %v2807 = vadd.f32 %v2739, %v2775
      %v2808 = vadd.f32 %v2740, %v2776
      %v2809 = vadd.f32 %v2741, %v2777
      %v2810 = vadd.f32 %v2742, %v2778
      %v2811 = vadd.f32 %v2743, %v2779
      %v2812 = vadd.f32 %v2744, %v2780
      %v2813 = vadd.f32 %v2745, %v2781
      %v2814 = vadd.f32 %v2746, %v2782
      %v2815 = vadd.f32 %v2747, %v2783
      %v2816 = vadd.f32 %v2748, %v2784
      %v2817 = vadd.f32 %v2749, %v2785
      %v2818 = vadd.f32 %v2750, %v2786
      %v2819 = vadd.f32 %v2751, %v2787
      %v2820 = vadd.f32 %v2752, %v2788
      %v2821 = vadd.f32 %v2753, %v2789
      %v2822 = vadd.f32 %v2754, %v2790
      %v2823 = vadd.f32 %v2755, %v2791
      %v2824 = vadd.f32 %v2756, %v2792
      %v2825 = vlaneseq
      %v2826 = vshrl.u32 %v2825, 7
      %v2827 = vsub.s32 4, %v2826
      %v2828 = vrot.slane %v2583, %v2827
      %v2829 = vmul.f32 %v2234, %v2828
      %v2830 = vmul.f32 %v2237, %v2828
      %v2831 = vmul.f32 %v2242, %v2828
      %v2832 = vmul.f32 %v2245, %v2828
      %v2833 = vmul.f32 %v2250, %v2828
      %v2834 = vmul.f32 %v2253, %v2828
      %v2835 = vmul.f32 %v2258, %v2828
      %v2836 = vmul.f32 %v2261, %v2828
      %v2837 = vmul.f32 %v2266, %v2828
      %v2838 = vmul.f32 %v2269, %v2828
      %v2839 = vmul.f32 %v2274, %v2828
      %v2840 = vmul.f32 %v2277, %v2828
      %v2841 = vmul.f32 %v2282, %v2828
      %v2842 = vmul.f32 %v2285, %v2828
      %v2843 = vmul.f32 %v2290, %v2828
      %v2844 = vmul.f32 %v2293, %v2828
      %v2845 = vmul.f32 %v2298, %v2828
      %v2846 = vmul.f32 %v2301, %v2828
      %v2847 = vmul.f32 %v2306, %v2828
      %v2848 = vmul.f32 %v2309, %v2828
      %v2849 = vmul.f32 %v2314, %v2828
      %v2850 = vmul.f32 %v2317, %v2828
      %v2851 = vmul.f32 %v2322, %v2828
      %v2852 = vmul.f32 %v2325, %v2828
      %v2853 = vmul.f32 %v2330, %v2828
      %v2854 = vmul.f32 %v2333, %v2828
      %v2855 = vmul.f32 %v2338, %v2828
      %v2856 = vmul.f32 %v2341, %v2828
      %v2857 = vmul.f32 %v2346, %v2828
      %v2858 = vmul.f32 %v2349, %v2828
      %v2859 = vmul.f32 %v2354, %v2828
      %v2860 = vmul.f32 %v2357, %v2828
      %v2861 = vadd.f32 %v2793, %v2829
      %v2862 = vadd.f32 %v2794, %v2830
      %v2863 = vadd.f32 %v2795, %v2831
      %v2864 = vadd.f32 %v2796, %v2832
      %v2865 = vadd.f32 %v2797, %v2833
      %v2866 = vadd.f32 %v2798, %v2834
      %v2867 = vadd.f32 %v2799, %v2835
      %v2868 = vadd.f32 %v2800, %v2836
      %v2869 = vadd.f32 %v2801, %v2837
      %v2870 = vadd.f32 %v2802, %v2838
      %v2871 = vadd.f32 %v2803, %v2839
      %v2872 = vadd.f32 %v2804, %v2840
      %v2873 = vadd.f32 %v2805, %v2841
      %v2874 = vadd.f32 %v2806, %v2842
      %v2875 = vadd.f32 %v2807, %v2843
      %v2876 = vadd.f32 %v2808, %v2844
      %v2877 = vadd.f32 %v2809, %v2845
      %v2878 = vadd.f32 %v2810, %v2846
      %v2879 = vadd.f32 %v2811, %v2847
      %v2880 = vadd.f32 %v2812, %v2848
      %v2881 = vadd.f32 %v2813, %v2849
      %v2882 = vadd.f32 %v2814, %v2850
      %v2883 = vadd.f32 %v2815, %v2851
      %v2884 = vadd.f32 %v2816, %v2852
      %v2885 = vadd.f32 %v2817, %v2853
      %v2886 = vadd.f32 %v2818, %v2854
      %v2887 = vadd.f32 %v2819, %v2855
      %v2888 = vadd.f32 %v2820, %v2856
      %v2889 = vadd.f32 %v2821, %v2857
      %v2890 = vadd.f32 %v2822, %v2858
      %v2891 = vadd.f32 %v2823, %v2859
      %v2892 = vadd.f32 %v2824, %v2860
      %v2893 = vlaneseq
      %v2894 = vshrl.u32 %v2893, 7
      %v2895 = vsub.s32 5, %v2894
      %v2896 = vrot.slane %v2583, %v2895
      %v2897 = vmul.f32 %v2548, %v2896
      %v2898 = vmul.f32 %v2549, %v2896
      %v2899 = vmul.f32 %v2550, %v2896
      %v2900 = vmul.f32 %v2551, %v2896
      %v2901 = vmul.f32 %v2552, %v2896
      %v2902 = vmul.f32 %v2553, %v2896
      %v2903 = vmul.f32 %v2554, %v2896
      %v2904 = vmul.f32 %v2555, %v2896
      %v2905 = vmul.f32 %v2556, %v2896
      %v2906 = vmul.f32 %v2557, %v2896
      %v2907 = vmul.f32 %v2558, %v2896
      %v2908 = vmul.f32 %v2559, %v2896
      %v2909 = vmul.f32 %v2560, %v2896
      %v2910 = vmul.f32 %v2561, %v2896
      %v2911 = vmul.f32 %v2562, %v2896
      %v2912 = vmul.f32 %v2563, %v2896
      %v2913 = vmul.f32 %v2564, %v2896
      %v2914 = vmul.f32 %v2565, %v2896
      %v2915 = vmul.f32 %v2566, %v2896
      %v2916 = vmul.f32 %v2567, %v2896
      %v2917 = vmul.f32 %v2568, %v2896
      %v2918 = vmul.f32 %v2569, %v2896
      %v2919 = vmul.f32 %v2570, %v2896
      %v2920 = vmul.f32 %v2571, %v2896
      %v2921 = vmul.f32 %v2572, %v2896
      %v2922 = vmul.f32 %v2573, %v2896
      %v2923 = vmul.f32 %v2574, %v2896
      %v2924 = vmul.f32 %v2575, %v2896
      %v2925 = vmul.f32 %v2576, %v2896
      %v2926 = vmul.f32 %v2577, %v2896
      %v2927 = vmul.f32 %v2578, %v2896
      %v2928 = vmul.f32 %v2579, %v2896
      %v2929 = vadd.f32 %v2861, %v2897
      %v2930 = vadd.f32 %v2862, %v2898
      %v2931 = vadd.f32 %v2863, %v2899
      %v2932 = vadd.f32 %v2864, %v2900
      %v2933 = vadd.f32 %v2865, %v2901
      %v2934 = vadd.f32 %v2866, %v2902
      %v2935 = vadd.f32 %v2867, %v2903
      %v2936 = vadd.f32 %v2868, %v2904
      %v2937 = vadd.f32 %v2869, %v2905
      %v2938 = vadd.f32 %v2870, %v2906
      %v2939 = vadd.f32 %v2871, %v2907
      %v2940 = vadd.f32 %v2872, %v2908
      %v2941 = vadd.f32 %v2873, %v2909
      %v2942 = vadd.f32 %v2874, %v2910
      %v2943 = vadd.f32 %v2875, %v2911
      %v2944 = vadd.f32 %v2876, %v2912
      %v2945 = vadd.f32 %v2877, %v2913
      %v2946 = vadd.f32 %v2878, %v2914
      %v2947 = vadd.f32 %v2879, %v2915
      %v2948 = vadd.f32 %v2880, %v2916
      %v2949 = vadd.f32 %v2881, %v2917
      %v2950 = vadd.f32 %v2882, %v2918
      %v2951 = vadd.f32 %v2883, %v2919
      %v2952 = vadd.f32 %v2884, %v2920
      %v2953 = vadd.f32 %v2885, %v2921
      %v2954 = vadd.f32 %v2886, %v2922
      %v2955 = vadd.f32 %v2887, %v2923
      %v2956 = vadd.f32 %v2888, %v2924
      %v2957 = vadd.f32 %v2889, %v2925
      %v2958 = vadd.f32 %v2890, %v2926
      %v2959 = vadd.f32 %v2891, %v2927
      %v2960 = vadd.f32 %v2892, %v2928
      %v2961 = vlaneseq
      %v2962 = vshrl.u32 %v2961, 7
      %v2963 = vsub.s32 6, %v2962
      %v2964 = vrot.slane %v2583, %v2963
      %v2965 = vmul.f32 %v2442, %v2964
      %v2966 = vmul.f32 %v2443, %v2964
      %v2967 = vmul.f32 %v2444, %v2964
      %v2968 = vmul.f32 %v2445, %v2964
      %v2969 = vmul.f32 %v2446, %v2964
      %v2970 = vmul.f32 %v2447, %v2964
      %v2971 = vmul.f32 %v2448, %v2964
      %v2972 = vmul.f32 %v2449, %v2964
      %v2973 = vmul.f32 %v2450, %v2964
      %v2974 = vmul.f32 %v2451, %v2964
      %v2975 = vmul.f32 %v2452, %v2964
      %v2976 = vmul.f32 %v2453, %v2964
      %v2977 = vmul.f32 %v2454, %v2964
      %v2978 = vmul.f32 %v2455, %v2964
      %v2979 = vmul.f32 %v2456, %v2964
      %v2980 = vmul.f32 %v2457, %v2964
      %v2981 = vmul.f32 %v2458, %v2964
      %v2982 = vmul.f32 %v2459, %v2964
      %v2983 = vmul.f32 %v2460, %v2964
      %v2984 = vmul.f32 %v2461, %v2964
      %v2985 = vmul.f32 %v2462, %v2964
      %v2986 = vmul.f32 %v2463, %v2964
      %v2987 = vmul.f32 %v2464, %v2964
      %v2988 = vmul.f32 %v2465, %v2964
      %v2989 = vmul.f32 %v2466, %v2964
      %v2990 = vmul.f32 %v2467, %v2964
      %v2991 = vmul.f32 %v2468, %v2964
      %v2992 = vmul.f32 %v2469, %v2964
      %v2993 = vmul.f32 %v2470, %v2964
      %v2994 = vmul.f32 %v2471, %v2964
      %v2995 = vmul.f32 %v2472, %v2964
      %v2996 = vmul.f32 %v2473, %v2964
      %v2997 = vadd.f32 %v2929, %v2965
      %v2998 = vadd.f32 %v2930, %v2966
      %v2999 = vadd.f32 %v2931, %v2967
      %v3000 = vadd.f32 %v2932, %v2968
      %v3001 = vadd.f32 %v2933, %v2969
      %v3002 = vadd.f32 %v2934, %v2970
      %v3003 = vadd.f32 %v2935, %v2971
      %v3004 = vadd.f32 %v2936, %v2972
      %v3005 = vadd.f32 %v2937, %v2973
      %v3006 = vadd.f32 %v2938, %v2974
      %v3007 = vadd.f32 %v2939, %v2975
      %v3008 = vadd.f32 %v2940, %v2976
      %v3009 = vadd.f32 %v2941, %v2977
      %v3010 = vadd.f32 %v2942, %v2978
      %v3011 = vadd.f32 %v2943, %v2979
      %v3012 = vadd.f32 %v2944, %v2980
      %v3013 = vadd.f32 %v2945, %v2981
      %v3014 = vadd.f32 %v2946, %v2982
      %v3015 = vadd.f32 %v2947, %v2983
      %v3016 = vadd.f32 %v2948, %v2984
      %v3017 = vadd.f32 %v2949, %v2985
      %v3018 = vadd.f32 %v2950, %v2986
      %v3019 = vadd.f32 %v2951, %v2987
      %v3020 = vadd.f32 %v2952, %v2988
      %v3021 = vadd.f32 %v2953, %v2989
      %v3022 = vadd.f32 %v2954, %v2990
      %v3023 = vadd.f32 %v2955, %v2991
      %v3024 = vadd.f32 %v2956, %v2992
      %v3025 = vadd.f32 %v2957, %v2993
      %v3026 = vadd.f32 %v2958, %v2994
      %v3027 = vadd.f32 %v2959, %v2995
      %v3028 = vadd.f32 %v2960, %v2996
      %v3029 = vlaneseq
      %v3030 = vshrl.u32 %v3029, 7
      %v3031 = vsub.s32 7, %v3030
      %v3032 = vrot.slane %v2583, %v3031
      %v3033 = vmul.f32 %v2242, %v3032
      %v3034 = vmul.f32 %v2245, %v3032
      %v3035 = vmul.f32 %v2250, %v3032
      %v3036 = vmul.f32 %v2253, %v3032
      %v3037 = vmul.f32 %v2258, %v3032
      %v3038 = vmul.f32 %v2261, %v3032
      %v3039 = vmul.f32 %v2266, %v3032
      %v3040 = vmul.f32 %v2269, %v3032
      %v3041 = vmul.f32 %v2274, %v3032
      %v3042 = vmul.f32 %v2277, %v3032
      %v3043 = vmul.f32 %v2282, %v3032
      %v3044 = vmul.f32 %v2285, %v3032
      %v3045 = vmul.f32 %v2290, %v3032
      %v3046 = vmul.f32 %v2293, %v3032
      %v3047 = vmul.f32 %v2298, %v3032
      %v3048 = vmul.f32 %v2301, %v3032
      %v3049 = vmul.f32 %v2306, %v3032
      %v3050 = vmul.f32 %v2309, %v3032
      %v3051 = vmul.f32 %v2314, %v3032
      %v3052 = vmul.f32 %v2317, %v3032
      %v3053 = vmul.f32 %v2322, %v3032
      %v3054 = vmul.f32 %v2325, %v3032
      %v3055 = vmul.f32 %v2330, %v3032
      %v3056 = vmul.f32 %v2333, %v3032
      %v3057 = vmul.f32 %v2338, %v3032
      %v3058 = vmul.f32 %v2341, %v3032
      %v3059 = vmul.f32 %v2346, %v3032
      %v3060 = vmul.f32 %v2349, %v3032
      %v3061 = vmul.f32 %v2354, %v3032
      %v3062 = vmul.f32 %v2357, %v3032
      %v3063 = vmul.f32 %v2364, %v3032
      %v3064 = vmul.f32 %v2365, %v3032
      %v3065 = vadd.f32 %v2997, %v3033
      %v3066 = vadd.f32 %v2998, %v3034
      %v3067 = vadd.f32 %v2999, %v3035
      %v3068 = vadd.f32 %v3000, %v3036
      %v3069 = vadd.f32 %v3001, %v3037
      %v3070 = vadd.f32 %v3002, %v3038
      %v3071 = vadd.f32 %v3003, %v3039
      %v3072 = vadd.f32 %v3004, %v3040
      %v3073 = vadd.f32 %v3005, %v3041
      %v3074 = vadd.f32 %v3006, %v3042
      %v3075 = vadd.f32 %v3007, %v3043
      %v3076 = vadd.f32 %v3008, %v3044
      %v3077 = vadd.f32 %v3009, %v3045
      %v3078 = vadd.f32 %v3010, %v3046
      %v3079 = vadd.f32 %v3011, %v3047
      %v3080 = vadd.f32 %v3012, %v3048
      %v3081 = vadd.f32 %v3013, %v3049
      %v3082 = vadd.f32 %v3014, %v3050
      %v3083 = vadd.f32 %v3015, %v3051
      %v3084 = vadd.f32 %v3016, %v3052
      %v3085 = vadd.f32 %v3017, %v3053
      %v3086 = vadd.f32 %v3018, %v3054
      %v3087 = vadd.f32 %v3019, %v3055
      %v3088 = vadd.f32 %v3020, %v3056
      %v3089 = vadd.f32 %v3021, %v3057
      %v3090 = vadd.f32 %v3022, %v3058
      %v3091 = vadd.f32 %v3023, %v3059
      %v3092 = vadd.f32 %v3024, %v3060
      %v3093 = vadd.f32 %v3025, %v3061
      %v3094 = vadd.f32 %v3026, %v3062
      %v3095 = vadd.f32 %v3027, %v3063
      %v3096 = vadd.f32 %v3028, %v3064
      %v3097 = vlaneseq
      %v3098 = vshrl.u32 %v3097, 7
      %v3099 = vsub.s32 0, %v3098
      %v3100 = vrot.slane %v2584, %v3099
      %v3101 = vmul.f32 %v2550, %v3100
      %v3102 = vmul.f32 %v2551, %v3100
      %v3103 = vmul.f32 %v2552, %v3100
      %v3104 = vmul.f32 %v2553, %v3100
      %v3105 = vmul.f32 %v2554, %v3100
      %v3106 = vmul.f32 %v2555, %v3100
      %v3107 = vmul.f32 %v2556, %v3100
      %v3108 = vmul.f32 %v2557, %v3100
      %v3109 = vmul.f32 %v2558, %v3100
      %v3110 = vmul.f32 %v2559, %v3100
      %v3111 = vmul.f32 %v2560, %v3100
      %v3112 = vmul.f32 %v2561, %v3100
      %v3113 = vmul.f32 %v2562, %v3100
      %v3114 = vmul.f32 %v2563, %v3100
      %v3115 = vmul.f32 %v2564, %v3100
      %v3116 = vmul.f32 %v2565, %v3100
      %v3117 = vmul.f32 %v2566, %v3100
      %v3118 = vmul.f32 %v2567, %v3100
      %v3119 = vmul.f32 %v2568, %v3100
      %v3120 = vmul.f32 %v2569, %v3100
      %v3121 = vmul.f32 %v2570, %v3100
      %v3122 = vmul.f32 %v2571, %v3100
      %v3123 = vmul.f32 %v2572, %v3100
      %v3124 = vmul.f32 %v2573, %v3100
      %v3125 = vmul.f32 %v2574, %v3100
      %v3126 = vmul.f32 %v2575, %v3100
      %v3127 = vmul.f32 %v2576, %v3100
      %v3128 = vmul.f32 %v2577, %v3100
      %v3129 = vmul.f32 %v2578, %v3100
      %v3130 = vmul.f32 %v2579, %v3100
      %v3131 = vmul.f32 %v2580, %v3100
      %v3132 = vmul.f32 %v2581, %v3100
      %v3133 = vadd.f32 %v3065, %v3101
      %v3134 = vadd.f32 %v3066, %v3102
      %v3135 = vadd.f32 %v3067, %v3103
      %v3136 = vadd.f32 %v3068, %v3104
      %v3137 = vadd.f32 %v3069, %v3105
      %v3138 = vadd.f32 %v3070, %v3106
      %v3139 = vadd.f32 %v3071, %v3107
      %v3140 = vadd.f32 %v3072, %v3108
      %v3141 = vadd.f32 %v3073, %v3109
      %v3142 = vadd.f32 %v3074, %v3110
      %v3143 = vadd.f32 %v3075, %v3111
      %v3144 = vadd.f32 %v3076, %v3112
      %v3145 = vadd.f32 %v3077, %v3113
      %v3146 = vadd.f32 %v3078, %v3114
      %v3147 = vadd.f32 %v3079, %v3115
      %v3148 = vadd.f32 %v3080, %v3116
      %v3149 = vadd.f32 %v3081, %v3117
      %v3150 = vadd.f32 %v3082, %v3118
      %v3151 = vadd.f32 %v3083, %v3119
      %v3152 = vadd.f32 %v3084, %v3120
      %v3153 = vadd.f32 %v3085, %v3121
      %v3154 = vadd.f32 %v3086, %v3122
      %v3155 = vadd.f32 %v3087, %v3123
      %v3156 = vadd.f32 %v3088, %v3124
      %v3157 = vadd.f32 %v3089, %v3125
      %v3158 = vadd.f32 %v3090, %v3126
      %v3159 = vadd.f32 %v3091, %v3127
      %v3160 = vadd.f32 %v3092, %v3128
      %v3161 = vadd.f32 %v3093, %v3129
      %v3162 = vadd.f32 %v3094, %v3130
      %v3163 = vadd.f32 %v3095, %v3131
      %v3164 = vadd.f32 %v3096, %v3132
      %s3165 = scalar_lea.vmem %s5, 1
      %v3166 = vld [vmem:[%s3165] sm:$0x1]
      %v3168 = vlaneseq
      %v3169 = vshrl.u32 %v3168, 7
      %v3170 = vsub.s32 0, %v3169
      %v3171 = vrot.slane %v3166, %v3170
      %v3173 = vadd.f32 %v3133, %v3171
      %v3174 = vadd.f32 %v3134, %v3171
      %v3175 = vadd.f32 %v3135, %v3171
      %v3176 = vadd.f32 %v3136, %v3171
      %v3177 = vadd.f32 %v3137, %v3171
      %v3178 = vadd.f32 %v3138, %v3171
      %v3179 = vadd.f32 %v3139, %v3171
      %v3180 = vadd.f32 %v3140, %v3171
      %v3181 = vadd.f32 %v3141, %v3171
      %v3182 = vadd.f32 %v3142, %v3171
      %v3183 = vadd.f32 %v3143, %v3171
      %v3184 = vadd.f32 %v3144, %v3171
      %v3185 = vadd.f32 %v3145, %v3171
      %v3186 = vadd.f32 %v3146, %v3171
      %v3187 = vadd.f32 %v3147, %v3171
      %v3188 = vadd.f32 %v3148, %v3171
      %v3189 = vadd.f32 %v3149, %v3171
      %v3190 = vadd.f32 %v3150, %v3171
      %v3191 = vadd.f32 %v3151, %v3171
      %v3192 = vadd.f32 %v3152, %v3171
      %v3193 = vadd.f32 %v3153, %v3171
      %v3194 = vadd.f32 %v3154, %v3171
      %v3195 = vadd.f32 %v3155, %v3171
      %v3196 = vadd.f32 %v3156, %v3171
      %v3197 = vadd.f32 %v3157, %v3171
      %v3198 = vadd.f32 %v3158, %v3171
      %v3199 = vadd.f32 %v3159, %v3171
      %v3200 = vadd.f32 %v3160, %v3171
      %v3201 = vadd.f32 %v3161, %v3171
      %v3202 = vadd.f32 %v3162, %v3171
      %v3203 = vadd.f32 %v3163, %v3171
      %v3204 = vadd.f32 %v3164, %v3171
      %v3205 = vmul.f32 %v2153, 0.70710677
      %v3206 = vmul.f32 %v2154, 0.70710677
      %v3207 = vmul.f32 %v2155, 0.70710677
      %v3208 = vmul.f32 %v2156, 0.70710677
      %v3209 = vmul.f32 %v2157, 0.70710677
      %v3210 = vmul.f32 %v2158, 0.70710677
      %v3211 = vmul.f32 %v2159, 0.70710677
      %v3212 = vmul.f32 %v2160, 0.70710677
      %v3213 = vmul.f32 %v2161, 0.70710677
      %v3214 = vmul.f32 %v2162, 0.70710677
      %v3215 = vmul.f32 %v2163, 0.70710677
      %v3216 = vmul.f32 %v2164, 0.70710677
      %v3217 = vmul.f32 %v2165, 0.70710677
      %v3218 = vmul.f32 %v2166, 0.70710677
      %v3219 = vmul.f32 %v2167, 0.70710677
      %v3220 = vmul.f32 %v2168, 0.70710677
      %v3221 = vmul.f32 %v2169, 0.70710677
      %v3222 = vmul.f32 %v2170, 0.70710677
      %v3223 = vmul.f32 %v2171, 0.70710677
      %v3224 = vmul.f32 %v2172, 0.70710677
      %v3225 = vmul.f32 %v2173, 0.70710677
      %v3226 = vmul.f32 %v2174, 0.70710677
      %v3227 = vmul.f32 %v2175, 0.70710677
      %v3228 = vmul.f32 %v2176, 0.70710677
      %v3229 = vmul.f32 %v2177, 0.70710677
      %v3230 = vmul.f32 %v2178, 0.70710677
      %v3231 = vmul.f32 %v2179, 0.70710677
      %v3232 = vmul.f32 %v2180, 0.70710677
      %v3233 = vmul.f32 %v2181, 0.70710677
      %v3234 = vmul.f32 %v2182, 0.70710677
      %v3235 = vmul.f32 %v2183, 0.70710677
      %v3236 = vmul.f32 %v2184, 0.70710677
      %v3237 = vand.u32 2147483647, %v3205
      %v3238 = vand.u32 2147483647, %v3206
      %v3239 = vand.u32 2147483647, %v3207
      %v3240 = vand.u32 2147483647, %v3208
      %v3241 = vand.u32 2147483647, %v3209
      %v3242 = vand.u32 2147483647, %v3210
      %v3243 = vand.u32 2147483647, %v3211
      %v3244 = vand.u32 2147483647, %v3212
      %v3245 = vand.u32 2147483647, %v3213
      %v3246 = vand.u32 2147483647, %v3214
      %v3247 = vand.u32 2147483647, %v3215
      %v3248 = vand.u32 2147483647, %v3216
      %v3249 = vand.u32 2147483647, %v3217
      %v3250 = vand.u32 2147483647, %v3218
      %v3251 = vand.u32 2147483647, %v3219
      %v3252 = vand.u32 2147483647, %v3220
      %v3253 = vand.u32 2147483647, %v3221
      %v3254 = vand.u32 2147483647, %v3222
      %v3255 = vand.u32 2147483647, %v3223
      %v3256 = vand.u32 2147483647, %v3224
      %v3257 = vand.u32 2147483647, %v3225
      %v3258 = vand.u32 2147483647, %v3226
      %v3259 = vand.u32 2147483647, %v3227
      %v3260 = vand.u32 2147483647, %v3228
      %v3261 = vand.u32 2147483647, %v3229
      %v3262 = vand.u32 2147483647, %v3230
      %v3263 = vand.u32 2147483647, %v3231
      %v3264 = vand.u32 2147483647, %v3232
      %v3265 = vand.u32 2147483647, %v3233
      %v3266 = vand.u32 2147483647, %v3234
      %v3267 = vand.u32 2147483647, %v3235
      %v3268 = vand.u32 2147483647, %v3236
      %v3269 = vmul.f32 %v3237, 0.3275911
      %v3270 = vmul.f32 %v3238, 0.3275911
      %v3271 = vmul.f32 %v3239, 0.3275911
      %v3272 = vmul.f32 %v3240, 0.3275911
      %v3273 = vmul.f32 %v3241, 0.3275911
      %v3274 = vmul.f32 %v3242, 0.3275911
      %v3275 = vmul.f32 %v3243, 0.3275911
      %v3276 = vmul.f32 %v3244, 0.3275911
      %v3277 = vmul.f32 %v3245, 0.3275911
      %v3278 = vmul.f32 %v3246, 0.3275911
      %v3279 = vmul.f32 %v3247, 0.3275911
      %v3280 = vmul.f32 %v3248, 0.3275911
      %v3281 = vmul.f32 %v3249, 0.3275911
      %v3282 = vmul.f32 %v3250, 0.3275911
      %v3283 = vmul.f32 %v3251, 0.3275911
      %v3284 = vmul.f32 %v3252, 0.3275911
      %v3285 = vmul.f32 %v3253, 0.3275911
      %v3286 = vmul.f32 %v3254, 0.3275911
      %v3287 = vmul.f32 %v3255, 0.3275911
      %v3288 = vmul.f32 %v3256, 0.3275911
      %v3289 = vmul.f32 %v3257, 0.3275911
      %v3290 = vmul.f32 %v3258, 0.3275911
      %v3291 = vmul.f32 %v3259, 0.3275911
      %v3292 = vmul.f32 %v3260, 0.3275911
      %v3293 = vmul.f32 %v3261, 0.3275911
      %v3294 = vmul.f32 %v3262, 0.3275911
      %v3295 = vmul.f32 %v3263, 0.3275911
      %v3296 = vmul.f32 %v3264, 0.3275911
      %v3297 = vmul.f32 %v3265, 0.3275911
      %v3298 = vmul.f32 %v3266, 0.3275911
      %v3299 = vmul.f32 %v3267, 0.3275911
      %v3300 = vmul.f32 %v3268, 0.3275911
      %v3301 = vadd.f32 %v3269, 1.0
      %v3302 = vadd.f32 %v3270, 1.0
      %v3303 = vadd.f32 %v3271, 1.0
      %v3304 = vadd.f32 %v3272, 1.0
      %v3305 = vadd.f32 %v3273, 1.0
      %v3306 = vadd.f32 %v3274, 1.0
      %v3307 = vadd.f32 %v3275, 1.0
      %v3308 = vadd.f32 %v3276, 1.0
      %v3309 = vadd.f32 %v3277, 1.0
      %v3310 = vadd.f32 %v3278, 1.0
      %v3311 = vadd.f32 %v3279, 1.0
      %v3312 = vadd.f32 %v3280, 1.0
      %v3313 = vadd.f32 %v3281, 1.0
      %v3314 = vadd.f32 %v3282, 1.0
      %v3315 = vadd.f32 %v3283, 1.0
      %v3316 = vadd.f32 %v3284, 1.0
      %v3317 = vadd.f32 %v3285, 1.0
      %v3318 = vadd.f32 %v3286, 1.0
      %v3319 = vadd.f32 %v3287, 1.0
      %v3320 = vadd.f32 %v3288, 1.0
      %v3321 = vadd.f32 %v3289, 1.0
      %v3322 = vadd.f32 %v3290, 1.0
      %v3323 = vadd.f32 %v3291, 1.0
      %v3324 = vadd.f32 %v3292, 1.0
      %v3325 = vadd.f32 %v3293, 1.0
      %v3326 = vadd.f32 %v3294, 1.0
      %v3327 = vadd.f32 %v3295, 1.0
      %v3328 = vadd.f32 %v3296, 1.0
      %v3329 = vadd.f32 %v3297, 1.0
      %v3330 = vadd.f32 %v3298, 1.0
      %v3331 = vadd.f32 %v3299, 1.0
      %v3332 = vadd.f32 %v3300, 1.0
      %v3333 = vrcp.pop %v3301
      %v3334 = vmul.f32 1.0, %v3333
      %v3335 = vrcp.pop %v3302
      %v3336 = vmul.f32 1.0, %v3335
      %v3337 = vrcp.pop %v3303
      %v3338 = vmul.f32 1.0, %v3337
      %v3339 = vrcp.pop %v3304
      %v3340 = vmul.f32 1.0, %v3339
      %v3341 = vrcp.pop %v3305
      %v3342 = vmul.f32 1.0, %v3341
      %v3343 = vrcp.pop %v3306
      %v3344 = vmul.f32 1.0, %v3343
      %v3345 = vrcp.pop %v3307
      %v3346 = vmul.f32 1.0, %v3345
      %v3347 = vrcp.pop %v3308
      %v3348 = vmul.f32 1.0, %v3347
      %v3349 = vrcp.pop %v3309
      %v3350 = vmul.f32 1.0, %v3349
      %v3351 = vrcp.pop %v3310
      %v3352 = vmul.f32 1.0, %v3351
      %v3353 = vrcp.pop %v3311
      %v3354 = vmul.f32 1.0, %v3353
      %v3355 = vrcp.pop %v3312
      %v3356 = vmul.f32 1.0, %v3355
      %v3357 = vrcp.pop %v3313
      %v3358 = vmul.f32 1.0, %v3357
      %v3359 = vrcp.pop %v3314
      %v3360 = vmul.f32 1.0, %v3359
      %v3361 = vrcp.pop %v3315
      %v3362 = vmul.f32 1.0, %v3361
      %v3363 = vrcp.pop %v3316
      %v3364 = vmul.f32 1.0, %v3363
      %v3365 = vrcp.pop %v3317
      %v3366 = vmul.f32 1.0, %v3365
      %v3367 = vrcp.pop %v3318
      %v3368 = vmul.f32 1.0, %v3367
      %v3369 = vrcp.pop %v3319
      %v3370 = vmul.f32 1.0, %v3369
      %v3371 = vrcp.pop %v3320
      %v3372 = vmul.f32 1.0, %v3371
      %v3373 = vrcp.pop %v3321
      %v3374 = vmul.f32 1.0, %v3373
      %v3375 = vrcp.pop %v3322
      %v3376 = vmul.f32 1.0, %v3375
      %v3377 = vrcp.pop %v3323
      %v3378 = vmul.f32 1.0, %v3377
      %v3379 = vrcp.pop %v3324
      %v3380 = vmul.f32 1.0, %v3379
      %v3381 = vrcp.pop %v3325
      %v3382 = vmul.f32 1.0, %v3381
      %v3383 = vrcp.pop %v3326
      %v3384 = vmul.f32 1.0, %v3383
      %v3385 = vrcp.pop %v3327
      %v3386 = vmul.f32 1.0, %v3385
      %v3387 = vrcp.pop %v3328
      %v3388 = vmul.f32 1.0, %v3387
      %v3389 = vrcp.pop %v3329
      %v3390 = vmul.f32 1.0, %v3389
      %v3391 = vrcp.pop %v3330
      %v3392 = vmul.f32 1.0, %v3391
      %v3393 = vrcp.pop %v3331
      %v3394 = vmul.f32 1.0, %v3393
      %v3395 = vrcp.pop %v3332
      %v3396 = vmul.f32 1.0, %v3395
      %v3397 = vmul.f32 %v3334, 1.0614054
      %v3398 = vmul.f32 %v3336, 1.0614054
      %v3399 = vmul.f32 %v3338, 1.0614054
      %v3400 = vmul.f32 %v3340, 1.0614054
      %v3401 = vmul.f32 %v3342, 1.0614054
      %v3402 = vmul.f32 %v3344, 1.0614054
      %v3403 = vmul.f32 %v3346, 1.0614054
      %v3404 = vmul.f32 %v3348, 1.0614054
      %v3405 = vmul.f32 %v3350, 1.0614054
      %v3406 = vmul.f32 %v3352, 1.0614054
      %v3407 = vmul.f32 %v3354, 1.0614054
      %v3408 = vmul.f32 %v3356, 1.0614054
      %v3409 = vmul.f32 %v3358, 1.0614054
      %v3410 = vmul.f32 %v3360, 1.0614054
      %v3411 = vmul.f32 %v3362, 1.0614054
      %v3412 = vmul.f32 %v3364, 1.0614054
      %v3413 = vmul.f32 %v3366, 1.0614054
      %v3414 = vmul.f32 %v3368, 1.0614054
      %v3415 = vmul.f32 %v3370, 1.0614054
      %v3416 = vmul.f32 %v3372, 1.0614054
      %v3417 = vmul.f32 %v3374, 1.0614054
      %v3418 = vmul.f32 %v3376, 1.0614054
      %v3419 = vmul.f32 %v3378, 1.0614054
      %v3420 = vmul.f32 %v3380, 1.0614054
      %v3421 = vmul.f32 %v3382, 1.0614054
      %v3422 = vmul.f32 %v3384, 1.0614054
      %v3423 = vmul.f32 %v3386, 1.0614054
      %v3424 = vmul.f32 %v3388, 1.0614054
      %v3425 = vmul.f32 %v3390, 1.0614054
      %v3426 = vmul.f32 %v3392, 1.0614054
      %v3427 = vmul.f32 %v3394, 1.0614054
      %v3428 = vmul.f32 %v3396, 1.0614054
      %v3429 = vadd.f32 %v3397, -1.4531521
      %v3430 = vadd.f32 %v3398, -1.4531521
      %v3431 = vadd.f32 %v3399, -1.4531521
      %v3432 = vadd.f32 %v3400, -1.4531521
      %v3433 = vadd.f32 %v3401, -1.4531521
      %v3434 = vadd.f32 %v3402, -1.4531521
      %v3435 = vadd.f32 %v3403, -1.4531521
      %v3436 = vadd.f32 %v3404, -1.4531521
      %v3437 = vadd.f32 %v3405, -1.4531521
      %v3438 = vadd.f32 %v3406, -1.4531521
      %v3439 = vadd.f32 %v3407, -1.4531521
      %v3440 = vadd.f32 %v3408, -1.4531521
      %v3441 = vadd.f32 %v3409, -1.4531521
      %v3442 = vadd.f32 %v3410, -1.4531521
      %v3443 = vadd.f32 %v3411, -1.4531521
      %v3444 = vadd.f32 %v3412, -1.4531521
      %v3445 = vadd.f32 %v3413, -1.4531521
      %v3446 = vadd.f32 %v3414, -1.4531521
      %v3447 = vadd.f32 %v3415, -1.4531521
      %v3448 = vadd.f32 %v3416, -1.4531521
      %v3449 = vadd.f32 %v3417, -1.4531521
      %v3450 = vadd.f32 %v3418, -1.4531521
      %v3451 = vadd.f32 %v3419, -1.4531521
      %v3452 = vadd.f32 %v3420, -1.4531521
      %v3453 = vadd.f32 %v3421, -1.4531521
      %v3454 = vadd.f32 %v3422, -1.4531521
      %v3455 = vadd.f32 %v3423, -1.4531521
      %v3456 = vadd.f32 %v3424, -1.4531521
      %v3457 = vadd.f32 %v3425, -1.4531521
      %v3458 = vadd.f32 %v3426, -1.4531521
      %v3459 = vadd.f32 %v3427, -1.4531521
      %v3460 = vadd.f32 %v3428, -1.4531521
      %v3461 = vmul.f32 %v3429, %v3334
      %v3462 = vmul.f32 %v3430, %v3336
      %v3463 = vmul.f32 %v3431, %v3338
      %v3464 = vmul.f32 %v3432, %v3340
      %v3465 = vmul.f32 %v3433, %v3342
      %v3466 = vmul.f32 %v3434, %v3344
      %v3467 = vmul.f32 %v3435, %v3346
      %v3468 = vmul.f32 %v3436, %v3348
      %v3469 = vmul.f32 %v3437, %v3350
      %v3470 = vmul.f32 %v3438, %v3352
      %v3471 = vmul.f32 %v3439, %v3354
      %v3472 = vmul.f32 %v3440, %v3356
      %v3473 = vmul.f32 %v3441, %v3358
      %v3474 = vmul.f32 %v3442, %v3360
      %v3475 = vmul.f32 %v3443, %v3362
      %v3476 = vmul.f32 %v3444, %v3364
      %v3477 = vmul.f32 %v3445, %v3366
      %v3478 = vmul.f32 %v3446, %v3368
      %v3479 = vmul.f32 %v3447, %v3370
      %v3480 = vmul.f32 %v3448, %v3372
      %v3481 = vmul.f32 %v3449, %v3374
      %v3482 = vmul.f32 %v3450, %v3376
      %v3483 = vmul.f32 %v3451, %v3378
      %v3484 = vmul.f32 %v3452, %v3380
      %v3485 = vmul.f32 %v3453, %v3382
      %v3486 = vmul.f32 %v3454, %v3384
      %v3487 = vmul.f32 %v3455, %v3386
      %v3488 = vmul.f32 %v3456, %v3388
      %v3489 = vmul.f32 %v3457, %v3390
      %v3490 = vmul.f32 %v3458, %v3392
      %v3491 = vmul.f32 %v3459, %v3394
      %v3492 = vmul.f32 %v3460, %v3396
      %v3493 = vadd.f32 %v3461, 1.4214138
      %v3494 = vadd.f32 %v3462, 1.4214138
      %v3495 = vadd.f32 %v3463, 1.4214138
      %v3496 = vadd.f32 %v3464, 1.4214138
      %v3497 = vadd.f32 %v3465, 1.4214138
      %v3498 = vadd.f32 %v3466, 1.4214138
      %v3499 = vadd.f32 %v3467, 1.4214138
      %v3500 = vadd.f32 %v3468, 1.4214138
      %v3501 = vadd.f32 %v3469, 1.4214138
      %v3502 = vadd.f32 %v3470, 1.4214138
      %v3503 = vadd.f32 %v3471, 1.4214138
      %v3504 = vadd.f32 %v3472, 1.4214138
      %v3505 = vadd.f32 %v3473, 1.4214138
      %v3506 = vadd.f32 %v3474, 1.4214138
      %v3507 = vadd.f32 %v3475, 1.4214138
      %v3508 = vadd.f32 %v3476, 1.4214138
      %v3509 = vadd.f32 %v3477, 1.4214138
      %v3510 = vadd.f32 %v3478, 1.4214138
      %v3511 = vadd.f32 %v3479, 1.4214138
      %v3512 = vadd.f32 %v3480, 1.4214138
      %v3513 = vadd.f32 %v3481, 1.4214138
      %v3514 = vadd.f32 %v3482, 1.4214138
      %v3515 = vadd.f32 %v3483, 1.4214138
      %v3516 = vadd.f32 %v3484, 1.4214138
      %v3517 = vadd.f32 %v3485, 1.4214138
      %v3518 = vadd.f32 %v3486, 1.4214138
      %v3519 = vadd.f32 %v3487, 1.4214138
      %v3520 = vadd.f32 %v3488, 1.4214138
      %v3521 = vadd.f32 %v3489, 1.4214138
      %v3522 = vadd.f32 %v3490, 1.4214138
      %v3523 = vadd.f32 %v3491, 1.4214138
      %v3524 = vadd.f32 %v3492, 1.4214138
      %v3525 = vmul.f32 %v3493, %v3334
      %v3526 = vmul.f32 %v3494, %v3336
      %v3527 = vmul.f32 %v3495, %v3338
      %v3528 = vmul.f32 %v3496, %v3340
      %v3529 = vmul.f32 %v3497, %v3342
      %v3530 = vmul.f32 %v3498, %v3344
      %v3531 = vmul.f32 %v3499, %v3346
      %v3532 = vmul.f32 %v3500, %v3348
      %v3533 = vmul.f32 %v3501, %v3350
      %v3534 = vmul.f32 %v3502, %v3352
      %v3535 = vmul.f32 %v3503, %v3354
      %v3536 = vmul.f32 %v3504, %v3356
      %v3537 = vmul.f32 %v3505, %v3358
      %v3538 = vmul.f32 %v3506, %v3360
      %v3539 = vmul.f32 %v3507, %v3362
      %v3540 = vmul.f32 %v3508, %v3364
      %v3541 = vmul.f32 %v3509, %v3366
      %v3542 = vmul.f32 %v3510, %v3368
      %v3543 = vmul.f32 %v3511, %v3370
      %v3544 = vmul.f32 %v3512, %v3372
      %v3545 = vmul.f32 %v3513, %v3374
      %v3546 = vmul.f32 %v3514, %v3376
      %v3547 = vmul.f32 %v3515, %v3378
      %v3548 = vmul.f32 %v3516, %v3380
      %v3549 = vmul.f32 %v3517, %v3382
      %v3550 = vmul.f32 %v3518, %v3384
      %v3551 = vmul.f32 %v3519, %v3386
      %v3552 = vmul.f32 %v3520, %v3388
      %v3553 = vmul.f32 %v3521, %v3390
      %v3554 = vmul.f32 %v3522, %v3392
      %v3555 = vmul.f32 %v3523, %v3394
      %v3556 = vmul.f32 %v3524, %v3396
      %v3557 = vadd.f32 %v3525, -0.28449672
      %v3558 = vadd.f32 %v3526, -0.28449672
      %v3559 = vadd.f32 %v3527, -0.28449672
      %v3560 = vadd.f32 %v3528, -0.28449672
      %v3561 = vadd.f32 %v3529, -0.28449672
      %v3562 = vadd.f32 %v3530, -0.28449672
      %v3563 = vadd.f32 %v3531, -0.28449672
      %v3564 = vadd.f32 %v3532, -0.28449672
      %v3565 = vadd.f32 %v3533, -0.28449672
      %v3566 = vadd.f32 %v3534, -0.28449672
      %v3567 = vadd.f32 %v3535, -0.28449672
      %v3568 = vadd.f32 %v3536, -0.28449672
      %v3569 = vadd.f32 %v3537, -0.28449672
      %v3570 = vadd.f32 %v3538, -0.28449672
      %v3571 = vadd.f32 %v3539, -0.28449672
      %v3572 = vadd.f32 %v3540, -0.28449672
      %v3573 = vadd.f32 %v3541, -0.28449672
      %v3574 = vadd.f32 %v3542, -0.28449672
      %v3575 = vadd.f32 %v3543, -0.28449672
      %v3576 = vadd.f32 %v3544, -0.28449672
      %v3577 = vadd.f32 %v3545, -0.28449672
      %v3578 = vadd.f32 %v3546, -0.28449672
      %v3579 = vadd.f32 %v3547, -0.28449672
      %v3580 = vadd.f32 %v3548, -0.28449672
      %v3581 = vadd.f32 %v3549, -0.28449672
      %v3582 = vadd.f32 %v3550, -0.28449672
      %v3583 = vadd.f32 %v3551, -0.28449672
      %v3584 = vadd.f32 %v3552, -0.28449672
      %v3585 = vadd.f32 %v3553, -0.28449672
      %v3586 = vadd.f32 %v3554, -0.28449672
      %v3587 = vadd.f32 %v3555, -0.28449672
      %v3588 = vadd.f32 %v3556, -0.28449672
      %v3589 = vmul.f32 %v3557, %v3334
      %v3590 = vmul.f32 %v3558, %v3336
      %v3591 = vmul.f32 %v3559, %v3338
      %v3592 = vmul.f32 %v3560, %v3340
      %v3593 = vmul.f32 %v3561, %v3342
      %v3594 = vmul.f32 %v3562, %v3344
      %v3595 = vmul.f32 %v3563, %v3346
      %v3596 = vmul.f32 %v3564, %v3348
      %v3597 = vmul.f32 %v3565, %v3350
      %v3598 = vmul.f32 %v3566, %v3352
      %v3599 = vmul.f32 %v3567, %v3354
      %v3600 = vmul.f32 %v3568, %v3356
      %v3601 = vmul.f32 %v3569, %v3358
      %v3602 = vmul.f32 %v3570, %v3360
      %v3603 = vmul.f32 %v3571, %v3362
      %v3604 = vmul.f32 %v3572, %v3364
      %v3605 = vmul.f32 %v3573, %v3366
      %v3606 = vmul.f32 %v3574, %v3368
      %v3607 = vmul.f32 %v3575, %v3370
      %v3608 = vmul.f32 %v3576, %v3372
      %v3609 = vmul.f32 %v3577, %v3374
      %v3610 = vmul.f32 %v3578, %v3376
      %v3611 = vmul.f32 %v3579, %v3378
      %v3612 = vmul.f32 %v3580, %v3380
      %v3613 = vmul.f32 %v3581, %v3382
      %v3614 = vmul.f32 %v3582, %v3384
      %v3615 = vmul.f32 %v3583, %v3386
      %v3616 = vmul.f32 %v3584, %v3388
      %v3617 = vmul.f32 %v3585, %v3390
      %v3618 = vmul.f32 %v3586, %v3392
      %v3619 = vmul.f32 %v3587, %v3394
      %v3620 = vmul.f32 %v3588, %v3396
      %v3621 = vadd.f32 %v3589, 0.2548296
      %v3622 = vadd.f32 %v3590, 0.2548296
      %v3623 = vadd.f32 %v3591, 0.2548296
      %v3624 = vadd.f32 %v3592, 0.2548296
      %v3625 = vadd.f32 %v3593, 0.2548296
      %v3626 = vadd.f32 %v3594, 0.2548296
      %v3627 = vadd.f32 %v3595, 0.2548296
      %v3628 = vadd.f32 %v3596, 0.2548296
      %v3629 = vadd.f32 %v3597, 0.2548296
      %v3630 = vadd.f32 %v3598, 0.2548296
      %v3631 = vadd.f32 %v3599, 0.2548296
      %v3632 = vadd.f32 %v3600, 0.2548296
      %v3633 = vadd.f32 %v3601, 0.2548296
      %v3634 = vadd.f32 %v3602, 0.2548296
      %v3635 = vadd.f32 %v3603, 0.2548296
      %v3636 = vadd.f32 %v3604, 0.2548296
      %v3637 = vadd.f32 %v3605, 0.2548296
      %v3638 = vadd.f32 %v3606, 0.2548296
      %v3639 = vadd.f32 %v3607, 0.2548296
      %v3640 = vadd.f32 %v3608, 0.2548296
      %v3641 = vadd.f32 %v3609, 0.2548296
      %v3642 = vadd.f32 %v3610, 0.2548296
      %v3643 = vadd.f32 %v3611, 0.2548296
      %v3644 = vadd.f32 %v3612, 0.2548296
      %v3645 = vadd.f32 %v3613, 0.2548296
      %v3646 = vadd.f32 %v3614, 0.2548296
      %v3647 = vadd.f32 %v3615, 0.2548296
      %v3648 = vadd.f32 %v3616, 0.2548296
      %v3649 = vadd.f32 %v3617, 0.2548296
      %v3650 = vadd.f32 %v3618, 0.2548296
      %v3651 = vadd.f32 %v3619, 0.2548296
      %v3652 = vadd.f32 %v3620, 0.2548296
      %v3653 = vmul.f32 %v3621, %v3334
      %v3654 = vmul.f32 %v3622, %v3336
      %v3655 = vmul.f32 %v3623, %v3338
      %v3656 = vmul.f32 %v3624, %v3340
      %v3657 = vmul.f32 %v3625, %v3342
      %v3658 = vmul.f32 %v3626, %v3344
      %v3659 = vmul.f32 %v3627, %v3346
      %v3660 = vmul.f32 %v3628, %v3348
      %v3661 = vmul.f32 %v3629, %v3350
      %v3662 = vmul.f32 %v3630, %v3352
      %v3663 = vmul.f32 %v3631, %v3354
      %v3664 = vmul.f32 %v3632, %v3356
      %v3665 = vmul.f32 %v3633, %v3358
      %v3666 = vmul.f32 %v3634, %v3360
      %v3667 = vmul.f32 %v3635, %v3362
      %v3668 = vmul.f32 %v3636, %v3364
      %v3669 = vmul.f32 %v3637, %v3366
      %v3670 = vmul.f32 %v3638, %v3368
      %v3671 = vmul.f32 %v3639, %v3370
      %v3672 = vmul.f32 %v3640, %v3372
      %v3673 = vmul.f32 %v3641, %v3374
      %v3674 = vmul.f32 %v3642, %v3376
      %v3675 = vmul.f32 %v3643, %v3378
      %v3676 = vmul.f32 %v3644, %v3380
      %v3677 = vmul.f32 %v3645, %v3382
      %v3678 = vmul.f32 %v3646, %v3384
      %v3679 = vmul.f32 %v3647, %v3386
      %v3680 = vmul.f32 %v3648, %v3388
      %v3681 = vmul.f32 %v3649, %v3390
      %v3682 = vmul.f32 %v3650, %v3392
      %v3683 = vmul.f32 %v3651, %v3394
      %v3684 = vmul.f32 %v3652, %v3396
      %v3685 = vmul.f32 %v3237, %v3237
      %v3686 = vmul.f32 %v3238, %v3238
      %v3687 = vmul.f32 %v3239, %v3239
      %v3688 = vmul.f32 %v3240, %v3240
      %v3689 = vmul.f32 %v3241, %v3241
      %v3690 = vmul.f32 %v3242, %v3242
      %v3691 = vmul.f32 %v3243, %v3243
      %v3692 = vmul.f32 %v3244, %v3244
      %v3693 = vmul.f32 %v3245, %v3245
      %v3694 = vmul.f32 %v3246, %v3246
      %v3695 = vmul.f32 %v3247, %v3247
      %v3696 = vmul.f32 %v3248, %v3248
      %v3697 = vmul.f32 %v3249, %v3249
      %v3698 = vmul.f32 %v3250, %v3250
      %v3699 = vmul.f32 %v3251, %v3251
      %v3700 = vmul.f32 %v3252, %v3252
      %v3701 = vmul.f32 %v3253, %v3253
      %v3702 = vmul.f32 %v3254, %v3254
      %v3703 = vmul.f32 %v3255, %v3255
      %v3704 = vmul.f32 %v3256, %v3256
      %v3705 = vmul.f32 %v3257, %v3257
      %v3706 = vmul.f32 %v3258, %v3258
      %v3707 = vmul.f32 %v3259, %v3259
      %v3708 = vmul.f32 %v3260, %v3260
      %v3709 = vmul.f32 %v3261, %v3261
      %v3710 = vmul.f32 %v3262, %v3262
      %v3711 = vmul.f32 %v3263, %v3263
      %v3712 = vmul.f32 %v3264, %v3264
      %v3713 = vmul.f32 %v3265, %v3265
      %v3714 = vmul.f32 %v3266, %v3266
      %v3715 = vmul.f32 %v3267, %v3267
      %v3716 = vmul.f32 %v3268, %v3268
      %v3717 = vsub.f32 0.0, %v3685
      %v3718 = vsub.f32 0.0, %v3686
      %v3719 = vsub.f32 0.0, %v3687
      %v3720 = vsub.f32 0.0, %v3688
      %v3721 = vsub.f32 0.0, %v3689
      %v3722 = vsub.f32 0.0, %v3690
      %v3723 = vsub.f32 0.0, %v3691
      %v3724 = vsub.f32 0.0, %v3692
      %v3725 = vsub.f32 0.0, %v3693
      %v3726 = vsub.f32 0.0, %v3694
      %v3727 = vsub.f32 0.0, %v3695
      %v3728 = vsub.f32 0.0, %v3696
      %v3729 = vsub.f32 0.0, %v3697
      %v3730 = vsub.f32 0.0, %v3698
      %v3731 = vsub.f32 0.0, %v3699
      %v3732 = vsub.f32 0.0, %v3700
      %v3733 = vsub.f32 0.0, %v3701
      %v3734 = vsub.f32 0.0, %v3702
      %v3735 = vsub.f32 0.0, %v3703
      %v3736 = vsub.f32 0.0, %v3704
      %v3737 = vsub.f32 0.0, %v3705
      %v3738 = vsub.f32 0.0, %v3706
      %v3739 = vsub.f32 0.0, %v3707
      %v3740 = vsub.f32 0.0, %v3708
      %v3741 = vsub.f32 0.0, %v3709
      %v3742 = vsub.f32 0.0, %v3710
      %v3743 = vsub.f32 0.0, %v3711
      %v3744 = vsub.f32 0.0, %v3712
      %v3745 = vsub.f32 0.0, %v3713
      %v3746 = vsub.f32 0.0, %v3714
      %v3747 = vsub.f32 0.0, %v3715
      %v3748 = vsub.f32 0.0, %v3716
      %v3749 = vmul.f32 %v3717, 1.442695
      %v3750 = vpow.pop %v3749
      %v3751 = vmul.f32 %v3718, 1.442695
      %v3752 = vpow.pop %v3751
      %v3753 = vmul.f32 %v3719, 1.442695
      %v3754 = vpow.pop %v3753
      %v3755 = vmul.f32 %v3720, 1.442695
      %v3756 = vpow.pop %v3755
      %v3757 = vmul.f32 %v3721, 1.442695
      %v3758 = vpow.pop %v3757
      %v3759 = vmul.f32 %v3722, 1.442695
      %v3760 = vpow.pop %v3759
      %v3761 = vmul.f32 %v3723, 1.442695
      %v3762 = vpow.pop %v3761
      %v3763 = vmul.f32 %v3724, 1.442695
      %v3764 = vpow.pop %v3763
      %v3765 = vmul.f32 %v3725, 1.442695
      %v3766 = vpow.pop %v3765
      %v3767 = vmul.f32 %v3726, 1.442695
      %v3768 = vpow.pop %v3767
      %v3769 = vmul.f32 %v3727, 1.442695
      %v3770 = vpow.pop %v3769
      %v3771 = vmul.f32 %v3728, 1.442695
      %v3772 = vpow.pop %v3771
      %v3773 = vmul.f32 %v3729, 1.442695
      %v3774 = vpow.pop %v3773
      %v3775 = vmul.f32 %v3730, 1.442695
      %v3776 = vpow.pop %v3775
      %v3777 = vmul.f32 %v3731, 1.442695
      %v3778 = vpow.pop %v3777
      %v3779 = vmul.f32 %v3732, 1.442695
      %v3780 = vpow.pop %v3779
      %v3781 = vmul.f32 %v3733, 1.442695
      %v3782 = vpow.pop %v3781
      %v3783 = vmul.f32 %v3734, 1.442695
      %v3784 = vpow.pop %v3783
      %v3785 = vmul.f32 %v3735, 1.442695
      %v3786 = vpow.pop %v3785
      %v3787 = vmul.f32 %v3736, 1.442695
      %v3788 = vpow.pop %v3787
      %v3789 = vmul.f32 %v3737, 1.442695
      %v3790 = vpow.pop %v3789
      %v3791 = vmul.f32 %v3738, 1.442695
      %v3792 = vpow.pop %v3791
      %v3793 = vmul.f32 %v3739, 1.442695
      %v3794 = vpow.pop %v3793
      %v3795 = vmul.f32 %v3740, 1.442695
      %v3796 = vpow.pop %v3795
      %v3797 = vmul.f32 %v3741, 1.442695
      %v3798 = vpow.pop %v3797
      %v3799 = vmul.f32 %v3742, 1.442695
      %v3800 = vpow.pop %v3799
      %v3801 = vmul.f32 %v3743, 1.442695
      %v3802 = vpow.pop %v3801
      %v3803 = vmul.f32 %v3744, 1.442695
      %v3804 = vpow.pop %v3803
      %v3805 = vmul.f32 %v3745, 1.442695
      %v3806 = vpow.pop %v3805
      %v3807 = vmul.f32 %v3746, 1.442695
      %v3808 = vpow.pop %v3807
      %v3809 = vmul.f32 %v3747, 1.442695
      %v3810 = vpow.pop %v3809
      %v3811 = vmul.f32 %v3748, 1.442695
      %v3812 = vpow.pop %v3811
      %v3813 = vmul.f32 %v3653, %v3750
      %v3814 = vmul.f32 %v3654, %v3752
      %v3815 = vmul.f32 %v3655, %v3754
      %v3816 = vmul.f32 %v3656, %v3756
      %v3817 = vmul.f32 %v3657, %v3758
      %v3818 = vmul.f32 %v3658, %v3760
      %v3819 = vmul.f32 %v3659, %v3762
      %v3820 = vmul.f32 %v3660, %v3764
      %v3821 = vmul.f32 %v3661, %v3766
      %v3822 = vmul.f32 %v3662, %v3768
      %v3823 = vmul.f32 %v3663, %v3770
      %v3824 = vmul.f32 %v3664, %v3772
      %v3825 = vmul.f32 %v3665, %v3774
      %v3826 = vmul.f32 %v3666, %v3776
      %v3827 = vmul.f32 %v3667, %v3778
      %v3828 = vmul.f32 %v3668, %v3780
      %v3829 = vmul.f32 %v3669, %v3782
      %v3830 = vmul.f32 %v3670, %v3784
      %v3831 = vmul.f32 %v3671, %v3786
      %v3832 = vmul.f32 %v3672, %v3788
      %v3833 = vmul.f32 %v3673, %v3790
      %v3834 = vmul.f32 %v3674, %v3792
      %v3835 = vmul.f32 %v3675, %v3794
      %v3836 = vmul.f32 %v3676, %v3796
      %v3837 = vmul.f32 %v3677, %v3798
      %v3838 = vmul.f32 %v3678, %v3800
      %v3839 = vmul.f32 %v3679, %v3802
      %v3840 = vmul.f32 %v3680, %v3804
      %v3841 = vmul.f32 %v3681, %v3806
      %v3842 = vmul.f32 %v3682, %v3808
      %v3843 = vmul.f32 %v3683, %v3810
      %v3844 = vmul.f32 %v3684, %v3812
      %v3845 = vsub.f32 1.0, %v3813
      %v3846 = vsub.f32 1.0, %v3814
      %v3847 = vsub.f32 1.0, %v3815
      %v3848 = vsub.f32 1.0, %v3816
      %v3849 = vsub.f32 1.0, %v3817
      %v3850 = vsub.f32 1.0, %v3818
      %v3851 = vsub.f32 1.0, %v3819
      %v3852 = vsub.f32 1.0, %v3820
      %v3853 = vsub.f32 1.0, %v3821
      %v3854 = vsub.f32 1.0, %v3822
      %v3855 = vsub.f32 1.0, %v3823
      %v3856 = vsub.f32 1.0, %v3824
      %v3857 = vsub.f32 1.0, %v3825
      %v3858 = vsub.f32 1.0, %v3826
      %v3859 = vsub.f32 1.0, %v3827
      %v3860 = vsub.f32 1.0, %v3828
      %v3861 = vsub.f32 1.0, %v3829
      %v3862 = vsub.f32 1.0, %v3830
      %v3863 = vsub.f32 1.0, %v3831
      %v3864 = vsub.f32 1.0, %v3832
      %v3865 = vsub.f32 1.0, %v3833
      %v3866 = vsub.f32 1.0, %v3834
      %v3867 = vsub.f32 1.0, %v3835
      %v3868 = vsub.f32 1.0, %v3836
      %v3869 = vsub.f32 1.0, %v3837
      %v3870 = vsub.f32 1.0, %v3838
      %v3871 = vsub.f32 1.0, %v3839
      %v3872 = vsub.f32 1.0, %v3840
      %v3873 = vsub.f32 1.0, %v3841
      %v3874 = vsub.f32 1.0, %v3842
      %v3875 = vsub.f32 1.0, %v3843
      %v3876 = vsub.f32 1.0, %v3844
      %vm3877 = vcmp.lt.f32.partialorder %v3205, 0.0
      %vm3878 = vcmp.lt.f32.partialorder %v3206, 0.0
      %vm3879 = vcmp.lt.f32.partialorder %v3207, 0.0
      %vm3880 = vcmp.lt.f32.partialorder %v3208, 0.0
      %vm3881 = vcmp.lt.f32.partialorder %v3209, 0.0
      %vm3882 = vcmp.lt.f32.partialorder %v3210, 0.0
      %vm3883 = vcmp.lt.f32.partialorder %v3211, 0.0
      %vm3884 = vcmp.lt.f32.partialorder %v3212, 0.0
      %vm3885 = vcmp.lt.f32.partialorder %v3213, 0.0
      %vm3886 = vcmp.lt.f32.partialorder %v3214, 0.0
      %vm3887 = vcmp.lt.f32.partialorder %v3215, 0.0
      %vm3888 = vcmp.lt.f32.partialorder %v3216, 0.0
      %vm3889 = vcmp.lt.f32.partialorder %v3217, 0.0
      %vm3890 = vcmp.lt.f32.partialorder %v3218, 0.0
      %vm3891 = vcmp.lt.f32.partialorder %v3219, 0.0
      %vm3892 = vcmp.lt.f32.partialorder %v3220, 0.0
      %vm3893 = vcmp.lt.f32.partialorder %v3221, 0.0
      %vm3894 = vcmp.lt.f32.partialorder %v3222, 0.0
      %vm3895 = vcmp.lt.f32.partialorder %v3223, 0.0
      %vm3896 = vcmp.lt.f32.partialorder %v3224, 0.0
      %vm3897 = vcmp.lt.f32.partialorder %v3225, 0.0
      %vm3898 = vcmp.lt.f32.partialorder %v3226, 0.0
      %vm3899 = vcmp.lt.f32.partialorder %v3227, 0.0
      %vm3900 = vcmp.lt.f32.partialorder %v3228, 0.0
      %vm3901 = vcmp.lt.f32.partialorder %v3229, 0.0
      %vm3902 = vcmp.lt.f32.partialorder %v3230, 0.0
      %vm3903 = vcmp.lt.f32.partialorder %v3231, 0.0
      %vm3904 = vcmp.lt.f32.partialorder %v3232, 0.0
      %vm3905 = vcmp.lt.f32.partialorder %v3233, 0.0
      %vm3906 = vcmp.lt.f32.partialorder %v3234, 0.0
      %vm3907 = vcmp.lt.f32.partialorder %v3235, 0.0
      %vm3908 = vcmp.lt.f32.partialorder %v3236, 0.0
      %v3909 = vsub.f32 0.0, %v3845
      %v3910 = vsub.f32 0.0, %v3846
      %v3911 = vsub.f32 0.0, %v3847
      %v3912 = vsub.f32 0.0, %v3848
      %v3913 = vsub.f32 0.0, %v3849
      %v3914 = vsub.f32 0.0, %v3850
      %v3915 = vsub.f32 0.0, %v3851
      %v3916 = vsub.f32 0.0, %v3852
      %v3917 = vsub.f32 0.0, %v3853
      %v3918 = vsub.f32 0.0, %v3854
      %v3919 = vsub.f32 0.0, %v3855
      %v3920 = vsub.f32 0.0, %v3856
      %v3921 = vsub.f32 0.0, %v3857
      %v3922 = vsub.f32 0.0, %v3858
      %v3923 = vsub.f32 0.0, %v3859
      %v3924 = vsub.f32 0.0, %v3860
      %v3925 = vsub.f32 0.0, %v3861
      %v3926 = vsub.f32 0.0, %v3862
      %v3927 = vsub.f32 0.0, %v3863
      %v3928 = vsub.f32 0.0, %v3864
      %v3929 = vsub.f32 0.0, %v3865
      %v3930 = vsub.f32 0.0, %v3866
      %v3931 = vsub.f32 0.0, %v3867
      %v3932 = vsub.f32 0.0, %v3868
      %v3933 = vsub.f32 0.0, %v3869
      %v3934 = vsub.f32 0.0, %v3870
      %v3935 = vsub.f32 0.0, %v3871
      %v3936 = vsub.f32 0.0, %v3872
      %v3937 = vsub.f32 0.0, %v3873
      %v3938 = vsub.f32 0.0, %v3874
      %v3939 = vsub.f32 0.0, %v3875
      %v3940 = vsub.f32 0.0, %v3876
      %v3941 = vsel %vm3877, %v3909, %v3845
      %v3942 = vsel %vm3878, %v3910, %v3846
      %v3943 = vsel %vm3879, %v3911, %v3847
      %v3944 = vsel %vm3880, %v3912, %v3848
      %v3945 = vsel %vm3881, %v3913, %v3849
      %v3946 = vsel %vm3882, %v3914, %v3850
      %v3947 = vsel %vm3883, %v3915, %v3851
      %v3948 = vsel %vm3884, %v3916, %v3852
      %v3949 = vsel %vm3885, %v3917, %v3853
      %v3950 = vsel %vm3886, %v3918, %v3854
      %v3951 = vsel %vm3887, %v3919, %v3855
      %v3952 = vsel %vm3888, %v3920, %v3856
      %v3953 = vsel %vm3889, %v3921, %v3857
      %v3954 = vsel %vm3890, %v3922, %v3858
      %v3955 = vsel %vm3891, %v3923, %v3859
      %v3956 = vsel %vm3892, %v3924, %v3860
      %v3957 = vsel %vm3893, %v3925, %v3861
      %v3958 = vsel %vm3894, %v3926, %v3862
      %v3959 = vsel %vm3895, %v3927, %v3863
      %v3960 = vsel %vm3896, %v3928, %v3864
      %v3961 = vsel %vm3897, %v3929, %v3865
      %v3962 = vsel %vm3898, %v3930, %v3866
      %v3963 = vsel %vm3899, %v3931, %v3867
      %v3964 = vsel %vm3900, %v3932, %v3868
      %v3965 = vsel %vm3901, %v3933, %v3869
      %v3966 = vsel %vm3902, %v3934, %v3870
      %v3967 = vsel %vm3903, %v3935, %v3871
      %v3968 = vsel %vm3904, %v3936, %v3872
      %v3969 = vsel %vm3905, %v3937, %v3873
      %v3970 = vsel %vm3906, %v3938, %v3874
      %v3971 = vsel %vm3907, %v3939, %v3875
      %v3972 = vsel %vm3908, %v3940, %v3876
      %v3973 = vmul.f32 %v2153, 0.5
      %v3974 = vmul.f32 %v2154, 0.5
      %v3975 = vmul.f32 %v2155, 0.5
      %v3976 = vmul.f32 %v2156, 0.5
      %v3977 = vmul.f32 %v2157, 0.5
      %v3978 = vmul.f32 %v2158, 0.5
      %v3979 = vmul.f32 %v2159, 0.5
      %v3980 = vmul.f32 %v2160, 0.5
      %v3981 = vmul.f32 %v2161, 0.5
      %v3982 = vmul.f32 %v2162, 0.5
      %v3983 = vmul.f32 %v2163, 0.5
      %v3984 = vmul.f32 %v2164, 0.5
      %v3985 = vmul.f32 %v2165, 0.5
      %v3986 = vmul.f32 %v2166, 0.5
      %v3987 = vmul.f32 %v2167, 0.5
      %v3988 = vmul.f32 %v2168, 0.5
      %v3989 = vmul.f32 %v2169, 0.5
      %v3990 = vmul.f32 %v2170, 0.5
      %v3991 = vmul.f32 %v2171, 0.5
      %v3992 = vmul.f32 %v2172, 0.5
      %v3993 = vmul.f32 %v2173, 0.5
      %v3994 = vmul.f32 %v2174, 0.5
      %v3995 = vmul.f32 %v2175, 0.5
      %v3996 = vmul.f32 %v2176, 0.5
      %v3997 = vmul.f32 %v2177, 0.5
      %v3998 = vmul.f32 %v2178, 0.5
      %v3999 = vmul.f32 %v2179, 0.5
      %v4000 = vmul.f32 %v2180, 0.5
      %v4001 = vmul.f32 %v2181, 0.5
      %v4002 = vmul.f32 %v2182, 0.5
      %v4003 = vmul.f32 %v2183, 0.5
      %v4004 = vmul.f32 %v2184, 0.5
      %v4005 = vadd.f32 %v3941, 1.0
      %v4006 = vadd.f32 %v3942, 1.0
      %v4007 = vadd.f32 %v3943, 1.0
      %v4008 = vadd.f32 %v3944, 1.0
      %v4009 = vadd.f32 %v3945, 1.0
      %v4010 = vadd.f32 %v3946, 1.0
      %v4011 = vadd.f32 %v3947, 1.0
      %v4012 = vadd.f32 %v3948, 1.0
      %v4013 = vadd.f32 %v3949, 1.0
      %v4014 = vadd.f32 %v3950, 1.0
      %v4015 = vadd.f32 %v3951, 1.0
      %v4016 = vadd.f32 %v3952, 1.0
      %v4017 = vadd.f32 %v3953, 1.0
      %v4018 = vadd.f32 %v3954, 1.0
      %v4019 = vadd.f32 %v3955, 1.0
      %v4020 = vadd.f32 %v3956, 1.0
      %v4021 = vadd.f32 %v3957, 1.0
      %v4022 = vadd.f32 %v3958, 1.0
      %v4023 = vadd.f32 %v3959, 1.0
      %v4024 = vadd.f32 %v3960, 1.0
      %v4025 = vadd.f32 %v3961, 1.0
      %v4026 = vadd.f32 %v3962, 1.0
      %v4027 = vadd.f32 %v3963, 1.0
      %v4028 = vadd.f32 %v3964, 1.0
      %v4029 = vadd.f32 %v3965, 1.0
      %v4030 = vadd.f32 %v3966, 1.0
      %v4031 = vadd.f32 %v3967, 1.0
      %v4032 = vadd.f32 %v3968, 1.0
      %v4033 = vadd.f32 %v3969, 1.0
      %v4034 = vadd.f32 %v3970, 1.0
      %v4035 = vadd.f32 %v3971, 1.0
      %v4036 = vadd.f32 %v3972, 1.0
      %v4037 = vmul.f32 %v3973, %v4005
      %v4038 = vmul.f32 %v3974, %v4006
      %v4039 = vmul.f32 %v3975, %v4007
      %v4040 = vmul.f32 %v3976, %v4008
      %v4041 = vmul.f32 %v3977, %v4009
      %v4042 = vmul.f32 %v3978, %v4010
      %v4043 = vmul.f32 %v3979, %v4011
      %v4044 = vmul.f32 %v3980, %v4012
      %v4045 = vmul.f32 %v3981, %v4013
      %v4046 = vmul.f32 %v3982, %v4014
      %v4047 = vmul.f32 %v3983, %v4015
      %v4048 = vmul.f32 %v3984, %v4016
      %v4049 = vmul.f32 %v3985, %v4017
      %v4050 = vmul.f32 %v3986, %v4018
      %v4051 = vmul.f32 %v3987, %v4019
      %v4052 = vmul.f32 %v3988, %v4020
      %v4053 = vmul.f32 %v3989, %v4021
      %v4054 = vmul.f32 %v3990, %v4022
      %v4055 = vmul.f32 %v3991, %v4023
      %v4056 = vmul.f32 %v3992, %v4024
      %v4057 = vmul.f32 %v3993, %v4025
      %v4058 = vmul.f32 %v3994, %v4026
      %v4059 = vmul.f32 %v3995, %v4027
      %v4060 = vmul.f32 %v3996, %v4028
      %v4061 = vmul.f32 %v3997, %v4029
      %v4062 = vmul.f32 %v3998, %v4030
      %v4063 = vmul.f32 %v3999, %v4031
      %v4064 = vmul.f32 %v4000, %v4032
      %v4065 = vmul.f32 %v4001, %v4033
      %v4066 = vmul.f32 %v4002, %v4034
      %v4067 = vmul.f32 %v4003, %v4035
      %v4068 = vmul.f32 %v4004, %v4036
      %v4069 = vmul.f32 %v4037, %v3173
      %v4070 = vmul.f32 %v4038, %v3174
      %v4071 = vmul.f32 %v4039, %v3175
      %v4072 = vmul.f32 %v4040, %v3176
      %v4073 = vmul.f32 %v4041, %v3177
      %v4074 = vmul.f32 %v4042, %v3178
      %v4075 = vmul.f32 %v4043, %v3179
      %v4076 = vmul.f32 %v4044, %v3180
      %v4077 = vmul.f32 %v4045, %v3181
      %v4078 = vmul.f32 %v4046, %v3182
      %v4079 = vmul.f32 %v4047, %v3183
      %v4080 = vmul.f32 %v4048, %v3184
      %v4081 = vmul.f32 %v4049, %v3185
      %v4082 = vmul.f32 %v4050, %v3186
      %v4083 = vmul.f32 %v4051, %v3187
      %v4084 = vmul.f32 %v4052, %v3188
      %v4085 = vmul.f32 %v4053, %v3189
      %v4086 = vmul.f32 %v4054, %v3190
      %v4087 = vmul.f32 %v4055, %v3191
      %v4088 = vmul.f32 %v4056, %v3192
      %v4089 = vmul.f32 %v4057, %v3193
      %v4090 = vmul.f32 %v4058, %v3194
      %v4091 = vmul.f32 %v4059, %v3195
      %v4092 = vmul.f32 %v4060, %v3196
      %v4093 = vmul.f32 %v4061, %v3197
      %v4094 = vmul.f32 %v4062, %v3198
      %v4095 = vmul.f32 %v4063, %v3199
      %v4096 = vmul.f32 %v4064, %v3200
      %v4097 = vmul.f32 %v4065, %v3201
      %v4098 = vmul.f32 %v4066, %v3202
      %v4099 = vmul.f32 %v4067, %v3203
      %v4100 = vmul.f32 %v4068, %v3204
      %v4101 = vpack.c.bf16 %v4070, %v4069
      %v4102 = vpack.c.bf16 %v4072, %v4071
      %v4103 = vpack.c.bf16 %v4074, %v4073
      %v4104 = vpack.c.bf16 %v4076, %v4075
      %v4105 = vpack.c.bf16 %v4078, %v4077
      %v4106 = vpack.c.bf16 %v4080, %v4079
      %v4107 = vpack.c.bf16 %v4082, %v4081
      %v4108 = vpack.c.bf16 %v4084, %v4083
      %v4109 = vpack.c.bf16 %v4086, %v4085
      %v4110 = vpack.c.bf16 %v4088, %v4087
      %v4111 = vpack.c.bf16 %v4090, %v4089
      %v4112 = vpack.c.bf16 %v4092, %v4091
      %v4113 = vpack.c.bf16 %v4094, %v4093
      %v4114 = vpack.c.bf16 %v4096, %v4095
      %v4115 = vpack.c.bf16 %v4098, %v4097
      %v4116 = vpack.c.bf16 %v4100, %v4099
      %v4117 = vld [vmem:[%s6] sm:$0xff]
      %v4118 = vpack.c.bf16 %v4117, %v4117
      %v4119 = vld [vmem:[%s7] sm:$0x1]
      %v4121 = vlaneseq
      %v4122 = vshrl.u32 %v4121, 7
      %v4123 = vsub.s32 0, %v4122
      %v4124 = vrot.slane %v4119, %v4123
      %vm4126 = vcmask 64512
      %v4128 = vsel %vm4126, %v4101, 0
      %v4131 = vsel %vm4126, %v4102, 0
      %v4134 = vsel %vm4126, %v4103, 0
      %v4137 = vsel %vm4126, %v4104, 0
      %v4140 = vsel %vm4126, %v4105, 0
      %v4143 = vsel %vm4126, %v4106, 0
      %v4146 = vsel %vm4126, %v4107, 0
      %v4149 = vsel %vm4126, %v4108, 0
      %v4152 = vsel %vm4126, %v4109, 0
      %v4155 = vsel %vm4126, %v4110, 0
      %v4158 = vsel %vm4126, %v4111, 0
      %v4161 = vsel %vm4126, %v4112, 0
      %v4164 = vsel %vm4126, %v4113, 0
      %v4167 = vsel %vm4126, %v4114, 0
      %v4170 = vsel %vm4126, %v4115, 0
      %v4173 = vsel %vm4126, %v4116, 0
      %vm4175 = vcmask 1043456
      %v4177 = vsel %vm4175, %v4118, 0
      %4179 = vmatprep.subr.bf16.mxu0 0
      %4180 = vmatpush1.bf16.msra.mxu0 %v4177
      %4181 = vmatprep.subr.bf16.mxu0 0
      %4182 = vmatpush1.bf16.msra.mxu0 0
      %4183 = vmatprep.subr.bf16.mxu0 0
      %4184 = vmatpush1.bf16.msra.mxu0 0
      %4185 = vmatprep.subr.bf16.mxu0 0
      %4186 = vmatpush1.bf16.msra.mxu0 0
      %4187 = vmatprep.subr.bf16.mxu0 0
      %4188 = vmatpush1.bf16.msra.mxu0 0
      %4189 = vmatprep.subr.bf16.mxu0 0
      %4190 = vmatpush1.bf16.msra.mxu0 0
      %4191 = vmatprep.subr.bf16.mxu0 0
      %4192 = vmatpush1.bf16.msra.mxu0 0
      %4193 = vmatprep.subr.bf16.mxu0 0
      %4194 = vmatpush1.bf16.msra.mxu0 0
      %4195 = vmatprep.subr.bf16.mxu0 0
      %4196 = vmatpush1.bf16.msra.mxu0 0
      %4197 = vmatprep.subr.bf16.mxu0 0
      %4198 = vmatpush1.bf16.msra.mxu0 0
      %4199 = vmatprep.subr.bf16.mxu0 0
      %4200 = vmatpush1.bf16.msra.mxu0 0
      %4201 = vmatprep.subr.bf16.mxu0 0
      %4202 = vmatpush1.bf16.msra.mxu0 0
      %4203 = vmatprep.subr.bf16.mxu0 0
      %4204 = vmatpush1.bf16.msra.mxu0 0
      %4205 = vmatprep.subr.bf16.mxu0 0
      %4206 = vmatpush1.bf16.msra.mxu0 0
      %4207 = vmatprep.subr.bf16.mxu0 0
      %4208 = vmatpush1.bf16.msra.mxu0 0
      %4209 = vmatprep.subr.bf16.mxu0 0
      %4210 = vmatpush1.bf16.msra.mxu0 0
      %4211 = vmatprep.mubr.bf16.mxu0 0
      %4212 = vmatmul.mubr.bf16.gmra.mrb[0].mxu0 %v4128
      %v4213 = vpop.f32.mrb[0].mxu0
      %v4214 = vadd.f32 %v4124, %v4213
      %v4215 = vpop.f32.mrb[0].mxu0
      %v4216 = vpop.f32.mrb[0].mxu0
      %v4217 = vadd.f32 %v4124, %v4216
      %v4218 = vpop.f32.mrb[0].mxu0
      %4219 = vmatprep.mubr.bf16.mxu0 0
      %4220 = vmatmul.mubr.bf16.gmra.mrb[0].mxu0 %v4131
      %v4221 = vpop.f32.mrb[0].mxu0
      %v4222 = vadd.f32 %v4124, %v4221
      %v4223 = vpop.f32.mrb[0].mxu0
      %v4224 = vpop.f32.mrb[0].mxu0
      %v4225 = vadd.f32 %v4124, %v4224
      %v4226 = vpop.f32.mrb[0].mxu0
      %4227 = vmatprep.mubr.bf16.mxu0 0
      %4228 = vmatmul.mubr.bf16.gmra.mrb[0].mxu0 %v4134
      %v4229 = vpop.f32.mrb[0].mxu0
      %v4230 = vadd.f32 %v4124, %v4229
      %v4231 = vpop.f32.mrb[0].mxu0
      %v4232 = vpop.f32.mrb[0].mxu0
      %v4233 = vadd.f32 %v4124, %v4232
      %v4234 = vpop.f32.mrb[0].mxu0
      %4235 = vmatprep.mubr.bf16.mxu0 0
      %4236 = vmatmul.mubr.bf16.gmra.mrb[0].mxu0 %v4137
      %v4237 = vpop.f32.mrb[0].mxu0
      %v4238 = vadd.f32 %v4124, %v4237
      %v4239 = vpop.f32.mrb[0].mxu0
      %v4240 = vpop.f32.mrb[0].mxu0
      %v4241 = vadd.f32 %v4124, %v4240
      %v4242 = vpop.f32.mrb[0].mxu0
      %4243 = vmatprep.mubr.bf16.mxu0 0
      %4244 = vmatmul.mubr.bf16.gmra.mrb[0].mxu0 %v4140
      %v4245 = vpop.f32.mrb[0].mxu0
      %v4246 = vadd.f32 %v4124, %v4245
      %v4247 = vpop.f32.mrb[0].mxu0
      %v4248 = vpop.f32.mrb[0].mxu0
      %v4249 = vadd.f32 %v4124, %v4248
      %v4250 = vpop.f32.mrb[0].mxu0
      %4251 = vmatprep.mubr.bf16.mxu0 0
      %4252 = vmatmul.mubr.bf16.gmra.mrb[0].mxu0 %v4143
      %v4253 = vpop.f32.mrb[0].mxu0
      %v4254 = vadd.f32 %v4124, %v4253
      %v4255 = vpop.f32.mrb[0].mxu0
      %v4256 = vpop.f32.mrb[0].mxu0
      %v4257 = vadd.f32 %v4124, %v4256
      %v4258 = vpop.f32.mrb[0].mxu0
      %4259 = vmatprep.mubr.bf16.mxu0 0
      %4260 = vmatmul.mubr.bf16.gmra.mrb[0].mxu0 %v4146
      %v4261 = vpop.f32.mrb[0].mxu0
      %v4262 = vadd.f32 %v4124, %v4261
      %v4263 = vpop.f32.mrb[0].mxu0
      %v4264 = vpop.f32.mrb[0].mxu0
      %v4265 = vadd.f32 %v4124, %v4264
      %v4266 = vpop.f32.mrb[0].mxu0
      %4267 = vmatprep.mubr.bf16.mxu0 0
      %4268 = vmatmul.mubr.bf16.gmra.mrb[0].mxu0 %v4149
      %v4269 = vpop.f32.mrb[0].mxu0
      %v4270 = vadd.f32 %v4124, %v4269
      %v4271 = vpop.f32.mrb[0].mxu0
      %v4272 = vpop.f32.mrb[0].mxu0
      %v4273 = vadd.f32 %v4124, %v4272
      %v4274 = vpop.f32.mrb[0].mxu0
      %4275 = vmatprep.mubr.bf16.mxu0 0
      %4276 = vmatmul.mubr.bf16.gmra.mrb[0].mxu0 %v4152
      %v4277 = vpop.f32.mrb[0].mxu0
      %v4278 = vadd.f32 %v4124, %v4277
      %v4279 = vpop.f32.mrb[0].mxu0
      %v4280 = vpop.f32.mrb[0].mxu0
      %v4281 = vadd.f32 %v4124, %v4280
      %v4282 = vpop.f32.mrb[0].mxu0
      %4283 = vmatprep.mubr.bf16.mxu0 0
      %4284 = vmatmul.mubr.bf16.gmra.mrb[0].mxu0 %v4155
      %v4285 = vpop.f32.mrb[0].mxu0
      %v4286 = vadd.f32 %v4124, %v4285
      %v4287 = vpop.f32.mrb[0].mxu0
      %v4288 = vpop.f32.mrb[0].mxu0
      %v4289 = vadd.f32 %v4124, %v4288
      %v4290 = vpop.f32.mrb[0].mxu0
      %4291 = vmatprep.mubr.bf16.mxu0 0
      %4292 = vmatmul.mubr.bf16.gmra.mrb[0].mxu0 %v4158
      %v4293 = vpop.f32.mrb[0].mxu0
      %v4294 = vadd.f32 %v4124, %v4293
      %v4295 = vpop.f32.mrb[0].mxu0
      %v4296 = vpop.f32.mrb[0].mxu0
      %v4297 = vadd.f32 %v4124, %v4296
      %v4298 = vpop.f32.mrb[0].mxu0
      %4299 = vmatprep.mubr.bf16.mxu0 0
      %4300 = vmatmul.mubr.bf16.gmra.mrb[0].mxu0 %v4161
      %v4301 = vpop.f32.mrb[0].mxu0
      %v4302 = vadd.f32 %v4124, %v4301
      %v4303 = vpop.f32.mrb[0].mxu0
      %v4304 = vpop.f32.mrb[0].mxu0
      %v4305 = vadd.f32 %v4124, %v4304
      %v4306 = vpop.f32.mrb[0].mxu0
      %4307 = vmatprep.mubr.bf16.mxu0 0
      %4308 = vmatmul.mubr.bf16.gmra.mrb[0].mxu0 %v4164
      %v4309 = vpop.f32.mrb[0].mxu0
      %v4310 = vadd.f32 %v4124, %v4309
      %v4311 = vpop.f32.mrb[0].mxu0
      %v4312 = vpop.f32.mrb[0].mxu0
      %v4313 = vadd.f32 %v4124, %v4312
      %v4314 = vpop.f32.mrb[0].mxu0
      %4315 = vmatprep.mubr.bf16.mxu0 0
      %4316 = vmatmul.mubr.bf16.gmra.mrb[0].mxu0 %v4167
      %v4317 = vpop.f32.mrb[0].mxu0
      %v4318 = vadd.f32 %v4124, %v4317
      %v4319 = vpop.f32.mrb[0].mxu0
      %v4320 = vpop.f32.mrb[0].mxu0
      %v4321 = vadd.f32 %v4124, %v4320
      %v4322 = vpop.f32.mrb[0].mxu0
      %4323 = vmatprep.mubr.bf16.mxu0 0
      %4324 = vmatmul.mubr.bf16.gmra.mrb[0].mxu0 %v4170
      %v4325 = vpop.f32.mrb[0].mxu0
      %v4326 = vadd.f32 %v4124, %v4325
      %v4327 = vpop.f32.mrb[0].mxu0
      %v4328 = vpop.f32.mrb[0].mxu0
      %v4329 = vadd.f32 %v4124, %v4328
      %v4330 = vpop.f32.mrb[0].mxu0
      %4331 = vmatprep.mubr.bf16.mxu0 0
      %4332 = vmatmul.mubr.bf16.gmra.mrb[0].mxu0 %v4173
      %v4333 = vpop.f32.mrb[0].mxu0
      %v4334 = vadd.f32 %v4124, %v4333
      %v4335 = vpop.f32.mrb[0].mxu0
      %v4336 = vpop.f32.mrb[0].mxu0
      %v4337 = vadd.f32 %v4124, %v4336
      %v4338 = vpop.f32.mrb[0].mxu0
      %4339 = vdwg.mxu0
      %4340 = vst.msk [vmem:[%s382] sm:$0xff] %vm983, %v4214
      %4341 = vst.msk [vmem:[%s382 + $0x8] sm:$0xff] %vm983, %v4217
      %4342 = vst.msk [vmem:[%s382 + $0x10] sm:$0xff] %vm983, %v4222
      %4343 = vst.msk [vmem:[%s382 + $0x18] sm:$0xff] %vm983, %v4225
      %4344 = vst.msk [vmem:[%s382 + $0x20] sm:$0xff] %vm983, %v4230
      %4345 = vst.msk [vmem:[%s382 + $0x28] sm:$0xff] %vm983, %v4233
      %4346 = vst.msk [vmem:[%s382 + $0x30] sm:$0xff] %vm983, %v4238
      %4347 = vst.msk [vmem:[%s382 + $0x38] sm:$0xff] %vm983, %v4241
      %4348 = vst.msk [vmem:[%s382 + $0x40] sm:$0xff] %vm983, %v4246
      %4349 = vst.msk [vmem:[%s382 + $0x48] sm:$0xff] %vm983, %v4249
      %4350 = vst.msk [vmem:[%s382 + $0x50] sm:$0xff] %vm983, %v4254
      %4351 = vst.msk [vmem:[%s382 + $0x58] sm:$0xff] %vm983, %v4257
      %4352 = vst.msk [vmem:[%s382 + $0x60] sm:$0xff] %vm983, %v4262
      %4353 = vst.msk [vmem:[%s382 + $0x68] sm:$0xff] %vm983, %v4265
      %4354 = vst.msk [vmem:[%s382 + $0x70] sm:$0xff] %vm983, %v4270
      %4355 = vst.msk [vmem:[%s382 + $0x78] sm:$0xff] %vm983, %v4273
      %4356 = vst.msk [vmem:[%s382 + $0x80] sm:$0xff] %vm983, %v4278
      %4357 = vst.msk [vmem:[%s382 + $0x88] sm:$0xff] %vm983, %v4281
      %4358 = vst.msk [vmem:[%s382 + $0x90] sm:$0xff] %vm983, %v4286
      %4359 = vst.msk [vmem:[%s382 + $0x98] sm:$0xff] %vm983, %v4289
      %4360 = vst.msk [vmem:[%s382 + $0xa0] sm:$0xff] %vm983, %v4294
      %4361 = vst.msk [vmem:[%s382 + $0xa8] sm:$0xff] %vm983, %v4297
      %4362 = vst.msk [vmem:[%s382 + $0xb0] sm:$0xff] %vm983, %v4302
      %4363 = vst.msk [vmem:[%s382 + $0xb8] sm:$0xff] %vm983, %v4305
      %4364 = vst.msk [vmem:[%s382 + $0xc0] sm:$0xff] %vm983, %v4310
      %4365 = vst.msk [vmem:[%s382 + $0xc8] sm:$0xff] %vm983, %v4313
      %4366 = vst.msk [vmem:[%s382 + $0xd0] sm:$0xff] %vm983, %v4318
      %4367 = vst.msk [vmem:[%s382 + $0xd8] sm:$0xff] %vm983, %v4321
      %4368 = vst.msk [vmem:[%s382 + $0xe0] sm:$0xff] %vm983, %v4326
      %4369 = vst.msk [vmem:[%s382 + $0xe8] sm:$0xff] %vm983, %v4329
      %4370 = vst.msk [vmem:[%s382 + $0xf0] sm:$0xff] %vm983, %v4334
      %4371 = vst.msk [vmem:[%s382 + $0xf8] sm:$0xff] %vm983, %v4337
      %s4372 = smul.u32 16, %s24
      %p4373 = scmp.lt.s32.totalorder %s23, 1
      %s4374 = scalar_select %p4373, %s23, 1
      %p4375 = scmp.lt.s32.totalorder %s4372, 15
      %s4376 = scalar_select %p4375, %s4372, 15
      %s4377 = smul.addr %s4376, 2
      %s4378 = smul.addr %s4374, 32
      %s4379 = sadd.s32 %s4377, %s4378
      %s4380 = smul.addr %s4379, 8
      %s4381 = scalar_lea.vmem %s8, %s4380
      // Predicated region
      $region53: #{tpu_custom_call.1} parent=51 // pred_check
        %p4382 = pneg %p233
      $region54: #{tpu_custom_call.1} parent=51 // pred_check_branch
        %4384 = sbr.rel (%p4382) target = $region56
      $region55: #{tpu_custom_call.1} parent=51 // pred_region
        %s4385 = smul.u32 16, %s24
      $region56: #{tpu_custom_call.1} parent=51 // pred_fallthru
        _
    $region52: #{tpu_custom_call.1} parent=5 // pred_fallthru
      _
    %p4386 = scmp.le.s32.totalorder 2, %s14
    // Predicated region
    $region57: #{tpu_custom_call.1} parent=5 // pred_check
      %p4387 = pneg %p4386
    $region58: #{tpu_custom_call.1} parent=5 // pred_check_branch
      %4389 = sbr.rel (%p4387) target = $region60
    $region59: #{tpu_custom_call.1} parent=5 // pred_region
      %s4390 = ssub.s32 %s14, 2
      // Predicated region
      $region61: #{tpu_custom_call.1} parent=59 // pred_check
        %p4391 = pneg %p239
      $region62: #{tpu_custom_call.1} parent=59 // pred_check_branch
        %4393 = sbr.rel (%p4391) target = $region64
      $region63: #{tpu_custom_call.1} parent=59 // pred_region
        %s4394 = smul.u32 16, %s26
        %p4395 = scmp.lt.s32.totalorder %s25, 1
        %s4396 = scalar_select %p4395, %s25, 1
        %p4397 = scmp.lt.s32.totalorder %s4394, 15
        %s4398 = scalar_select %p4397, %s4394, 15
        %s4399 = smul.addr %s4398, 2
        %s4400 = smul.addr %s4396, 32
        %s4401 = sadd.s32 %s4399, %s4400
        %s4402 = smul.addr %s4401, 8
        %s4403 = scalar_lea.vmem %s8, %s4402
      $region64: #{tpu_custom_call.1} parent=59 // pred_fallthru
        _
    $region60: #{tpu_custom_call.1} parent=5 // pred_fallthru
      _
  $region6: #{tpu_custom_call.1} parent=0 // loop_footer
    %s18 = sadd.s32 1, %s14
  $region7: #{tpu_custom_call.1} parent=0 // loop_footer_branch
    %13 = sbr.rel target = $region3
  $region8: #{tpu_custom_call.1} parent=0 // loop_exit
    _

</llo_original>
